<compile_context>
chip_gen: v6e
topology: v6e:2x2x1
jax: 0.10.0
libtpu: 0.0.40
codegen_flags: <defaults>
</compile_context>

<pallas_src>
import jax
import jax.numpy as jnp
import numpy as np
from jax import lax
from jax.experimental import pallas as pl
from jax.experimental.pallas import tpu as pltpu

LANE = 128


def _rup(v, m):
    return (v + m - 1) // m * m


def _cdiv(a, b):
    return -(-a // b)


def _vmem_limit_bytes():
    """Generation-aware VMEM budget (v7x: 64 MiB/TC, v5e/v6e: 128 MiB)."""
    cap = 64 * 1024 * 1024  # conservative default (v7x)
    try:
        cap = int(pltpu.get_tpu_info().vmem_capacity_bytes)
    except Exception:
        pass
    return int(min(cap * 3 // 4, 100 * 1024 * 1024))


def _pick_row_tile(Ho, Wg, CP, vmem_limit):
    """Conv2-output rows per grid step so that (plane block + y2 block +
    scratch + live accumulators) x double buffering stays well under budget."""
    per_row = Wg * CP * (
        4 * 2 * 2      # 4 phase planes, bf16, double-buffered
        + 4 * 2        # y2 f32 output block, double-buffered
        + 2            # bf16 intermediate scratch
        + 4 + 4)       # live f32 accumulators (conv1 + conv2)
    fixed = 2 * 9 * CP * CP * 2 * 2 + 4 * Wg * CP * 32   # weights + halo slack
    budget = vmem_limit // 2
    tr = max(8, (budget - fixed) // per_row)
    tr = min(int(tr), 512, _rup(Ho, 8))
    return max(8, (tr // 8) * 8)


# ------------------------------ kernel bodies -------------------------------

def _make_fused_conv_kernel(Ho, Wo, Wg, TR, Lb, CP):
    """conv3x3 stride-2 (+bias, ReLU) -> conv3x3 stride-1 (+bias) -> BN partial
    statistics.  The intermediate activation stays in a VMEM scratch buffer."""
    TRWg = TR * Wg

    def kernel(pt_ref, w1_ref, b1_ref, w2_ref, b2_ref, cm1_ref, cm2_ref,
               y2_ref, ps_ref, buf_ref):
        r0 = pl.program_id(1) * TR        # first conv2-output row of this tile

        # ---- conv1: 3x3 stride-2 via 2x2 phase planes, flat wide-row GEMM ----
        acc1 = jnp.zeros((Lb, CP), jnp.float32)
        for i in range(3):
            for j in range(3):
                p = (i % 2) * 2 + (j % 2)
                off = (i // 2) * Wg + (j // 2)
                a = pt_ref[0, 0, p, off:off + Lb, :]          # (Lb, CP) bf16
                acc1 = acc1 + jnp.dot(a, w1_ref[i * 3 + j],
                                      preferred_element_type=jnp.float32)
        acc1 = jnp.maximum(acc1 + b1_ref[...], 0.0)
        # Zero conv2's padding ring / out-of-range rows.  Row bounds are
        # division-free comparisons on an iota; the column pattern is a tiny
        # VMEM-resident constant.
        t1 = lax.broadcasted_iota(jnp.int32, (Lb, 1), 0)
        row_ok1 = (t1 >= (1 - r0) * Wg) & (t1 < (Ho + 1 - r0) * Wg)
        buf_ref[...] = (jnp.where(row_ok1, acc1, 0.0)
                        * cm1_ref[...]).astype(jnp.bfloat16)

        # ---- conv2: 3x3 stride-1 over the VMEM-resident intermediate ----
        acc2 = jnp.zeros((TRWg, CP), jnp.float32)
        for i in range(3):
            for j in range(3):
                off = i * Wg + j
                a = buf_ref[off:off + TRWg, :]                # (TRWg, CP) bf16
                acc2 = acc2 + jnp.dot(a, w2_ref[i * 3 + j],
                                      preferred_element_type=jnp.float32)
        y2 = acc2 + b2_ref[...]
        y2_ref[0, 0] = y2

        # ---- BatchNorm partial stats (bias-centred moments, masked) ----
        t2 = lax.broadcasted_iota(jnp.int32, (TRWg, 1), 0)
        row_ok2 = t2 < (Ho - r0) * Wg
        yc = jnp.where(row_ok2, y2 - b2_ref[...], 0.0) * cm2_ref[...]
        ps_ref[0, 0, 0:1, :] = jnp.sum(yc, axis=0, keepdims=True)
        ps_ref[0, 0, 1:2, :] = jnp.sum(yc * yc, axis=0, keepdims=True)

    return kernel


def _make_bn_residual_kernel(Wg, TR, CP):
    """BN apply (precomputed scale/shift) + recomputed 1x1-stride-2 shortcut
    GEMM + residual add, per (image, row-tile)."""
    TRWg = TR * Wg

    def kernel(y2_ref, p3_ref, ws_ref, scale_ref, shift_ref, o_ref):
        # Phase plane 3 == x[:, ::2, ::2, :]; shift by one pad row + one pad
        # column to align with the conv2 wide-row grid.
        xs = p3_ref[0, 0, 0, Wg + 1:Wg + 1 + TRWg, :]          # (TRWg, CP) bf16
        sc = jnp.dot(xs, ws_ref[...], preferred_element_type=jnp.float32)
        o_ref[0, 0] = y2_ref[0, 0] * scale_ref[...] + shift_ref[...] + sc

    return kernel


# --------------------------------- wrapper ----------------------------------

def resblock2_forward(x_nchw, params, n_feat, kernel_size=3, stride=1,
                      row_tile=None):
    # Specialized to the spec instance: 3x3 convs, module stride argument 1
    # (i.e. conv1 / shortcut stride 2, conv2 stride 1).
    assert kernel_size == 3 and stride == 1
    N, c_in, H, W = x_nchw.shape
    assert H % 2 == 0 and W % 2 == 0
    Ho, Wo = H // 2, W // 2
    CP = _rup(max(n_feat, c_in), LANE)            # lane-dense padded channels
    f32, bf16 = jnp.float32, jnp.bfloat16

    # Wide-grid width: conv output width + 2 pad columns, rounded up to a
    # sublane multiple when the overhead is small (fewer tap realignments).
    Wg = Wo + 2
    if _rup(Wg, 8) - Wg <= Wg // 4:
        Wg = _rup(Wg, 8)

    vmem_limit = _vmem_limit_bytes()
    TR = int(row_tile) if row_tile is not None else _pick_row_tile(Ho, Wg, CP,
                                                                   vmem_limit)
    TR = max(1, TR)
    n_t = _cdiv(Ho, TR)
    Ho_p = n_t * TR
    Hh, Wh = Ho + 1, Wo + 1
    TRWg = TR * Wg
    Lb = _rup((TR + 2) * Wg + 2, 8)               # conv2 padded-input rows/tile
    PLOAD = _rup(Lb + Wg + 2, 8)                  # plane rows per tile (+halo)
    Lpflat = (n_t - 1) * TRWg + PLOAD             # total flat plane length

    # ---- single boundary relayout: NCHW -> padded bf16 phase planes ----
    x = jnp.transpose(x_nchw, (0, 2, 3, 1)).astype(f32)
    x = jnp.pad(x, ((0, 0), (0, 0), (0, 0), (0, CP - c_in))).astype(bf16)
    xp = jnp.pad(x, ((0, 0), (1, 1), (1, 1), (0, 0)))          # (N,H+2,W+2,CP)
    planes = jnp.stack([xp[:, r::2, c::2, :] for r in (0, 1) for c in (0, 1)],
                       axis=1)                                  # (N,4,Hh,Wh,CP)
    # one zero row-block on top, one zero column on the left, right-pad to Wg
    planes = jnp.pad(planes, ((0, 0), (0, 0), (1, 0), (1, Wg - 1 - Wh), (0, 0)))
    planes = planes.reshape(N, 4, (Hh + 1) * Wg, CP)
    planes = jnp.pad(planes,
                     ((0, 0), (0, 0), (0, Lpflat - (Hh + 1) * Wg), (0, 0)))
    if n_t == 1:
        planes_t = planes[:, None, :, :PLOAD, :]
    else:
        planes_t = jnp.stack(
            [planes[:, :, t * TRWg:t * TRWg + PLOAD, :] for t in range(n_t)],
            axis=1)                                 # (N, n_t, 4, PLOAD, CP)

    def w_stack(w_oihw):            # (Cout,Cin,3,3) -> (9, CP, CP) bf16
        Cout, Cin, a, b = w_oihw.shape
        wm = jnp.transpose(w_oihw, (2, 3, 1, 0)).reshape(a * b, Cin, Cout)
        return jnp.pad(wm, ((0, 0), (0, CP - Cin), (0, CP - Cout))).astype(bf16)

    w1s = w_stack(params["w1"])
    w2s = w_stack(params["w2"])
    ws = jnp.pad(jnp.transpose(params["ws"][:, :, 0, 0]),
                 ((0, CP - c_in), (0, CP - n_feat))).astype(bf16)
    b1 = jnp.pad(params["b1"], (0, CP - n_feat)).reshape(1, CP).astype(f32)
    b2 = jnp.pad(params["b2"], (0, CP - n_feat)).reshape(1, CP).astype(f32)

    # Tiny, tile-independent column-pattern masks (constant index maps).
    idx1 = np.arange(Lb) % Wg
    cm1 = jnp.asarray(((idx1 >= 1) & (idx1 <= Wo)).astype(np.float32)
                      ).reshape(Lb, 1)
    idx2 = np.arange(TRWg) % Wg
    cm2 = jnp.asarray((idx2 < Wo).astype(np.float32)).reshape(TRWg, 1)

    cparams = pltpu.CompilerParams(
        dimension_semantics=("parallel", "parallel"),
        vmem_limit_bytes=vmem_limit)

    conv_cost = pl.CostEstimate(
        flops=int(2 * N * n_t * CP * CP * 9 * (Lb + TRWg)),
        transcendentals=0,
        bytes_accessed=int(planes_t.size * 2 + (w1s.size + w2s.size) * 2
                           + N * n_t * TRWg * CP * 4 + N * n_t * 2 * CP * 4))

    y2, ps = pl.pallas_call(
        _make_fused_conv_kernel(Ho, Wo, Wg, TR, Lb, CP),
        out_shape=(jax.ShapeDtypeStruct((N, n_t, TRWg, CP), f32),
                   jax.ShapeDtypeStruct((N, n_t, 2, CP), f32)),
        grid=(N, n_t),
        in_specs=[
            pl.BlockSpec((1, 1, 4, PLOAD, CP), lambda n, t: (n, t, 0, 0, 0)),
            pl.BlockSpec((9, CP, CP), lambda n, t: (0, 0, 0)),
            pl.BlockSpec((1, CP), lambda n, t: (0, 0)),
            pl.BlockSpec((9, CP, CP), lambda n, t: (0, 0, 0)),
            pl.BlockSpec((1, CP), lambda n, t: (0, 0)),
            pl.BlockSpec((Lb, 1), lambda n, t: (0, 0)),
            pl.BlockSpec((TRWg, 1), lambda n, t: (0, 0)),
        ],
        out_specs=(pl.BlockSpec((1, 1, TRWg, CP), lambda n, t: (n, t, 0, 0)),
                   pl.BlockSpec((1, 1, 2, CP), lambda n, t: (n, t, 0, 0))),
        scratch_shapes=[pltpu.VMEM((Lb, CP), bf16)],
        compiler_params=cparams,
        cost_estimate=conv_cost,
    )(planes_t, w1s, b1, w2s, b2, cm1, cm2)

    # ---- BatchNorm (training batch statistics) -> per-channel scale/shift ----
    # TODO(synk): PyTorch BatchNorm2d running_mean/running_var buffer updates
    # (training side effects) are not produced; only the forward batch-stat
    # normalization is computed (matches the module's forward output).
    M = N * Ho * Wo
    tot = jnp.sum(ps, axis=(0, 1))                     # cross-tile reduction
    mc = tot[0] / M                                    # E[y - b2]  (centred)
    var = jnp.maximum(tot[1] / M - mc * mc, 0.0)       # biased variance
    inv = lax.rsqrt(var + 1e-5)
    gamma = jnp.pad(params["gamma"], (0, CP - n_feat)).astype(f32)
    beta = jnp.pad(params["beta"], (0, CP - n_feat)).astype(f32)
    scale = (gamma * inv).reshape(1, CP)
    shift = (beta - (mc + b2[0]) * gamma * inv).reshape(1, CP)

    # ---- fused BN-apply + recomputed 1x1-stride-2 shortcut + residual add ----
    bn_cost = pl.CostEstimate(
        flops=int(2 * N * n_t * TRWg * CP * CP + 3 * N * n_t * TRWg * CP),
        transcendentals=0,
        bytes_accessed=int(N * n_t * TRWg * CP * (4 + 2 + 4) + ws.size * 2))

    out_t = pl.pallas_call(
        _make_bn_residual_kernel(Wg, TR, CP),
        out_shape=jax.ShapeDtypeStruct((N, n_t, TRWg, CP), f32),
        grid=(N, n_t),
        in_specs=[
            pl.BlockSpec((1, 1, TRWg, CP), lambda n, t: (n, t, 0, 0)),
            pl.BlockSpec((1, 1, 1, PLOAD, CP), lambda n, t: (n, t, 3, 0, 0)),
            pl.BlockSpec((CP, CP), lambda n, t: (0, 0)),
            pl.BlockSpec((1, CP), lambda n, t: (0, 0)),
            pl.BlockSpec((1, CP), lambda n, t: (0, 0)),
        ],
        out_specs=pl.BlockSpec((1, 1, TRWg, CP), lambda n, t: (n, t, 0, 0)),
        compiler_params=cparams,
        cost_estimate=bn_cost,
    )(y2, planes_t, ws, scale, shift)

    # ---- drop pad columns / overhang rows / padded channels, back to NCHW ----
    out = out_t.reshape(N, n_t, TR, Wg, CP)[:, :, :, :Wo, :n_feat]
    out = out.reshape(N, Ho_p, Wo, n_feat)[:, :Ho]
    return jnp.transpose(out, (0, 3, 1, 2))


# --------------------------- pure-JAX reference -----------------------------

def resblock2_ref(x, params, n_feat, kernel_size=3, stride=1, match_bf16=False):
    """PyTorch-equivalent forward.  With match_bf16=True, conv operands and the
    intermediate activation are rounded through bf16 at the same points as the
    Pallas pipeline (which feeds the MXU bf16 with f32 accumulation)."""
    pad = kernel_size // 2
    f32 = jnp.float32

    def rnd(a):
        return a.astype(jnp.bfloat16).astype(f32) if match_bf16 else a

    def conv(xx, w, b, s, p):
        y = jax.lax.conv_general_dilated(
            rnd(xx), rnd(w), (s, s), [(p, p), (p, p)],
            dimension_numbers=("NCHW", "OIHW", "NCHW"),
            preferred_element_type=f32)
        if b is not None:
            y = y + b[None, :, None, None]
        return y

    r = conv(x, params["w1"], params["b1"], 2 * stride, pad)
    r = jnp.maximum(r, 0.0)
    r = rnd(r)   # kernel path holds the ReLU activation as bf16
    r = conv(r, params["w2"], params["b2"], stride, pad)
    mean = jnp.mean(r, axis=(0, 2, 3), keepdims=True)
    var = jnp.mean((r - mean) ** 2, axis=(0, 2, 3), keepdims=True)
    r = (r - mean) * jax.lax.rsqrt(var + 1e-5)
    r = r * params["gamma"][None, :, None, None] + params["beta"][None, :, None, None]
    sc = conv(x, params["ws"], None, 2, 0)
    return r + sc


# ----------------------------------- main ------------------------------------

if __name__ == "__main__":
    n_feat, kernel_size, stride = 8, 3, 1
    N, H, W = 2, 16, 16
    c_in = n_feat // 2

    key = jax.random.PRNGKey(0)
    k = jax.random.split(key, 8)

    params = {
        "w1": 0.1 * jax.random.normal(k[0], (n_feat, c_in, kernel_size, kernel_size), jnp.float32),
        "b1": 0.1 * jax.random.normal(k[1], (n_feat,), jnp.float32),
        "w2": 0.1 * jax.random.normal(k[2], (n_feat, n_feat, kernel_size, kernel_size), jnp.float32),
        "b2": 0.1 * jax.random.normal(k[3], (n_feat,), jnp.float32),
        "ws": 0.1 * jax.random.normal(k[4], (n_feat, c_in, 1, 1), jnp.float32),
        "gamma": 1.0 + 0.1 * jax.random.normal(k[5], (n_feat,), jnp.float32),
        "beta": 0.1 * jax.random.normal(k[6], (n_feat,), jnp.float32),
    }
    x = jax.random.normal(k[7], (N, c_in, H, W), jnp.float32)

    ref = jax.block_until_ready(
        resblock2_ref(x, params, n_feat, kernel_size, stride, match_bf16=True))

    # Default (VMEM-budgeted) tiling: single row tile at this small size.
    out = jax.block_until_ready(
        resblock2_forward(x, params, n_feat, kernel_size, stride))
    np.testing.assert_allclose(np.asarray(out), np.asarray(ref), rtol=1e-2, atol=1e-2)
    assert out.shape == (N, n_feat, H // 2, W // 2)

    # Forced multi-row-tile path: exercises halo handling / 2-D parallel grid.
    out2 = jax.block_until_ready(
        resblock2_forward(x, params, n_feat, kernel_size, stride, row_tile=4))
    np.testing.assert_allclose(np.asarray(out2), np.asarray(ref), rtol=1e-2, atol=1e-2)

    print("KERNEL_OK")
</pallas_src>

<mosaic_0001>
module attributes {stable_mosaic.version = 11 : i64} {
  func.func @kernel(%arg0: i32, %arg1: i32, %arg2: memref<1x1x4x120x128xbf16, #tpu.memory_space<vmem>>, %arg3: memref<9x128x128xbf16, #tpu.memory_space<vmem>>, %arg4: memref<1x128xf32, #tpu.memory_space<vmem>>, %arg5: memref<9x128x128xbf16, #tpu.memory_space<vmem>>, %arg6: memref<1x128xf32, #tpu.memory_space<vmem>>, %arg7: memref<104x1xf32, #tpu.memory_space<vmem>>, %arg8: memref<80x1xf32, #tpu.memory_space<vmem>>, %arg9: memref<1x1x80x128xf32, #tpu.memory_space<vmem>>, %arg10: memref<1x1x2x128xf32, #tpu.memory_space<vmem>>, %arg11: memref<104x128xbf16, #tpu.memory_space<vmem>>) attributes {dimension_semantics = [#tpu.dimension_semantics<parallel>, #tpu.dimension_semantics<parallel>], iteration_bounds = array<i64: 2, 1>, scalar_prefetch = 0 : i64, scratch_operands = 1 : i64, tpu.core_type = #tpu.core_type<tc>, window_params = [{transform_indices = @transform_0, window_bounds = array<i64: 1, 1, 4, 120, 128>}, {pipeline_mode = #tpu.pipeline_mode<synchronous>, transform_indices = @transform_1, window_bounds = array<i64: 9, 128, 128>}, {pipeline_mode = #tpu.pipeline_mode<synchronous>, transform_indices = @transform_2, window_bounds = array<i64: 1, 128>}, {pipeline_mode = #tpu.pipeline_mode<synchronous>, transform_indices = @transform_3, window_bounds = array<i64: 9, 128, 128>}, {pipeline_mode = #tpu.pipeline_mode<synchronous>, transform_indices = @transform_4, window_bounds = array<i64: 1, 128>}, {pipeline_mode = #tpu.pipeline_mode<synchronous>, transform_indices = @transform_5, window_bounds = array<i64: 104, 1>}, {pipeline_mode = #tpu.pipeline_mode<synchronous>, transform_indices = @transform_6, window_bounds = array<i64: 80, 1>}, {transform_indices = @transform_7, window_bounds = array<i64: 1, 1, 80, 128>}, {transform_indices = @transform_8, window_bounds = array<i64: 1, 1, 2, 128>}]} {
    %c8_i32 = arith.constant 8 : i32
    %0 = arith.muli %arg1, %c8_i32 : i32
    %cst = arith.constant 0.000000e+00 : f32
    %1 = vector.broadcast %cst : f32 to vector<104x128xf32>
    %c0 = arith.constant 0 : index
    %c0_0 = arith.constant 0 : index
    %c0_1 = arith.constant 0 : index
    %c0_2 = arith.constant 0 : index
    %c0_3 = arith.constant 0 : index
    %2 = vector.load %arg2[%c0, %c0_0, %c0_1, %c0_2, %c0_3] : memref<1x1x4x120x128xbf16, #tpu.memory_space<vmem>>, vector<1x1x1x104x128xbf16>
    %3 = vector.shape_cast %2 : vector<1x1x1x104x128xbf16> to vector<104x128xbf16>
    %c0_4 = arith.constant 0 : index
    %c0_5 = arith.constant 0 : index
    %c0_6 = arith.constant 0 : index
    %4 = vector.load %arg3[%c0_4, %c0_5, %c0_6] : memref<9x128x128xbf16, #tpu.memory_space<vmem>>, vector<1x128x128xbf16>
    %5 = vector.shape_cast %4 : vector<1x128x128xbf16> to vector<128x128xbf16>
    %cst_7 = arith.constant dense<0.000000e+00> : vector<104x128xf32>
    %6 = tpu.matmul %3, %5, %cst_7 {dimension_numbers = #tpu.dot_dimension_numbers<[1], [0], [0], [1], [0, 0, 1, 1], [], []>} : vector<104x128xbf16>, vector<128x128xbf16>, vector<104x128xf32> -> vector<104x128xf32>
    %7 = arith.addf %1, %6 : vector<104x128xf32>
    %c0_8 = arith.constant 0 : index
    %c0_9 = arith.constant 0 : index
    %c1 = arith.constant 1 : index
    %c0_10 = arith.constant 0 : index
    %c0_11 = arith.constant 0 : index
    %8 = vector.load %arg2[%c0_8, %c0_9, %c1, %c0_10, %c0_11] : memref<1x1x4x120x128xbf16, #tpu.memory_space<vmem>>, vector<1x1x1x104x128xbf16>
    %9 = vector.shape_cast %8 : vector<1x1x1x104x128xbf16> to vector<104x128xbf16>
    %c1_12 = arith.constant 1 : index
    %c0_13 = arith.constant 0 : index
    %c0_14 = arith.constant 0 : index
    %10 = vector.load %arg3[%c1_12, %c0_13, %c0_14] : memref<9x128x128xbf16, #tpu.memory_space<vmem>>, vector<1x128x128xbf16>
    %11 = vector.shape_cast %10 : vector<1x128x128xbf16> to vector<128x128xbf16>
    %cst_15 = arith.constant dense<0.000000e+00> : vector<104x128xf32>
    %12 = tpu.matmul %9, %11, %cst_15 {dimension_numbers = #tpu.dot_dimension_numbers<[1], [0], [0], [1], [0, 0, 1, 1], [], []>} : vector<104x128xbf16>, vector<128x128xbf16>, vector<104x128xf32> -> vector<104x128xf32>
    %13 = arith.addf %7, %12 : vector<104x128xf32>
    %c0_16 = arith.constant 0 : index
    %c0_17 = arith.constant 0 : index
    %c0_18 = arith.constant 0 : index
    %c1_19 = arith.constant 1 : index
    %c0_20 = arith.constant 0 : index
    %14 = vector.load %arg2[%c0_16, %c0_17, %c0_18, %c1_19, %c0_20] : memref<1x1x4x120x128xbf16, #tpu.memory_space<vmem>>, vector<1x1x1x104x128xbf16>
    %15 = vector.shape_cast %14 : vector<1x1x1x104x128xbf16> to vector<104x128xbf16>
    %c2 = arith.constant 2 : index
    %c0_21 = arith.constant 0 : index
    %c0_22 = arith.constant 0 : index
    %16 = vector.load %arg3[%c2, %c0_21, %c0_22] : memref<9x128x128xbf16, #tpu.memory_space<vmem>>, vector<1x128x128xbf16>
    %17 = vector.shape_cast %16 : vector<1x128x128xbf16> to vector<128x128xbf16>
    %cst_23 = arith.constant dense<0.000000e+00> : vector<104x128xf32>
    %18 = tpu.matmul %15, %17, %cst_23 {dimension_numbers = #tpu.dot_dimension_numbers<[1], [0], [0], [1], [0, 0, 1, 1], [], []>} : vector<104x128xbf16>, vector<128x128xbf16>, vector<104x128xf32> -> vector<104x128xf32>
    %19 = arith.addf %13, %18 : vector<104x128xf32>
    %c0_24 = arith.constant 0 : index
    %c0_25 = arith.constant 0 : index
    %c2_26 = arith.constant 2 : index
    %c0_27 = arith.constant 0 : index
    %c0_28 = arith.constant 0 : index
    %20 = vector.load %arg2[%c0_24, %c0_25, %c2_26, %c0_27, %c0_28] : memref<1x1x4x120x128xbf16, #tpu.memory_space<vmem>>, vector<1x1x1x104x128xbf16>
    %21 = vector.shape_cast %20 : vector<1x1x1x104x128xbf16> to vector<104x128xbf16>
    %c3 = arith.constant 3 : index
    %c0_29 = arith.constant 0 : index
    %c0_30 = arith.constant 0 : index
    %22 = vector.load %arg3[%c3, %c0_29, %c0_30] : memref<9x128x128xbf16, #tpu.memory_space<vmem>>, vector<1x128x128xbf16>
    %23 = vector.shape_cast %22 : vector<1x128x128xbf16> to vector<128x128xbf16>
    %cst_31 = arith.constant dense<0.000000e+00> : vector<104x128xf32>
    %24 = tpu.matmul %21, %23, %cst_31 {dimension_numbers = #tpu.dot_dimension_numbers<[1], [0], [0], [1], [0, 0, 1, 1], [], []>} : vector<104x128xbf16>, vector<128x128xbf16>, vector<104x128xf32> -> vector<104x128xf32>
    %25 = arith.addf %19, %24 : vector<104x128xf32>
    %c0_32 = arith.constant 0 : index
    %c0_33 = arith.constant 0 : index
    %c3_34 = arith.constant 3 : index
    %c0_35 = arith.constant 0 : index
    %c0_36 = arith.constant 0 : index
    %26 = vector.load %arg2[%c0_32, %c0_33, %c3_34, %c0_35, %c0_36] : memref<1x1x4x120x128xbf16, #tpu.memory_space<vmem>>, vector<1x1x1x104x128xbf16>
    %27 = vector.shape_cast %26 : vector<1x1x1x104x128xbf16> to vector<104x128xbf16>
    %c4 = arith.constant 4 : index
    %c0_37 = arith.constant 0 : index
    %c0_38 = arith.constant 0 : index
    %28 = vector.load %arg3[%c4, %c0_37, %c0_38] : memref<9x128x128xbf16, #tpu.memory_space<vmem>>, vector<1x128x128xbf16>
    %29 = vector.shape_cast %28 : vector<1x128x128xbf16> to vector<128x128xbf16>
    %cst_39 = arith.constant dense<0.000000e+00> : vector<104x128xf32>
    %30 = tpu.matmul %27, %29, %cst_39 {dimension_numbers = #tpu.dot_dimension_numbers<[1], [0], [0], [1], [0, 0, 1, 1], [], []>} : vector<104x128xbf16>, vector<128x128xbf16>, vector<104x128xf32> -> vector<104x128xf32>
    %31 = arith.addf %25, %30 : vector<104x128xf32>
    %c0_40 = arith.constant 0 : index
    %c0_41 = arith.constant 0 : index
    %c2_42 = arith.constant 2 : index
    %c1_43 = arith.constant 1 : index
    %c0_44 = arith.constant 0 : index
    %32 = vector.load %arg2[%c0_40, %c0_41, %c2_42, %c1_43, %c0_44] : memref<1x1x4x120x128xbf16, #tpu.memory_space<vmem>>, vector<1x1x1x104x128xbf16>
    %33 = vector.shape_cast %32 : vector<1x1x1x104x128xbf16> to vector<104x128xbf16>
    %c5 = arith.constant 5 : index
    %c0_45 = arith.constant 0 : index
    %c0_46 = arith.constant 0 : index
    %34 = vector.load %arg3[%c5, %c0_45, %c0_46] : memref<9x128x128xbf16, #tpu.memory_space<vmem>>, vector<1x128x128xbf16>
    %35 = vector.shape_cast %34 : vector<1x128x128xbf16> to vector<128x128xbf16>
    %cst_47 = arith.constant dense<0.000000e+00> : vector<104x128xf32>
    %36 = tpu.matmul %33, %35, %cst_47 {dimension_numbers = #tpu.dot_dimension_numbers<[1], [0], [0], [1], [0, 0, 1, 1], [], []>} : vector<104x128xbf16>, vector<128x128xbf16>, vector<104x128xf32> -> vector<104x128xf32>
    %37 = arith.addf %31, %36 : vector<104x128xf32>
    %c0_48 = arith.constant 0 : index
    %c0_49 = arith.constant 0 : index
    %c0_50 = arith.constant 0 : index
    %c10 = arith.constant 10 : index
    %c0_51 = arith.constant 0 : index
    %38 = vector.load %arg2[%c0_48, %c0_49, %c0_50, %c10, %c0_51] : memref<1x1x4x120x128xbf16, #tpu.memory_space<vmem>>, vector<1x1x1x104x128xbf16>
    %39 = vector.shape_cast %38 : vector<1x1x1x104x128xbf16> to vector<104x128xbf16>
    %c6 = arith.constant 6 : index
    %c0_52 = arith.constant 0 : index
    %c0_53 = arith.constant 0 : index
    %40 = vector.load %arg3[%c6, %c0_52, %c0_53] : memref<9x128x128xbf16, #tpu.memory_space<vmem>>, vector<1x128x128xbf16>
    %41 = vector.shape_cast %40 : vector<1x128x128xbf16> to vector<128x128xbf16>
    %cst_54 = arith.constant dense<0.000000e+00> : vector<104x128xf32>
    %42 = tpu.matmul %39, %41, %cst_54 {dimension_numbers = #tpu.dot_dimension_numbers<[1], [0], [0], [1], [0, 0, 1, 1], [], []>} : vector<104x128xbf16>, vector<128x128xbf16>, vector<104x128xf32> -> vector<104x128xf32>
    %43 = arith.addf %37, %42 : vector<104x128xf32>
    %c0_55 = arith.constant 0 : index
    %c0_56 = arith.constant 0 : index
    %c1_57 = arith.constant 1 : index
    %c10_58 = arith.constant 10 : index
    %c0_59 = arith.constant 0 : index
    %44 = vector.load %arg2[%c0_55, %c0_56, %c1_57, %c10_58, %c0_59] : memref<1x1x4x120x128xbf16, #tpu.memory_space<vmem>>, vector<1x1x1x104x128xbf16>
    %45 = vector.shape_cast %44 : vector<1x1x1x104x128xbf16> to vector<104x128xbf16>
    %c7 = arith.constant 7 : index
    %c0_60 = arith.constant 0 : index
    %c0_61 = arith.constant 0 : index
    %46 = vector.load %arg3[%c7, %c0_60, %c0_61] : memref<9x128x128xbf16, #tpu.memory_space<vmem>>, vector<1x128x128xbf16>
    %47 = vector.shape_cast %46 : vector<1x128x128xbf16> to vector<128x128xbf16>
    %cst_62 = arith.constant dense<0.000000e+00> : vector<104x128xf32>
    %48 = tpu.matmul %45, %47, %cst_62 {dimension_numbers = #tpu.dot_dimension_numbers<[1], [0], [0], [1], [0, 0, 1, 1], [], []>} : vector<104x128xbf16>, vector<128x128xbf16>, vector<104x128xf32> -> vector<104x128xf32>
    %49 = arith.addf %43, %48 : vector<104x128xf32>
    %c0_63 = arith.constant 0 : index
    %c0_64 = arith.constant 0 : index
    %c0_65 = arith.constant 0 : index
    %c11 = arith.constant 11 : index
    %c0_66 = arith.constant 0 : index
    %50 = vector.load %arg2[%c0_63, %c0_64, %c0_65, %c11, %c0_66] : memref<1x1x4x120x128xbf16, #tpu.memory_space<vmem>>, vector<1x1x1x104x128xbf16>
    %51 = vector.shape_cast %50 : vector<1x1x1x104x128xbf16> to vector<104x128xbf16>
    %c8 = arith.constant 8 : index
    %c0_67 = arith.constant 0 : index
    %c0_68 = arith.constant 0 : index
    %52 = vector.load %arg3[%c8, %c0_67, %c0_68] : memref<9x128x128xbf16, #tpu.memory_space<vmem>>, vector<1x128x128xbf16>
    %53 = vector.shape_cast %52 : vector<1x128x128xbf16> to vector<128x128xbf16>
    %cst_69 = arith.constant dense<0.000000e+00> : vector<104x128xf32>
    %54 = tpu.matmul %51, %53, %cst_69 {dimension_numbers = #tpu.dot_dimension_numbers<[1], [0], [0], [1], [0, 0, 1, 1], [], []>} : vector<104x128xbf16>, vector<128x128xbf16>, vector<104x128xf32> -> vector<104x128xf32>
    %55 = arith.addf %49, %54 : vector<104x128xf32>
    %c0_70 = arith.constant 0 : index
    %c0_71 = arith.constant 0 : index
    %56 = vector.load %arg4[%c0_70, %c0_71] : memref<1x128xf32, #tpu.memory_space<vmem>>, vector<1x128xf32>
    %57 = vector.broadcast %56 : vector<1x128xf32> to vector<104x128xf32>
    %58 = arith.addf %55, %57 : vector<104x128xf32>
    %cst_72 = arith.constant 0.000000e+00 : f32
    %59 = vector.broadcast %cst_72 : f32 to vector<104x128xf32>
    %60 = arith.maximumf %58, %59 : vector<104x128xf32>
    %61 = tpu.iota {dimensions = array<i32: 0>} : vector<104x1xi32>
    %c1_i32 = arith.constant 1 : i32
    %62 = arith.subi %c1_i32, %0 : i32
    %c10_i32 = arith.constant 10 : i32
    %63 = arith.muli %62, %c10_i32 : i32
    %64 = vector.broadcast %63 : i32 to vector<104x1xi32>
    %65 = arith.cmpi sge, %61, %64 : vector<104x1xi32>
    %c9_i32 = arith.constant 9 : i32
    %66 = arith.subi %c9_i32, %0 : i32
    %c10_i32_73 = arith.constant 10 : i32
    %67 = arith.muli %66, %c10_i32_73 : i32
    %68 = vector.broadcast %67 : i32 to vector<104x1xi32>
    %69 = arith.cmpi slt, %61, %68 : vector<104x1xi32>
    %70 = arith.andi %65, %69 : vector<104x1xi1>
    %cst_74 = arith.constant 0.000000e+00 : f32
    %71 = vector.shape_cast %70 : vector<104x1xi1> to vector<104x1xi1>
    %72 = vector.broadcast %71 : vector<104x1xi1> to vector<104x128xi1>
    %73 = vector.broadcast %cst_74 : f32 to vector<104x128xf32>
    %74 = arith.select %72, %60, %73 : vector<104x128xi1>, vector<104x128xf32>
    %c0_75 = arith.constant 0 : index
    %c0_76 = arith.constant 0 : index
    %75 = vector.load %arg7[%c0_75, %c0_76] : memref<104x1xf32, #tpu.memory_space<vmem>>, vector<104x1xf32>
    %76 = vector.broadcast %75 : vector<104x1xf32> to vector<104x128xf32>
    %77 = arith.mulf %74, %76 : vector<104x128xf32>
    %78 = arith.truncf %77 : vector<104x128xf32> to vector<104x128xbf16>
    %c0_77 = arith.constant 0 : index
    %c0_78 = arith.constant 0 : index
    %79 = vector.load %arg11[%c0_77, %c0_78] : memref<104x128xbf16, #tpu.memory_space<vmem>>, vector<104x128xbf16>
    tpu.vector_store %arg11[%c0_77, %c0_78], %78 {strides = array<i32>} : memref<104x128xbf16, #tpu.memory_space<vmem>>, vector<104x128xbf16>,
    %cst_79 = arith.constant 0.000000e+00 : f32
    %80 = vector.broadcast %cst_79 : f32 to vector<80x128xf32>
    %c0_80 = arith.constant 0 : index
    %c0_81 = arith.constant 0 : index
    %81 = vector.load %arg11[%c0_80, %c0_81] : memref<104x128xbf16, #tpu.memory_space<vmem>>, vector<80x128xbf16>
    %c0_82 = arith.constant 0 : index
    %c0_83 = arith.constant 0 : index
    %c0_84 = arith.constant 0 : index
    %82 = vector.load %arg5[%c0_82, %c0_83, %c0_84] : memref<9x128x128xbf16, #tpu.memory_space<vmem>>, vector<1x128x128xbf16>
    %83 = vector.shape_cast %82 : vector<1x128x128xbf16> to vector<128x128xbf16>
    %cst_85 = arith.constant dense<0.000000e+00> : vector<80x128xf32>
    %84 = tpu.matmul %81, %83, %cst_85 {dimension_numbers = #tpu.dot_dimension_numbers<[1], [0], [0], [1], [0, 0, 1, 1], [], []>} : vector<80x128xbf16>, vector<128x128xbf16>, vector<80x128xf32> -> vector<80x128xf32>
    %85 = arith.addf %80, %84 : vector<80x128xf32>
    %c1_86 = arith.constant 1 : index
    %c0_87 = arith.constant 0 : index
    %86 = vector.load %arg11[%c1_86, %c0_87] : memref<104x128xbf16, #tpu.memory_space<vmem>>, vector<80x128xbf16>
    %c1_88 = arith.constant 1 : index
    %c0_89 = arith.constant 0 : index
    %c0_90 = arith.constant 0 : index
    %87 = vector.load %arg5[%c1_88, %c0_89, %c0_90] : memref<9x128x128xbf16, #tpu.memory_space<vmem>>, vector<1x128x128xbf16>
    %88 = vector.shape_cast %87 : vector<1x128x128xbf16> to vector<128x128xbf16>
    %cst_91 = arith.constant dense<0.000000e+00> : vector<80x128xf32>
    %89 = tpu.matmul %86, %88, %cst_91 {dimension_numbers = #tpu.dot_dimension_numbers<[1], [0], [0], [1], [0, 0, 1, 1], [], []>} : vector<80x128xbf16>, vector<128x128xbf16>, vector<80x128xf32> -> vector<80x128xf32>
    %90 = arith.addf %85, %89 : vector<80x128xf32>
    %c2_92 = arith.constant 2 : index
    %c0_93 = arith.constant 0 : index
    %91 = vector.load %arg11[%c2_92, %c0_93] : memref<104x128xbf16, #tpu.memory_space<vmem>>, vector<80x128xbf16>
    %c2_94 = arith.constant 2 : index
    %c0_95 = arith.constant 0 : index
    %c0_96 = arith.constant 0 : index
    %92 = vector.load %arg5[%c2_94, %c0_95, %c0_96] : memref<9x128x128xbf16, #tpu.memory_space<vmem>>, vector<1x128x128xbf16>
    %93 = vector.shape_cast %92 : vector<1x128x128xbf16> to vector<128x128xbf16>
    %cst_97 = arith.constant dense<0.000000e+00> : vector<80x128xf32>
    %94 = tpu.matmul %91, %93, %cst_97 {dimension_numbers = #tpu.dot_dimension_numbers<[1], [0], [0], [1], [0, 0, 1, 1], [], []>} : vector<80x128xbf16>, vector<128x128xbf16>, vector<80x128xf32> -> vector<80x128xf32>
    %95 = arith.addf %90, %94 : vector<80x128xf32>
    %c10_98 = arith.constant 10 : index
    %c0_99 = arith.constant 0 : index
    %96 = vector.load %arg11[%c10_98, %c0_99] : memref<104x128xbf16, #tpu.memory_space<vmem>>, vector<80x128xbf16>
    %c3_100 = arith.constant 3 : index
    %c0_101 = arith.constant 0 : index
    %c0_102 = arith.constant 0 : index
    %97 = vector.load %arg5[%c3_100, %c0_101, %c0_102] : memref<9x128x128xbf16, #tpu.memory_space<vmem>>, vector<1x128x128xbf16>
    %98 = vector.shape_cast %97 : vector<1x128x128xbf16> to vector<128x128xbf16>
    %cst_103 = arith.constant dense<0.000000e+00> : vector<80x128xf32>
    %99 = tpu.matmul %96, %98, %cst_103 {dimension_numbers = #tpu.dot_dimension_numbers<[1], [0], [0], [1], [0, 0, 1, 1], [], []>} : vector<80x128xbf16>, vector<128x128xbf16>, vector<80x128xf32> -> vector<80x128xf32>
    %100 = arith.addf %95, %99 : vector<80x128xf32>
    %c11_104 = arith.constant 11 : index
    %c0_105 = arith.constant 0 : index
    %101 = vector.load %arg11[%c11_104, %c0_105] : memref<104x128xbf16, #tpu.memory_space<vmem>>, vector<80x128xbf16>
    %c4_106 = arith.constant 4 : index
    %c0_107 = arith.constant 0 : index
    %c0_108 = arith.constant 0 : index
    %102 = vector.load %arg5[%c4_106, %c0_107, %c0_108] : memref<9x128x128xbf16, #tpu.memory_space<vmem>>, vector<1x128x128xbf16>
    %103 = vector.shape_cast %102 : vector<1x128x128xbf16> to vector<128x128xbf16>
    %cst_109 = arith.constant dense<0.000000e+00> : vector<80x128xf32>
    %104 = tpu.matmul %101, %103, %cst_109 {dimension_numbers = #tpu.dot_dimension_numbers<[1], [0], [0], [1], [0, 0, 1, 1], [], []>} : vector<80x128xbf16>, vector<128x128xbf16>, vector<80x128xf32> -> vector<80x128xf32>
    %105 = arith.addf %100, %104 : vector<80x128xf32>
    %c12 = arith.constant 12 : index
    %c0_110 = arith.constant 0 : index
    %106 = vector.load %arg11[%c12, %c0_110] : memref<104x128xbf16, #tpu.memory_space<vmem>>, vector<80x128xbf16>
    %c5_111 = arith.constant 5 : index
    %c0_112 = arith.constant 0 : index
    %c0_113 = arith.constant 0 : index
    %107 = vector.load %arg5[%c5_111, %c0_112, %c0_113] : memref<9x128x128xbf16, #tpu.memory_space<vmem>>, vector<1x128x128xbf16>
    %108 = vector.shape_cast %107 : vector<1x128x128xbf16> to vector<128x128xbf16>
    %cst_114 = arith.constant dense<0.000000e+00> : vector<80x128xf32>
    %109 = tpu.matmul %106, %108, %cst_114 {dimension_numbers = #tpu.dot_dimension_numbers<[1], [0], [0], [1], [0, 0, 1, 1], [], []>} : vector<80x128xbf16>, vector<128x128xbf16>, vector<80x128xf32> -> vector<80x128xf32>
    %110 = arith.addf %105, %109 : vector<80x128xf32>
    %c20 = arith.constant 20 : index
    %c0_115 = arith.constant 0 : index
    %111 = vector.load %arg11[%c20, %c0_115] : memref<104x128xbf16, #tpu.memory_space<vmem>>, vector<80x128xbf16>
    %c6_116 = arith.constant 6 : index
    %c0_117 = arith.constant 0 : index
    %c0_118 = arith.constant 0 : index
    %112 = vector.load %arg5[%c6_116, %c0_117, %c0_118] : memref<9x128x128xbf16, #tpu.memory_space<vmem>>, vector<1x128x128xbf16>
    %113 = vector.shape_cast %112 : vector<1x128x128xbf16> to vector<128x128xbf16>
    %cst_119 = arith.constant dense<0.000000e+00> : vector<80x128xf32>
    %114 = tpu.matmul %111, %113, %cst_119 {dimension_numbers = #tpu.dot_dimension_numbers<[1], [0], [0], [1], [0, 0, 1, 1], [], []>} : vector<80x128xbf16>, vector<128x128xbf16>, vector<80x128xf32> -> vector<80x128xf32>
    %115 = arith.addf %110, %114 : vector<80x128xf32>
    %c21 = arith.constant 21 : index
    %c0_120 = arith.constant 0 : index
    %116 = vector.load %arg11[%c21, %c0_120] : memref<104x128xbf16, #tpu.memory_space<vmem>>, vector<80x128xbf16>
    %c7_121 = arith.constant 7 : index
    %c0_122 = arith.constant 0 : index
    %c0_123 = arith.constant 0 : index
    %117 = vector.load %arg5[%c7_121, %c0_122, %c0_123] : memref<9x128x128xbf16, #tpu.memory_space<vmem>>, vector<1x128x128xbf16>
    %118 = vector.shape_cast %117 : vector<1x128x128xbf16> to vector<128x128xbf16>
    %cst_124 = arith.constant dense<0.000000e+00> : vector<80x128xf32>
    %119 = tpu.matmul %116, %118, %cst_124 {dimension_numbers = #tpu.dot_dimension_numbers<[1], [0], [0], [1], [0, 0, 1, 1], [], []>} : vector<80x128xbf16>, vector<128x128xbf16>, vector<80x128xf32> -> vector<80x128xf32>
    %120 = arith.addf %115, %119 : vector<80x128xf32>
    %c22 = arith.constant 22 : index
    %c0_125 = arith.constant 0 : index
    %121 = vector.load %arg11[%c22, %c0_125] : memref<104x128xbf16, #tpu.memory_space<vmem>>, vector<80x128xbf16>
    %c8_126 = arith.constant 8 : index
    %c0_127 = arith.constant 0 : index
    %c0_128 = arith.constant 0 : index
    %122 = vector.load %arg5[%c8_126, %c0_127, %c0_128] : memref<9x128x128xbf16, #tpu.memory_space<vmem>>, vector<1x128x128xbf16>
    %123 = vector.shape_cast %122 : vector<1x128x128xbf16> to vector<128x128xbf16>
    %cst_129 = arith.constant dense<0.000000e+00> : vector<80x128xf32>
    %124 = tpu.matmul %121, %123, %cst_129 {dimension_numbers = #tpu.dot_dimension_numbers<[1], [0], [0], [1], [0, 0, 1, 1], [], []>} : vector<80x128xbf16>, vector<128x128xbf16>, vector<80x128xf32> -> vector<80x128xf32>
    %125 = arith.addf %120, %124 : vector<80x128xf32>
    %c0_130 = arith.constant 0 : index
    %c0_131 = arith.constant 0 : index
    %126 = vector.load %arg6[%c0_130, %c0_131] : memref<1x128xf32, #tpu.memory_space<vmem>>, vector<1x128xf32>
    %127 = vector.broadcast %126 : vector<1x128xf32> to vector<80x128xf32>
    %128 = arith.addf %125, %127 : vector<80x128xf32>
    %c0_132 = arith.constant 0 : index
    %c0_133 = arith.constant 0 : index
    %c0_134 = arith.constant 0 : index
    %c0_135 = arith.constant 0 : index
    %129 = vector.load %arg9[%c0_132, %c0_133, %c0_134, %c0_135] : memref<1x1x80x128xf32, #tpu.memory_space<vmem>>, vector<1x1x80x128xf32>
    %130 = vector.shape_cast %129 : vector<1x1x80x128xf32> to vector<80x128xf32>
    %131 = vector.shape_cast %128 : vector<80x128xf32> to vector<1x1x80x128xf32>
    tpu.vector_store %arg9[%c0_132, %c0_133, %c0_134, %c0_135], %131 {strides = array<i32>} : memref<1x1x80x128xf32, #tpu.memory_space<vmem>>, vector<1x1x80x128xf32>,
    %132 = tpu.iota {dimensions = array<i32: 0>} : vector<80x1xi32>
    %c8_i32_136 = arith.constant 8 : i32
    %133 = arith.subi %c8_i32_136, %0 : i32
    %c10_i32_137 = arith.constant 10 : i32
    %134 = arith.muli %133, %c10_i32_137 : i32
    %135 = vector.broadcast %134 : i32 to vector<80x1xi32>
    %136 = arith.cmpi slt, %132, %135 : vector<80x1xi32>
    %c0_138 = arith.constant 0 : index
    %c0_139 = arith.constant 0 : index
    %137 = vector.load %arg6[%c0_138, %c0_139] : memref<1x128xf32, #tpu.memory_space<vmem>>, vector<1x128xf32>
    %138 = vector.broadcast %137 : vector<1x128xf32> to vector<80x128xf32>
    %139 = arith.subf %128, %138 : vector<80x128xf32>
    %cst_140 = arith.constant 0.000000e+00 : f32
    %140 = vector.shape_cast %136 : vector<80x1xi1> to vector<80x1xi1>
    %141 = vector.broadcast %140 : vector<80x1xi1> to vector<80x128xi1>
    %142 = vector.broadcast %cst_140 : f32 to vector<80x128xf32>
    %143 = arith.select %141, %139, %142 : vector<80x128xi1>, vector<80x128xf32>
    %c0_141 = arith.constant 0 : index
    %c0_142 = arith.constant 0 : index
    %144 = vector.load %arg8[%c0_141, %c0_142] : memref<80x1xf32, #tpu.memory_space<vmem>>, vector<80x1xf32>
    %145 = vector.broadcast %144 : vector<80x1xf32> to vector<80x128xf32>
    %146 = arith.mulf %143, %145 : vector<80x128xf32>
    %cst_143 = arith.constant dense<0.000000e+00> : vector<128xf32>
    %147 = vector.multi_reduction <add>, %146, %cst_143 [0] : vector<80x128xf32> to vector<128xf32>
    %148 = vector.shape_cast %147 : vector<128xf32> to vector<1x128xf32>
    %c0_144 = arith.constant 0 : index
    %c0_145 = arith.constant 0 : index
    %c0_146 = arith.constant 0 : index
    %c0_147 = arith.constant 0 : index
    %149 = vector.load %arg10[%c0_144, %c0_145, %c0_146, %c0_147] : memref<1x1x2x128xf32, #tpu.memory_space<vmem>>, vector<1x1x1x128xf32>
    %150 = vector.shape_cast %149 : vector<1x1x1x128xf32> to vector<1x128xf32>
    %151 = vector.shape_cast %148 : vector<1x128xf32> to vector<1x1x1x128xf32>
    tpu.vector_store %arg10[%c0_144, %c0_145, %c0_146, %c0_147], %151 {strides = array<i32>} : memref<1x1x2x128xf32, #tpu.memory_space<vmem>>, vector<1x1x1x128xf32>,
    %152 = arith.mulf %146, %146 : vector<80x128xf32>
    %cst_148 = arith.constant dense<0.000000e+00> : vector<128xf32>
    %153 = vector.multi_reduction <add>, %152, %cst_148 [0] : vector<80x128xf32> to vector<128xf32>
    %154 = vector.shape_cast %153 : vector<128xf32> to vector<1x128xf32>
    %c0_149 = arith.constant 0 : index
    %c0_150 = arith.constant 0 : index
    %c1_151 = arith.constant 1 : index
    %c0_152 = arith.constant 0 : index
    %155 = vector.load %arg10[%c0_149, %c0_150, %c1_151, %c0_152] : memref<1x1x2x128xf32, #tpu.memory_space<vmem>>, vector<1x1x1x128xf32>
    %156 = vector.shape_cast %155 : vector<1x1x1x128xf32> to vector<1x128xf32>
    %157 = vector.shape_cast %154 : vector<1x128xf32> to vector<1x1x1x128xf32>
    tpu.vector_store %arg10[%c0_149, %c0_150, %c1_151, %c0_152], %157 {strides = array<i32>} : memref<1x1x2x128xf32, #tpu.memory_space<vmem>>, vector<1x1x1x128xf32>,
    return
  }
  func.func @transform_0(%arg0: i32, %arg1: i32) -> (i32, i32, i32, i32, i32) {
    %c0_i32 = arith.constant 0 : i32
    %c0_i32_0 = arith.constant 0 : i32
    %c0_i32_1 = arith.constant 0 : i32
    %c0_i32_2 = arith.constant 0 : i32
    return %arg0, %arg1, %c0_i32, %c0_i32_0, %c0_i32_1 : i32, i32, i32, i32, i32
  }
  func.func @transform_1(%arg0: i32, %arg1: i32) -> (i32, i32, i32) {
    %c0_i32 = arith.constant 0 : i32
    %c0_i32_0 = arith.constant 0 : i32
    %c0_i32_1 = arith.constant 0 : i32
    %c0_i32_2 = arith.constant 0 : i32
    return %c0_i32, %c0_i32_0, %c0_i32_1 : i32, i32, i32
  }
  func.func @transform_2(%arg0: i32, %arg1: i32) -> (i32, i32) {
    %c0_i32 = arith.constant 0 : i32
    %c0_i32_0 = arith.constant 0 : i32
    %c0_i32_1 = arith.constant 0 : i32
    return %c0_i32, %c0_i32_0 : i32, i32
  }
  func.func @transform_3(%arg0: i32, %arg1: i32) -> (i32, i32, i32) {
    %c0_i32 = arith.constant 0 : i32
    %c0_i32_0 = arith.constant 0 : i32
    %c0_i32_1 = arith.constant 0 : i32
    %c0_i32_2 = arith.constant 0 : i32
    return %c0_i32, %c0_i32_0, %c0_i32_1 : i32, i32, i32
  }
  func.func @transform_4(%arg0: i32, %arg1: i32) -> (i32, i32) {
    %c0_i32 = arith.constant 0 : i32
    %c0_i32_0 = arith.constant 0 : i32
    %c0_i32_1 = arith.constant 0 : i32
    return %c0_i32, %c0_i32_0 : i32, i32
  }
  func.func @transform_5(%arg0: i32, %arg1: i32) -> (i32, i32) {
    %c0_i32 = arith.constant 0 : i32
    %c0_i32_0 = arith.constant 0 : i32
    %c0_i32_1 = arith.constant 0 : i32
    return %c0_i32, %c0_i32_0 : i32, i32
  }
  func.func @transform_6(%arg0: i32, %arg1: i32) -> (i32, i32) {
    %c0_i32 = arith.constant 0 : i32
    %c0_i32_0 = arith.constant 0 : i32
    %c0_i32_1 = arith.constant 0 : i32
    return %c0_i32, %c0_i32_0 : i32, i32
  }
  func.func @transform_7(%arg0: i32, %arg1: i32) -> (i32, i32, i32, i32) {
    %c0_i32 = arith.constant 0 : i32
    %c0_i32_0 = arith.constant 0 : i32
    %c0_i32_1 = arith.constant 0 : i32
    return %arg0, %arg1, %c0_i32, %c0_i32_0 : i32, i32, i32, i32
  }
  func.func @transform_8(%arg0: i32, %arg1: i32) -> (i32, i32, i32, i32) {
    %c0_i32 = arith.constant 0 : i32
    %c0_i32_0 = arith.constant 0 : i32
    %c0_i32_1 = arith.constant 0 : i32
    return %arg0, %arg1, %c0_i32, %c0_i32_0 : i32, i32, i32, i32
  }
}

</mosaic_0001>

<llo_original>
// kernel: tpu_custom_call.1
$region0: #{tpu_custom_call.1}
  #allocation0 [shape = 'u32[]', space=smem, size = 0x4, offset = 0x4, fixed_abs, tag = 'smem constant byte address 0x4 - core index']
  #allocation1 [shape = 'u32[144,128]{1,0:T(1,128)}', space=vmem, size = 0x12000, scoped, tag = 'internal scratch']
  #allocation2 [shape = 'bf16[104,128]{1,0:T(8,128)(2,1)}', space=vmem, size = 0x6800, scoped, tag = 'scratch operand']
  %s0 = inlined_call_operand.hbm [shape: bf16[2,1,4,120,128], index: 0, kind: input, shape index: {}]
  %s1 = inlined_call_operand.hbm [shape: bf16[9,128,128], index: 1, kind: input, shape index: {}]
  %s2 = inlined_call_operand.vmem [shape: f32[1,128], index: 2, kind: input, shape index: {}]
  %s3 = inlined_call_operand.hbm [shape: bf16[9,128,128], index: 3, kind: input, shape index: {}]
  %s4 = inlined_call_operand.vmem [shape: f32[1,128], index: 4, kind: input, shape index: {}]
  %s5 = inlined_call_operand.vmem [shape: f32[104,1], index: 5, kind: input, shape index: {}]
  %s6 = inlined_call_operand.vmem [shape: f32[80,1], index: 6, kind: input, shape index: {}]
  %s7 = inlined_call_operand.hbm [shape: f32[2,1,80,128], index: 7, kind: output, shape index: {0}]
  %s8 = inlined_call_operand.hbm [shape: f32[2,1,2,128], index: 8, kind: output, shape index: {1}]
  %9 = xla_tuple %s7, %s8
  %s10 = sld [smem:[#allocation0]]
  $region81: #{tpu_custom_call.1} parent=0
    _
  %s12 = ssub.s32 1, %s10
  %s13 = scalar_select 0, %s12, %s10
  $region1: #{tpu_custom_call.1} parent=0
    #allocation3 [shape = 'u8[245760]{0}', space=vmem, size = 0x3c000, scoped, tag = 'input window, operand 0']
    #allocation4 [shape = 's32[2]{0}', space=sflag, size = 0x8, scoped, tag = 'scoped memory for tpu_custom_call.1']
    #allocation5 [shape = 's32[2]{0}', space=sflag, size = 0x8, scoped, tag = 'scoped memory for tpu_custom_call.1']
    #allocation6 [shape = 'u8[294912]{0}', space=vmem, size = 0x48000, scoped, tag = 'input window, operand 1, single buffered']
    #allocation7 [shape = 's32[1]{0}', space=sflag, size = 0x4, scoped, tag = 'scoped memory for tpu_custom_call.1']
    #allocation8 [shape = 'u8[294912]{0}', space=vmem, size = 0x48000, scoped, tag = 'input window, operand 3, single buffered']
    #allocation9 [shape = 'u8[81920]{0}', space=vmem, size = 0x14000, scoped, tag = 'output window, operand 0']
    #allocation10 [shape = 'u8[2048]{0}', space=vmem, size = 0x800, scoped, tag = 'output window, operand 1']
    #allocation11 [shape = 's32[2]{0}', space=sflag, size = 0x8, scoped, tag = 'scoped memory for tpu_custom_call.1']
    %14 = vsyncpa [#allocation4], 0
    %s15 = scalar_lea.sflag [#allocation4], 1
    %16 = vsyncpa %s15, 0
    %17 = vsyncpa [#allocation7], 0
    %18 = vsyncpa [#allocation5], 0
    %s19 = scalar_lea.sflag [#allocation5], 1
    %20 = vsyncpa %s19, 0
    %21 = vsyncpa [#allocation11], 0
    %s22 = scalar_lea.sflag [#allocation11], 1
    %23 = vsyncpa %s22, 0
    loop: start=0, step=1, limit=4
    $region2: #{tpu_custom_call.1} parent=1 // loop_pre_header
      _
    $region3: #{tpu_custom_call.1} parent=1 // loop_header
      %s25 = sphi 0, %s29
      %p26 = scmp.ge.s32.totalorder %s25, 4
      %s32 = sphi 0, %s44
      %s33 = sphi 0, %s40
      %s34 = sphi 0, %s32
      %s35 = sphi 0, %s33
      %s36 = sphi 0, %s34
      %s37 = sphi 0, %s35
      %s49 = sphi 0, %s51
      %s52 = sphi 0, %s49
      %s53 = sphi 0, %s52
      %s69 = sphi 0, %s53
      %s73 = sphi 0, %s73
      %s75 = sphi 0, %s73
      %s76 = sphi 0, %s75
      %s90 = sphi 0, %s76
      %s94 = sphi 0, %s94
      %s96 = sphi 0, %s94
      %s97 = sphi 0, %s96
      %s111 = sphi 0, %s97
      %s115 = sphi 0, %s115
      %s117 = sphi 0, %s115
      %s118 = sphi 0, %s117
      %s132 = sphi 0, %s118
      %s136 = sphi 0, %s136
      %s138 = sphi 0, %s136
      %s139 = sphi 0, %s138
      %s153 = sphi 0, %s139
      %s157 = sphi 0, %s157
      %s159 = sphi 0, %s157
      %s160 = sphi 0, %s159
      %s174 = sphi 0, %s160
      %s178 = sphi 0, %s178
      %s180 = sphi 0, %s178
      %s181 = sphi 0, %s180
      %s195 = sphi 0, %s181
      %s203 = sphi 0, %s205
      %s206 = sphi 0, %s203
      %s207 = sphi 0, %s206
      %s223 = sphi 0, %s207
      %s231 = sphi 0, %s233
      %s234 = sphi 0, %s231
      %s235 = sphi 0, %s234
      %s251 = sphi 0, %s235
    $region4: #{tpu_custom_call.1} parent=1 // loop_header_branch
      %28 = sbr.rel (%p26) target = $region8
    $region5: #{tpu_custom_call.1} parent=1 // loop_body
      %s30 = ssub.s32 %s25, 1
      %s31 = ssub.s32 %s25, 2
      %s38 = sadd.s32 1, %s33
      %p39 = scmp.ge.s32.totalorder %s38, 1
      %s40 = scalar_select %p39, 0, %s38
      %s41 = sadd.s32 1, %s32
      %s42 = scalar_select %p39, %s41, %s32
      %p43 = scmp.ge.s32.totalorder %s42, 2
      %s44 = scalar_select %p43, 0, %s42
      %s45 = ssub.s32 %s32, %s44
      %s46 = ssub.s32 %s33, %s40
      %s47 = sor.u32 %s45, %s46
      %p48 = scmp.eq.s32.totalorder %s47, 0
      %s50 = sadd.s32 %s49, 1
      %s51 = scalar_select %p48, %s49, %s50
      %p54 = pneg %p48
      %p55 = scmp.eq.s32.totalorder %s25, 1
      %p56 = por %p54, %p55
      %p57 = scmp.ne.s32.totalorder %s49, %s52
      %p58 = scmp.eq.s32.totalorder %s25, 0
      %p59 = por %p57, %p58
      %p60 = scmp.ne.s32.totalorder %s49, %s52
      %p61 = scmp.eq.s32.totalorder %s30, 1
      %p62 = por %p60, %p61
      %p63 = scmp.ne.s32.totalorder %s52, %s53
      %p64 = scmp.eq.s32.totalorder %s30, 0
      %p65 = por %p63, %p64
      %p66 = scmp.ne.s32.totalorder %s52, %s53
      %p67 = scmp.eq.s32.totalorder %s31, 1
      %p68 = por %p66, %p67
      %p70 = scmp.ne.s32.totalorder %s53, %s69
      %p71 = scmp.eq.s32.totalorder %s31, 0
      %p72 = por %p70, %p71
      %s74 = sadd.s32 %s73, 1
      %p77 = scmp.eq.s32.totalorder %s25, 1
      %p78 = scmp.ne.s32.totalorder %s73, %s75
      %p79 = scmp.eq.s32.totalorder %s25, 0
      %p80 = por %p78, %p79
      %p81 = scmp.ne.s32.totalorder %s73, %s75
      %p82 = scmp.eq.s32.totalorder %s30, 1
      %p83 = por %p81, %p82
      %p84 = scmp.ne.s32.totalorder %s75, %s76
      %p85 = scmp.eq.s32.totalorder %s30, 0
      %p86 = por %p84, %p85
      %p87 = scmp.ne.s32.totalorder %s75, %s76
      %p88 = scmp.eq.s32.totalorder %s31, 1
      %p89 = por %p87, %p88
      %p91 = scmp.ne.s32.totalorder %s76, %s90
      %p92 = scmp.eq.s32.totalorder %s31, 0
      %p93 = por %p91, %p92
      %s95 = sadd.s32 %s94, 1
      %p98 = scmp.eq.s32.totalorder %s25, 1
      %p99 = scmp.ne.s32.totalorder %s94, %s96
      %p100 = scmp.eq.s32.totalorder %s25, 0
      %p101 = por %p99, %p100
      %p102 = scmp.ne.s32.totalorder %s94, %s96
      %p103 = scmp.eq.s32.totalorder %s30, 1
      %p104 = por %p102, %p103
      %p105 = scmp.ne.s32.totalorder %s96, %s97
      %p106 = scmp.eq.s32.totalorder %s30, 0
      %p107 = por %p105, %p106
      %p108 = scmp.ne.s32.totalorder %s96, %s97
      %p109 = scmp.eq.s32.totalorder %s31, 1
      %p110 = por %p108, %p109
      %p112 = scmp.ne.s32.totalorder %s97, %s111
      %p113 = scmp.eq.s32.totalorder %s31, 0
      %p114 = por %p112, %p113
      %s116 = sadd.s32 %s115, 1
      %p119 = scmp.eq.s32.totalorder %s25, 1
      %p120 = scmp.ne.s32.totalorder %s115, %s117
      %p121 = scmp.eq.s32.totalorder %s25, 0
      %p122 = por %p120, %p121
      %p123 = scmp.ne.s32.totalorder %s115, %s117
      %p124 = scmp.eq.s32.totalorder %s30, 1
      %p125 = por %p123, %p124
      %p126 = scmp.ne.s32.totalorder %s117, %s118
      %p127 = scmp.eq.s32.totalorder %s30, 0
      %p128 = por %p126, %p127
      %p129 = scmp.ne.s32.totalorder %s117, %s118
      %p130 = scmp.eq.s32.totalorder %s31, 1
      %p131 = por %p129, %p130
      %p133 = scmp.ne.s32.totalorder %s118, %s132
      %p134 = scmp.eq.s32.totalorder %s31, 0
      %p135 = por %p133, %p134
      %s137 = sadd.s32 %s136, 1
      %p140 = scmp.eq.s32.totalorder %s25, 1
      %p141 = scmp.ne.s32.totalorder %s136, %s138
      %p142 = scmp.eq.s32.totalorder %s25, 0
      %p143 = por %p141, %p142
      %p144 = scmp.ne.s32.totalorder %s136, %s138
      %p145 = scmp.eq.s32.totalorder %s30, 1
      %p146 = por %p144, %p145
      %p147 = scmp.ne.s32.totalorder %s138, %s139
      %p148 = scmp.eq.s32.totalorder %s30, 0
      %p149 = por %p147, %p148
      %p150 = scmp.ne.s32.totalorder %s138, %s139
      %p151 = scmp.eq.s32.totalorder %s31, 1
      %p152 = por %p150, %p151
      %p154 = scmp.ne.s32.totalorder %s139, %s153
      %p155 = scmp.eq.s32.totalorder %s31, 0
      %p156 = por %p154, %p155
      %s158 = sadd.s32 %s157, 1
      %p161 = scmp.eq.s32.totalorder %s25, 1
      %p162 = scmp.ne.s32.totalorder %s157, %s159
      %p163 = scmp.eq.s32.totalorder %s25, 0
      %p164 = por %p162, %p163
      %p165 = scmp.ne.s32.totalorder %s157, %s159
      %p166 = scmp.eq.s32.totalorder %s30, 1
      %p167 = por %p165, %p166
      %p168 = scmp.ne.s32.totalorder %s159, %s160
      %p169 = scmp.eq.s32.totalorder %s30, 0
      %p170 = por %p168, %p169
      %p171 = scmp.ne.s32.totalorder %s159, %s160
      %p172 = scmp.eq.s32.totalorder %s31, 1
      %p173 = por %p171, %p172
      %p175 = scmp.ne.s32.totalorder %s160, %s174
      %p176 = scmp.eq.s32.totalorder %s31, 0
      %p177 = por %p175, %p176
      %s179 = sadd.s32 %s178, 1
      %p182 = scmp.eq.s32.totalorder %s25, 1
      %p183 = scmp.ne.s32.totalorder %s178, %s180
      %p184 = scmp.eq.s32.totalorder %s25, 0
      %p185 = por %p183, %p184
      %p186 = scmp.ne.s32.totalorder %s178, %s180
      %p187 = scmp.eq.s32.totalorder %s30, 1
      %p188 = por %p186, %p187
      %p189 = scmp.ne.s32.totalorder %s180, %s181
      %p190 = scmp.eq.s32.totalorder %s30, 0
      %p191 = por %p189, %p190
      %p192 = scmp.ne.s32.totalorder %s180, %s181
      %p193 = scmp.eq.s32.totalorder %s31, 1
      %p194 = por %p192, %p193
      %p196 = scmp.ne.s32.totalorder %s181, %s195
      %p197 = scmp.eq.s32.totalorder %s31, 0
      %p198 = por %p196, %p197
      %s199 = ssub.s32 %s32, %s44
      %s200 = ssub.s32 %s33, %s40
      %s201 = sor.u32 %s199, %s200
      %p202 = scmp.eq.s32.totalorder %s201, 0
      %s204 = sadd.s32 %s203, 1
      %s205 = scalar_select %p202, %s203, %s204
      %p208 = pneg %p202
      %p209 = scmp.eq.s32.totalorder %s25, 1
      %p210 = por %p208, %p209
      %p211 = scmp.ne.s32.totalorder %s203, %s206
      %p212 = scmp.eq.s32.totalorder %s25, 0
      %p213 = por %p211, %p212
      %p214 = scmp.ne.s32.totalorder %s203, %s206
      %p215 = scmp.eq.s32.totalorder %s30, 1
      %p216 = por %p214, %p215
      %p217 = scmp.ne.s32.totalorder %s206, %s207
      %p218 = scmp.eq.s32.totalorder %s30, 0
      %p219 = por %p217, %p218
      %p220 = scmp.ne.s32.totalorder %s206, %s207
      %p221 = scmp.eq.s32.totalorder %s31, 1
      %p222 = por %p220, %p221
      %p224 = scmp.ne.s32.totalorder %s207, %s223
      %p225 = scmp.eq.s32.totalorder %s31, 0
      %p226 = por %p224, %p225
      %s227 = ssub.s32 %s32, %s44
      %s228 = ssub.s32 %s33, %s40
      %s229 = sor.u32 %s227, %s228
      %p230 = scmp.eq.s32.totalorder %s229, 0
      %s232 = sadd.s32 %s231, 1
      %s233 = scalar_select %p230, %s231, %s232
      %p236 = pneg %p230
      %p237 = scmp.eq.s32.totalorder %s25, 1
      %p238 = por %p236, %p237
      %p239 = scmp.ne.s32.totalorder %s231, %s234
      %p240 = scmp.eq.s32.totalorder %s25, 0
      %p241 = por %p239, %p240
      %p242 = scmp.ne.s32.totalorder %s231, %s234
      %p243 = scmp.eq.s32.totalorder %s30, 1
      %p244 = por %p242, %p243
      %p245 = scmp.ne.s32.totalorder %s234, %s235
      %p246 = scmp.eq.s32.totalorder %s30, 0
      %p247 = por %p245, %p246
      %p248 = scmp.ne.s32.totalorder %s234, %s235
      %p249 = scmp.eq.s32.totalorder %s31, 1
      %p250 = por %p248, %p249
      %p252 = scmp.ne.s32.totalorder %s235, %s251
      %p253 = scmp.eq.s32.totalorder %s31, 0
      %p254 = por %p252, %p253
      %p255 = scmp.le.s32.totalorder 1, %s25
      %p256 = scmp.lt.s32.totalorder %s25, 3
      %p257 = pnand %p255, %p256
      %p258 = pneg %p257
      // Predicated region
      $region9: #{tpu_custom_call.1} parent=5 // pred_check
        _
      $region10: #{tpu_custom_call.1} parent=5 // pred_check_branch
        %260 = sbr.rel (%p257) target = $region12
      $region11: #{tpu_custom_call.1} parent=5 // pred_region
        %s261 = ssub.s32 %s25, 1
        // Predicated region
        $region13: #{tpu_custom_call.1} parent=11 // pred_check
          %p262 = pneg %p86
        $region14: #{tpu_custom_call.1} parent=11 // pred_check_branch
          %264 = sbr.rel (%p262) target = $region16
        $region15: #{tpu_custom_call.1} parent=11 // pred_region
          %s266 = ssub.s32 9216, 9216
          %267 = vsyncadd [#allocation7], %s266
          %s268 = sshll.u32 [#allocation6], 4
          %s269 = int_to_ptr.vmem [resolvable:$true] %s268
          %274 = dma.hbm_to_vmem [thread:$0]  %s1, 9216, %s269, [#allocation7], 64, 64, 4
        $region16: #{tpu_custom_call.1} parent=11 // pred_fallthru
          _
        // Predicated region
        $region17: #{tpu_custom_call.1} parent=11 // pred_check
          %p275 = pneg %p107
        $region18: #{tpu_custom_call.1} parent=11 // pred_check_branch
          %277 = sbr.rel (%p275) target = $region20
        $region19: #{tpu_custom_call.1} parent=11 // pred_region
          _
        $region20: #{tpu_custom_call.1} parent=11 // pred_fallthru
          _
        // Predicated region
        $region21: #{tpu_custom_call.1} parent=11 // pred_check
          %p278 = pneg %p128
        $region22: #{tpu_custom_call.1} parent=11 // pred_check_branch
          %280 = sbr.rel (%p278) target = $region24
        $region23: #{tpu_custom_call.1} parent=11 // pred_region
          %s282 = ssub.s32 9216, 9216
          %283 = vsyncadd [#allocation7], %s282
          %s284 = sshll.u32 [#allocation8], 4
          %s285 = int_to_ptr.vmem [resolvable:$true] %s284
          %290 = dma.hbm_to_vmem [thread:$0]  %s3, 9216, %s285, [#allocation7], 64, 64, 4
        $region24: #{tpu_custom_call.1} parent=11 // pred_fallthru
          _
        // Predicated region
        $region25: #{tpu_custom_call.1} parent=11 // pred_check
          %p291 = pneg %p149
        $region26: #{tpu_custom_call.1} parent=11 // pred_check_branch
          %293 = sbr.rel (%p291) target = $region28
        $region27: #{tpu_custom_call.1} parent=11 // pred_region
          _
        $region28: #{tpu_custom_call.1} parent=11 // pred_fallthru
          _
        // Predicated region
        $region29: #{tpu_custom_call.1} parent=11 // pred_check
          %p294 = pneg %p170
        $region30: #{tpu_custom_call.1} parent=11 // pred_check_branch
          %296 = sbr.rel (%p294) target = $region32
        $region31: #{tpu_custom_call.1} parent=11 // pred_region
          _
        $region32: #{tpu_custom_call.1} parent=11 // pred_fallthru
          _
        // Predicated region
        $region33: #{tpu_custom_call.1} parent=11 // pred_check
          %p297 = pneg %p191
        $region34: #{tpu_custom_call.1} parent=11 // pred_check_branch
          %299 = sbr.rel (%p297) target = $region36
        $region35: #{tpu_custom_call.1} parent=11 // pred_region
          _
        $region36: #{tpu_custom_call.1} parent=11 // pred_fallthru
          _
      $region12: #{tpu_custom_call.1} parent=5 // pred_fallthru
        _
      %p300 = scmp.lt.s32.totalorder %s25, 2
      // Predicated region
      $region37: #{tpu_custom_call.1} parent=5 // pred_check
        %p301 = pneg %p300
      $region38: #{tpu_custom_call.1} parent=5 // pred_check_branch
        %303 = sbr.rel (%p301) target = $region40
      $region39: #{tpu_custom_call.1} parent=5 // pred_region
        // Predicated region
        $region41: #{tpu_custom_call.1} parent=39 // pred_check
          %p304 = pneg %p59
        $region42: #{tpu_custom_call.1} parent=39 // pred_check_branch
          %306 = sbr.rel (%p304) target = $region44
        $region43: #{tpu_custom_call.1} parent=39 // pred_region
          %s307 = sand.u32 %s49, 1
          %s308 = scalar_lea.sflag [#allocation4], %s307
          %s309 = sand.u32 %s49, 1
          %s310 = smul.addr %s309, 240
          %s311 = scalar_lea.vmem [#allocation3], %s310
          %s313 = ssub.s32 3840, 3840
          %314 = vsyncadd %s308, %s313
          %s315 = smul.addr %s33, 60
          %s316 = smul.addr %s32, 60
          %s317 = sadd.s32 %s315, %s316
          %s318 = smul.addr %s317, 64
          %s319 = scalar_lea.hbm %s0, %s318
          %s320 = sshll.u32 %s311, 4
          %s321 = int_to_ptr.vmem [resolvable:$true] %s320
          %326 = dma.hbm_to_vmem [thread:$0]  %s319, 3840, %s321, %s308, 64, 64, 4
        $region44: #{tpu_custom_call.1} parent=39 // pred_fallthru
          _
      $region40: #{tpu_custom_call.1} parent=5 // pred_fallthru
        _
      %p327 = scmp.le.s32.totalorder 1, %s25
      %p328 = scmp.lt.s32.totalorder %s25, 3
      %p329 = pnand %p327, %p328
      %p330 = pneg %p329
      // Predicated region
      $region45: #{tpu_custom_call.1} parent=5 // pred_check
        _
      $region46: #{tpu_custom_call.1} parent=5 // pred_check_branch
        %332 = sbr.rel (%p329) target = $region48
      $region47: #{tpu_custom_call.1} parent=5 // pred_region
        %s333 = ssub.s32 %s25, 1
        %s334 = sand.u32 %s52, 1
        %s335 = scalar_lea.sflag [#allocation4], %s334
        %s336 = sand.u32 %s52, 1
        %s337 = smul.addr %s336, 240
        %s338 = scalar_lea.vmem [#allocation3], %s337
        // Predicated region
        $region49: #{tpu_custom_call.1} parent=47 // pred_check
          %p339 = pneg %p65
        $region50: #{tpu_custom_call.1} parent=47 // pred_check_branch
          %341 = sbr.rel (%p339) target = $region52
        $region51: #{tpu_custom_call.1} parent=47 // pred_region
          %342 = dma.done %s335, 3840
        $region52: #{tpu_custom_call.1} parent=47 // pred_fallthru
          _
        // Predicated region
        $region53: #{tpu_custom_call.1} parent=47 // pred_check
          %p343 = pneg %p86
        $region54: #{tpu_custom_call.1} parent=47 // pred_check_branch
          %345 = sbr.rel (%p343) target = $region56
        $region55: #{tpu_custom_call.1} parent=47 // pred_region
          %346 = dma.done [#allocation7], 9216
        $region56: #{tpu_custom_call.1} parent=47 // pred_fallthru
          _
        // Predicated region
        $region57: #{tpu_custom_call.1} parent=47 // pred_check
          %p347 = pneg %p128
        $region58: #{tpu_custom_call.1} parent=47 // pred_check_branch
          %349 = sbr.rel (%p347) target = $region60
        $region59: #{tpu_custom_call.1} parent=47 // pred_region
          %350 = dma.done [#allocation7], 9216
        $region60: #{tpu_custom_call.1} parent=47 // pred_fallthru
          _
        %s351 = sand.u32 %s52, 1
        %s352 = scalar_lea.sflag [#allocation4], %s351
        %s353 = sand.u32 %s52, 1
        %s354 = smul.addr %s353, 240
        %s355 = scalar_lea.vmem [#allocation3], %s354
        %p356 = pneg %p65
        %p357 = pneg %p62
        %p358 = pneg %p86
        %p359 = pneg %p83
        %p360 = pneg %p107
        %p361 = pneg %p104
        %p362 = pneg %p128
        %p363 = pneg %p125
        %p364 = pneg %p149
        %p365 = pneg %p146
        %p366 = pneg %p170
        %p367 = pneg %p167
        %p368 = pneg %p191
        %p369 = pneg %p188
        %p370 = pneg %p219
        %p371 = pneg %p216
        %s372 = sand.u32 %s206, 1
        %s373 = scalar_lea.sflag [#allocation5], %s372
        %s374 = sand.u32 %s206, 1
        %s375 = smul.addr %s374, 80
        %s376 = scalar_lea.vmem [#allocation9], %s375
        %p377 = pneg %p247
        %p378 = pneg %p244
        %s379 = sand.u32 %s234, 1
        %s380 = scalar_lea.sflag [#allocation11], %s379
        %s381 = sand.u32 %s234, 1
        %s382 = smul.addr %s381, 2
        %s383 = scalar_lea.vmem [#allocation10], %s382
        %s385 = smul.u32 %s35, 8
        %v386 = vld [vmem:[%s338] sm:$0xf]
        %v387 = vld [vmem:[%s338 + $0x4] sm:$0xf]
        %v388 = vld [vmem:[%s338 + $0x8] sm:$0xf]
        %v389 = vld [vmem:[%s338 + $0xc] sm:$0xf]
        %v390 = vld [vmem:[%s338 + $0x10] sm:$0xf]
        %v391 = vld [vmem:[%s338 + $0x14] sm:$0xf]
        %v392 = vld [vmem:[%s338 + $0x18] sm:$0xf]
        %v393 = vld [vmem:[%s338 + $0x1c] sm:$0xf]
        %v394 = vld [vmem:[%s338 + $0x20] sm:$0xf]
        %v395 = vld [vmem:[%s338 + $0x24] sm:$0xf]
        %v396 = vld [vmem:[%s338 + $0x28] sm:$0xf]
        %v397 = vld [vmem:[%s338 + $0x2c] sm:$0xf]
        %v398 = vld [vmem:[%s338 + $0x30] sm:$0xf]
        %v399 = vld [vmem:[#allocation6] sm:$0xf]
        %v400 = vld [vmem:[#allocation6 + $0x4] sm:$0xf]
        %v401 = vld [vmem:[#allocation6 + $0x8] sm:$0xf]
        %v402 = vld [vmem:[#allocation6 + $0xc] sm:$0xf]
        %v403 = vld [vmem:[#allocation6 + $0x10] sm:$0xf]
        %v404 = vld [vmem:[#allocation6 + $0x14] sm:$0xf]
        %v405 = vld [vmem:[#allocation6 + $0x18] sm:$0xf]
        %v406 = vld [vmem:[#allocation6 + $0x1c] sm:$0xf]
        %v407 = vld [vmem:[#allocation6 + $0x20] sm:$0xf]
        %v408 = vld [vmem:[#allocation6 + $0x24] sm:$0xf]
        %v409 = vld [vmem:[#allocation6 + $0x28] sm:$0xf]
        %v410 = vld [vmem:[#allocation6 + $0x2c] sm:$0xf]
        %v411 = vld [vmem:[#allocation6 + $0x30] sm:$0xf]
        %v412 = vld [vmem:[#allocation6 + $0x34] sm:$0xf]
        %v413 = vld [vmem:[#allocation6 + $0x38] sm:$0xf]
        %v414 = vld [vmem:[#allocation6 + $0x3c] sm:$0xf]
        %s415 = scalar_lea.vmem %s338, 60 [#allocation3]
        %v416 = vld [vmem:[%s415] sm:$0xf]
        %v417 = vld [vmem:[%s415 + $0x4] sm:$0xf]
        %v418 = vld [vmem:[%s415 + $0x8] sm:$0xf]
        %v419 = vld [vmem:[%s415 + $0xc] sm:$0xf]
        %v420 = vld [vmem:[%s415 + $0x10] sm:$0xf]
        %v421 = vld [vmem:[%s415 + $0x14] sm:$0xf]
        %v422 = vld [vmem:[%s415 + $0x18] sm:$0xf]
        %v423 = vld [vmem:[%s415 + $0x1c] sm:$0xf]
        %v424 = vld [vmem:[%s415 + $0x20] sm:$0xf]
        %v425 = vld [vmem:[%s415 + $0x24] sm:$0xf]
        %v426 = vld [vmem:[%s415 + $0x28] sm:$0xf]
        %v427 = vld [vmem:[%s415 + $0x2c] sm:$0xf]
        %v428 = vld [vmem:[%s415 + $0x30] sm:$0xf]
        %s429 = scalar_lea.vmem [#allocation6], 64
        %v430 = vld [vmem:[%s429] sm:$0xf]
        %v431 = vld [vmem:[%s429 + $0x4] sm:$0xf]
        %v432 = vld [vmem:[%s429 + $0x8] sm:$0xf]
        %v433 = vld [vmem:[%s429 + $0xc] sm:$0xf]
        %v434 = vld [vmem:[%s429 + $0x10] sm:$0xf]
        %v435 = vld [vmem:[%s429 + $0x14] sm:$0xf]
        %v436 = vld [vmem:[%s429 + $0x18] sm:$0xf]
        %v437 = vld [vmem:[%s429 + $0x1c] sm:$0xf]
        %v438 = vld [vmem:[%s429 + $0x20] sm:$0xf]
        %v439 = vld [vmem:[%s429 + $0x24] sm:$0xf]
        %v440 = vld [vmem:[%s429 + $0x28] sm:$0xf]
        %v441 = vld [vmem:[%s429 + $0x2c] sm:$0xf]
        %v442 = vld [vmem:[%s429 + $0x30] sm:$0xf]
        %v443 = vld [vmem:[%s429 + $0x34] sm:$0xf]
        %v444 = vld [vmem:[%s429 + $0x38] sm:$0xf]
        %v445 = vld [vmem:[%s429 + $0x3c] sm:$0xf]
        %v459 = vunpack.c.l.b16 %v416
        %v460 = vunpack.c.l.b16 %v417
        %v461 = vunpack.c.l.b16 %v418
        %v462 = vunpack.c.l.b16 %v419
        %v463 = vunpack.c.l.b16 %v420
        %v464 = vunpack.c.l.b16 %v421
        %v465 = vunpack.c.l.b16 %v422
        %v466 = vunpack.c.l.b16 %v423
        %v467 = vunpack.c.l.b16 %v424
        %v468 = vunpack.c.l.b16 %v425
        %v469 = vunpack.c.l.b16 %v426
        %v470 = vunpack.c.l.b16 %v427
        %v471 = vunpack.c.l.b16 %v428
        %v472 = vpack.c.b16 %v460, %v459
        %v473 = vpack.c.b16 %v462, %v461
        %v474 = vpack.c.b16 %v464, %v463
        %v475 = vpack.c.b16 %v466, %v465
        %v476 = vpack.c.b16 %v468, %v467
        %v477 = vpack.c.b16 %v470, %v469
        %v478 = vpack.c.b16 %v471, %v471
        %v502 = vunpack.c.l.b16 %v430
        %v503 = vunpack.c.l.b16 %v431
        %v504 = vunpack.c.l.b16 %v432
        %v505 = vunpack.c.l.b16 %v433
        %v506 = vunpack.c.l.b16 %v434
        %v507 = vunpack.c.l.b16 %v435
        %v508 = vunpack.c.l.b16 %v436
        %v509 = vunpack.c.l.b16 %v437
        %v510 = vunpack.c.l.b16 %v438
        %v511 = vunpack.c.l.b16 %v439
        %v512 = vunpack.c.l.b16 %v440
        %v513 = vunpack.c.l.b16 %v441
        %v514 = vunpack.c.l.b16 %v442
        %v515 = vunpack.c.l.b16 %v443
        %v516 = vunpack.c.l.b16 %v444
        %v517 = vunpack.c.l.b16 %v445
        %v518 = vpack.c.b16 %v503, %v502
        %v519 = vpack.c.b16 %v505, %v504
        %v520 = vpack.c.b16 %v507, %v506
        %v521 = vpack.c.b16 %v509, %v508
        %v522 = vpack.c.b16 %v511, %v510
        %v523 = vpack.c.b16 %v513, %v512
        %v524 = vpack.c.b16 %v515, %v514
        %v525 = vpack.c.b16 %v517, %v516
        %534 = vmatprep.subr.bf16.mxu0 0
        %535 = vmatpush1.bf16.msra.mxu0 %v525
        %536 = vmatprep.subr.bf16.mxu0 0
        %537 = vmatpush1.bf16.msra.mxu0 %v524
        %538 = vmatprep.subr.bf16.mxu0 0
        %539 = vmatpush1.bf16.msra.mxu0 %v523
        %540 = vmatprep.subr.bf16.mxu0 0
        %541 = vmatpush1.bf16.msra.mxu0 %v522
        %542 = vmatprep.subr.bf16.mxu0 0
        %543 = vmatpush1.bf16.msra.mxu0 %v521
        %544 = vmatprep.subr.bf16.mxu0 0
        %545 = vmatpush1.bf16.msra.mxu0 %v520
        %546 = vmatprep.subr.bf16.mxu0 0
        %547 = vmatpush1.bf16.msra.mxu0 %v519
        %548 = vmatprep.subr.bf16.mxu0 0
        %549 = vmatpush1.bf16.msra.mxu0 %v518
        %550 = vmatprep.subr.bf16.mxu0 0
        %551 = vmatpush2.bf16.msra.mxu0 0
        %552 = vmatprep.subr.bf16.mxu0 0
        %553 = vmatpush2.bf16.msra.mxu0 0
        %554 = vmatprep.subr.bf16.mxu0 0
        %555 = vmatpush2.bf16.msra.mxu0 0
        %556 = vmatprep.subr.bf16.mxu0 0
        %557 = vmatpush2.bf16.msra.mxu0 0
        %558 = vmatprep.subr.bf16.mxu0 0
        %559 = vmatpush2.bf16.msra.mxu0 0
        %560 = vmatprep.subr.bf16.mxu0 0
        %561 = vmatpush2.bf16.msra.mxu0 0
        %562 = vmatprep.subr.bf16.mxu0 0
        %563 = vmatpush2.bf16.msra.mxu0 0
        %564 = vmatprep.subr.bf16.mxu0 0
        %565 = vmatpush2.bf16.msra.mxu0 0
        %566 = vmatprep.mubr.bf16.mxu0 0
        %567 = vmatmul.mubr.bf16.gmra.mxu0 %v472
        %v568 = vpop.f32.mrf.mxu0
        %v569 = vadd.f32 0.0, %v568
        %v570 = vpop.f32.mrf.mxu0
        %v571 = vpop.f32.mrf.mxu0
        %v572 = vadd.f32 0.0, %v571
        %v573 = vpop.f32.mrf.mxu0
        %574 = vmatprep.mubr.bf16.mxu0 0
        %575 = vmatmul.mubr.bf16.gmra.mxu0 %v473
        %v576 = vpop.f32.mrf.mxu0
        %v577 = vadd.f32 0.0, %v576
        %v578 = vpop.f32.mrf.mxu0
        %v579 = vpop.f32.mrf.mxu0
        %v580 = vadd.f32 0.0, %v579
        %v581 = vpop.f32.mrf.mxu0
        %582 = vmatprep.mubr.bf16.mxu0 0
        %583 = vmatmul.mubr.bf16.gmra.mxu0 %v474
        %v584 = vpop.f32.mrf.mxu0
        %v585 = vadd.f32 0.0, %v584
        %v586 = vpop.f32.mrf.mxu0
        %v587 = vpop.f32.mrf.mxu0
        %v588 = vadd.f32 0.0, %v587
        %v589 = vpop.f32.mrf.mxu0
        %590 = vmatprep.mubr.bf16.mxu0 0
        %591 = vmatmul.mubr.bf16.gmra.mxu0 %v475
        %v592 = vpop.f32.mrf.mxu0
        %v593 = vadd.f32 0.0, %v592
        %v594 = vpop.f32.mrf.mxu0
        %v595 = vpop.f32.mrf.mxu0
        %v596 = vadd.f32 0.0, %v595
        %v597 = vpop.f32.mrf.mxu0
        %598 = vmatprep.mubr.bf16.mxu0 0
        %599 = vmatmul.mubr.bf16.gmra.mxu0 %v476
        %v600 = vpop.f32.mrf.mxu0
        %v601 = vadd.f32 0.0, %v600
        %v602 = vpop.f32.mrf.mxu0
        %v603 = vpop.f32.mrf.mxu0
        %v604 = vadd.f32 0.0, %v603
        %v605 = vpop.f32.mrf.mxu0
        %606 = vmatprep.mubr.bf16.mxu0 0
        %607 = vmatmul.mubr.bf16.gmra.mxu0 %v477
        %v608 = vpop.f32.mrf.mxu0
        %v609 = vadd.f32 0.0, %v608
        %v610 = vpop.f32.mrf.mxu0
        %v611 = vpop.f32.mrf.mxu0
        %v612 = vadd.f32 0.0, %v611
        %v613 = vpop.f32.mrf.mxu0
        %614 = vmatprep.mubr.bf16.mxu0 0
        %615 = vmatmul.mubr.bf16.gmra.mxu0 %v478
        %v616 = vpop.f32.mrf.mxu0
        %v617 = vadd.f32 0.0, %v616
        %v618 = vpop.f32.mrf.mxu0
        %v619 = vpop.f32.mrf.mxu0
        %v620 = vpop.f32.mrf.mxu0
        %621 = vdwg.mxu0
        %v635 = vunpack.c.l.b16 %v386
        %v636 = vunpack.c.l.b16 %v387
        %v637 = vunpack.c.l.b16 %v388
        %v638 = vunpack.c.l.b16 %v389
        %v639 = vunpack.c.l.b16 %v390
        %v640 = vunpack.c.l.b16 %v391
        %v641 = vunpack.c.l.b16 %v392
        %v642 = vunpack.c.l.b16 %v393
        %v643 = vunpack.c.l.b16 %v394
        %v644 = vunpack.c.l.b16 %v395
        %v645 = vunpack.c.l.b16 %v396
        %v646 = vunpack.c.l.b16 %v397
        %v647 = vunpack.c.l.b16 %v398
        %v648 = vpack.c.b16 %v636, %v635
        %v649 = vpack.c.b16 %v638, %v637
        %v650 = vpack.c.b16 %v640, %v639
        %v651 = vpack.c.b16 %v642, %v641
        %v652 = vpack.c.b16 %v644, %v643
        %v653 = vpack.c.b16 %v646, %v645
        %v654 = vpack.c.b16 %v647, %v647
        %v678 = vunpack.c.l.b16 %v399
        %v679 = vunpack.c.l.b16 %v400
        %v680 = vunpack.c.l.b16 %v401
        %v681 = vunpack.c.l.b16 %v402
        %v682 = vunpack.c.l.b16 %v403
        %v683 = vunpack.c.l.b16 %v404
        %v684 = vunpack.c.l.b16 %v405
        %v685 = vunpack.c.l.b16 %v406
        %v686 = vunpack.c.l.b16 %v407
        %v687 = vunpack.c.l.b16 %v408
        %v688 = vunpack.c.l.b16 %v409
        %v689 = vunpack.c.l.b16 %v410
        %v690 = vunpack.c.l.b16 %v411
        %v691 = vunpack.c.l.b16 %v412
        %v692 = vunpack.c.l.b16 %v413
        %v693 = vunpack.c.l.b16 %v414
        %v694 = vpack.c.b16 %v679, %v678
        %v695 = vpack.c.b16 %v681, %v680
        %v696 = vpack.c.b16 %v683, %v682
        %v697 = vpack.c.b16 %v685, %v684
        %v698 = vpack.c.b16 %v687, %v686
        %v699 = vpack.c.b16 %v689, %v688
        %v700 = vpack.c.b16 %v691, %v690
        %v701 = vpack.c.b16 %v693, %v692
        %710 = vmatprep.subr.bf16.mxu0 0
        %711 = vmatpush1.bf16.msra.mxu0 %v701
        %712 = vmatprep.subr.bf16.mxu0 0
        %713 = vmatpush1.bf16.msra.mxu0 %v700
        %714 = vmatprep.subr.bf16.mxu0 0
        %715 = vmatpush1.bf16.msra.mxu0 %v699
        %716 = vmatprep.subr.bf16.mxu0 0
        %717 = vmatpush1.bf16.msra.mxu0 %v698
        %718 = vmatprep.subr.bf16.mxu0 0
        %719 = vmatpush1.bf16.msra.mxu0 %v697
        %720 = vmatprep.subr.bf16.mxu0 0
        %721 = vmatpush1.bf16.msra.mxu0 %v696
        %722 = vmatprep.subr.bf16.mxu0 0
        %723 = vmatpush1.bf16.msra.mxu0 %v695
        %724 = vmatprep.subr.bf16.mxu0 0
        %725 = vmatpush1.bf16.msra.mxu0 %v694
        %726 = vmatprep.subr.bf16.mxu0 0
        %727 = vmatpush2.bf16.msra.mxu0 0
        %728 = vmatprep.subr.bf16.mxu0 0
        %729 = vmatpush2.bf16.msra.mxu0 0
        %730 = vmatprep.subr.bf16.mxu0 0
        %731 = vmatpush2.bf16.msra.mxu0 0
        %732 = vmatprep.subr.bf16.mxu0 0
        %733 = vmatpush2.bf16.msra.mxu0 0
        %734 = vmatprep.subr.bf16.mxu0 0
        %735 = vmatpush2.bf16.msra.mxu0 0
        %736 = vmatprep.subr.bf16.mxu0 0
        %737 = vmatpush2.bf16.msra.mxu0 0
        %738 = vmatprep.subr.bf16.mxu0 0
        %739 = vmatpush2.bf16.msra.mxu0 0
        %740 = vmatprep.subr.bf16.mxu0 0
        %741 = vmatpush2.bf16.msra.mxu0 0
        %742 = vmatprep.mubr.bf16.mxu0 0
        %743 = vmatmul.mubr.bf16.gmra.mxu0 %v648
        %v744 = vpop.f32.mrf.mxu0
        %v745 = vadd.f32 %v569, %v744
        %v746 = vpop.f32.mrf.mxu0
        %v747 = vpop.f32.mrf.mxu0
        %v748 = vadd.f32 %v572, %v747
        %v749 = vpop.f32.mrf.mxu0
        %750 = vmatprep.mubr.bf16.mxu0 0
        %751 = vmatmul.mubr.bf16.gmra.mxu0 %v649
        %v752 = vpop.f32.mrf.mxu0
        %v753 = vadd.f32 %v577, %v752
        %v754 = vpop.f32.mrf.mxu0
        %v755 = vpop.f32.mrf.mxu0
        %v756 = vadd.f32 %v580, %v755
        %v757 = vpop.f32.mrf.mxu0
        %758 = vmatprep.mubr.bf16.mxu0 0
        %759 = vmatmul.mubr.bf16.gmra.mxu0 %v650
        %v760 = vpop.f32.mrf.mxu0
        %v761 = vadd.f32 %v585, %v760
        %v762 = vpop.f32.mrf.mxu0
        %v763 = vpop.f32.mrf.mxu0
        %v764 = vadd.f32 %v588, %v763
        %v765 = vpop.f32.mrf.mxu0
        %766 = vmatprep.mubr.bf16.mxu0 0
        %767 = vmatmul.mubr.bf16.gmra.mxu0 %v651
        %v768 = vpop.f32.mrf.mxu0
        %v769 = vadd.f32 %v593, %v768
        %v770 = vpop.f32.mrf.mxu0
        %v771 = vpop.f32.mrf.mxu0
        %v772 = vadd.f32 %v596, %v771
        %v773 = vpop.f32.mrf.mxu0
        %774 = vmatprep.mubr.bf16.mxu0 0
        %775 = vmatmul.mubr.bf16.gmra.mxu0 %v652
        %v776 = vpop.f32.mrf.mxu0
        %v777 = vadd.f32 %v601, %v776
        %v778 = vpop.f32.mrf.mxu0
        %v779 = vpop.f32.mrf.mxu0
        %v780 = vadd.f32 %v604, %v779
        %v781 = vpop.f32.mrf.mxu0
        %782 = vmatprep.mubr.bf16.mxu0 0
        %783 = vmatmul.mubr.bf16.gmra.mxu0 %v653
        %v784 = vpop.f32.mrf.mxu0
        %v785 = vadd.f32 %v609, %v784
        %v786 = vpop.f32.mrf.mxu0
        %v787 = vpop.f32.mrf.mxu0
        %v788 = vadd.f32 %v612, %v787
        %v789 = vpop.f32.mrf.mxu0
        %790 = vmatprep.mubr.bf16.mxu0 0
        %791 = vmatmul.mubr.bf16.gmra.mxu0 %v654
        %v792 = vpop.f32.mrf.mxu0
        %v793 = vadd.f32 %v617, %v792
        %v794 = vpop.f32.mrf.mxu0
        %v795 = vpop.f32.mrf.mxu0
        %v796 = vpop.f32.mrf.mxu0
        %797 = vdwg.mxu0
        %v798 = vld [vmem:[%s338] sm:$0xf]
        %v799 = vld [vmem:[%s338 + $0x4] sm:$0xf]
        %v800 = vld [vmem:[%s338 + $0x8] sm:$0xf]
        %v801 = vld [vmem:[%s338 + $0xc] sm:$0xf]
        %v802 = vld [vmem:[%s338 + $0x10] sm:$0xf]
        %v803 = vld [vmem:[%s338 + $0x14] sm:$0xf]
        %v804 = vld [vmem:[%s338 + $0x18] sm:$0xf]
        %v805 = vld [vmem:[%s338 + $0x1c] sm:$0xf]
        %v806 = vld [vmem:[%s338 + $0x20] sm:$0xf]
        %v807 = vld [vmem:[%s338 + $0x24] sm:$0xf]
        %v808 = vld [vmem:[%s338 + $0x28] sm:$0xf]
        %v809 = vld [vmem:[%s338 + $0x2c] sm:$0xf]
        %v810 = vld [vmem:[%s338 + $0x30] sm:$0xf]
        %v811 = vld [vmem:[%s338 + $0x34] sm:$0x1]
        %s812 = scalar_lea.vmem [#allocation6], 128
        %v813 = vld [vmem:[%s812] sm:$0xf]
        %v814 = vld [vmem:[%s812 + $0x4] sm:$0xf]
        %v815 = vld [vmem:[%s812 + $0x8] sm:$0xf]
        %v816 = vld [vmem:[%s812 + $0xc] sm:$0xf]
        %v817 = vld [vmem:[%s812 + $0x10] sm:$0xf]
        %v818 = vld [vmem:[%s812 + $0x14] sm:$0xf]
        %v819 = vld [vmem:[%s812 + $0x18] sm:$0xf]
        %v820 = vld [vmem:[%s812 + $0x1c] sm:$0xf]
        %v821 = vld [vmem:[%s812 + $0x20] sm:$0xf]
        %v822 = vld [vmem:[%s812 + $0x24] sm:$0xf]
        %v823 = vld [vmem:[%s812 + $0x28] sm:$0xf]
        %v824 = vld [vmem:[%s812 + $0x2c] sm:$0xf]
        %v825 = vld [vmem:[%s812 + $0x30] sm:$0xf]
        %v826 = vld [vmem:[%s812 + $0x34] sm:$0xf]
        %v827 = vld [vmem:[%s812 + $0x38] sm:$0xf]
        %v828 = vld [vmem:[%s812 + $0x3c] sm:$0xf]
        %v843 = vunpack.c.l.b16 %v798
        %v844 = vunpack.c.l.b16 %v799
        %v845 = vunpack.c.l.b16 %v800
        %v846 = vunpack.c.l.b16 %v801
        %v847 = vunpack.c.l.b16 %v802
        %v848 = vunpack.c.l.b16 %v803
        %v849 = vunpack.c.l.b16 %v804
        %v850 = vunpack.c.l.b16 %v805
        %v851 = vunpack.c.l.b16 %v806
        %v852 = vunpack.c.l.b16 %v807
        %v853 = vunpack.c.l.b16 %v808
        %v854 = vunpack.c.l.b16 %v809
        %v855 = vunpack.c.l.b16 %v810
        %v856 = vunpack.c.l.b16 %v811
        %v857 = vpack.c.b16 %v844, %v843
        %v858 = vpack.c.b16 %v846, %v845
        %v859 = vpack.c.b16 %v848, %v847
        %v860 = vpack.c.b16 %v850, %v849
        %v861 = vpack.c.b16 %v852, %v851
        %v862 = vpack.c.b16 %v854, %v853
        %v863 = vpack.c.b16 %v856, %v855
        %vm864 = vsmask.f32 7424
        %v866 = vshrl.u32 %v857, 16
        %v868 = vshll.u32 %v857, 16
        %v870 = vrot.slane %v868, 1
        %v871 = vor.u32 %v866, %v870
        %v873 = vshll.u32 %v858, 16
        %v875 = vrot.slane %v873, 1
        %v876 = vsel %vm864, %v871, %v875
        %v877 = vshrl.u32 %v858, 16
        %v879 = vor.u32 %v877, %v875
        %v881 = vshll.u32 %v859, 16
        %v883 = vrot.slane %v881, 1
        %v884 = vsel %vm864, %v879, %v883
        %v885 = vshrl.u32 %v859, 16
        %v887 = vor.u32 %v885, %v883
        %v889 = vshll.u32 %v860, 16
        %v891 = vrot.slane %v889, 1
        %v892 = vsel %vm864, %v887, %v891
        %v893 = vshrl.u32 %v860, 16
        %v895 = vor.u32 %v893, %v891
        %v897 = vshll.u32 %v861, 16
        %v899 = vrot.slane %v897, 1
        %v900 = vsel %vm864, %v895, %v899
        %v901 = vshrl.u32 %v861, 16
        %v903 = vor.u32 %v901, %v899
        %v905 = vshll.u32 %v862, 16
        %v907 = vrot.slane %v905, 1
        %v908 = vsel %vm864, %v903, %v907
        %v909 = vshrl.u32 %v862, 16
        %v911 = vor.u32 %v909, %v907
        %v913 = vshll.u32 %v863, 16
        %v915 = vrot.slane %v913, 1
        %v916 = vsel %vm864, %v911, %v915
        %v917 = vshrl.u32 %v863, 16
        %v919 = vor.u32 %v917, %v915
        %v943 = vunpack.c.l.b16 %v813
        %v944 = vunpack.c.l.b16 %v814
        %v945 = vunpack.c.l.b16 %v815
        %v946 = vunpack.c.l.b16 %v816
        %v947 = vunpack.c.l.b16 %v817
        %v948 = vunpack.c.l.b16 %v818
        %v949 = vunpack.c.l.b16 %v819
        %v950 = vunpack.c.l.b16 %v820
        %v951 = vunpack.c.l.b16 %v821
        %v952 = vunpack.c.l.b16 %v822
        %v953 = vunpack.c.l.b16 %v823
        %v954 = vunpack.c.l.b16 %v824
        %v955 = vunpack.c.l.b16 %v825
        %v956 = vunpack.c.l.b16 %v826
        %v957 = vunpack.c.l.b16 %v827
        %v958 = vunpack.c.l.b16 %v828
        %v959 = vpack.c.b16 %v944, %v943
        %v960 = vpack.c.b16 %v946, %v945
        %v961 = vpack.c.b16 %v948, %v947
        %v962 = vpack.c.b16 %v950, %v949
        %v963 = vpack.c.b16 %v952, %v951
        %v964 = vpack.c.b16 %v954, %v953
        %v965 = vpack.c.b16 %v956, %v955
        %v966 = vpack.c.b16 %v958, %v957
        %975 = vmatprep.subr.bf16.mxu0 0
        %976 = vmatpush1.bf16.msra.mxu0 %v966
        %977 = vmatprep.subr.bf16.mxu0 0
        %978 = vmatpush1.bf16.msra.mxu0 %v965
        %979 = vmatprep.subr.bf16.mxu0 0
        %980 = vmatpush1.bf16.msra.mxu0 %v964
        %981 = vmatprep.subr.bf16.mxu0 0
        %982 = vmatpush1.bf16.msra.mxu0 %v963
        %983 = vmatprep.subr.bf16.mxu0 0
        %984 = vmatpush1.bf16.msra.mxu0 %v962
        %985 = vmatprep.subr.bf16.mxu0 0
        %986 = vmatpush1.bf16.msra.mxu0 %v961
        %987 = vmatprep.subr.bf16.mxu0 0
        %988 = vmatpush1.bf16.msra.mxu0 %v960
        %989 = vmatprep.subr.bf16.mxu0 0
        %990 = vmatpush1.bf16.msra.mxu0 %v959
        %991 = vmatprep.subr.bf16.mxu0 0
        %992 = vmatpush2.bf16.msra.mxu0 0
        %993 = vmatprep.subr.bf16.mxu0 0
        %994 = vmatpush2.bf16.msra.mxu0 0
        %995 = vmatprep.subr.bf16.mxu0 0
        %996 = vmatpush2.bf16.msra.mxu0 0
        %997 = vmatprep.subr.bf16.mxu0 0
        %998 = vmatpush2.bf16.msra.mxu0 0
        %999 = vmatprep.subr.bf16.mxu0 0
        %1000 = vmatpush2.bf16.msra.mxu0 0
        %1001 = vmatprep.subr.bf16.mxu0 0
        %1002 = vmatpush2.bf16.msra.mxu0 0
        %1003 = vmatprep.subr.bf16.mxu0 0
        %1004 = vmatpush2.bf16.msra.mxu0 0
        %1005 = vmatprep.subr.bf16.mxu0 0
        %1006 = vmatpush2.bf16.msra.mxu0 0
        %1007 = vmatprep.mubr.bf16.mxu0 0
        %1008 = vmatmul.mubr.bf16.gmra.mxu0 %v876
        %v1009 = vpop.f32.mrf.mxu0
        %v1010 = vadd.f32 0.0, %v1009
        %v1011 = vpop.f32.mrf.mxu0
        %v1012 = vpop.f32.mrf.mxu0
        %v1013 = vadd.f32 0.0, %v1012
        %v1014 = vpop.f32.mrf.mxu0
        %1015 = vmatprep.mubr.bf16.mxu0 0
        %1016 = vmatmul.mubr.bf16.gmra.mxu0 %v884
        %v1017 = vpop.f32.mrf.mxu0
        %v1018 = vadd.f32 0.0, %v1017
        %v1019 = vpop.f32.mrf.mxu0
        %v1020 = vpop.f32.mrf.mxu0
        %v1021 = vadd.f32 0.0, %v1020
        %v1022 = vpop.f32.mrf.mxu0
        %1023 = vmatprep.mubr.bf16.mxu0 0
        %1024 = vmatmul.mubr.bf16.gmra.mxu0 %v892
        %v1025 = vpop.f32.mrf.mxu0
        %v1026 = vadd.f32 0.0, %v1025
        %v1027 = vpop.f32.mrf.mxu0
        %v1028 = vpop.f32.mrf.mxu0
        %v1029 = vadd.f32 0.0, %v1028
        %v1030 = vpop.f32.mrf.mxu0
        %1031 = vmatprep.mubr.bf16.mxu0 0
        %1032 = vmatmul.mubr.bf16.gmra.mxu0 %v900
        %v1033 = vpop.f32.mrf.mxu0
        %v1034 = vadd.f32 0.0, %v1033
        %v1035 = vpop.f32.mrf.mxu0
        %v1036 = vpop.f32.mrf.mxu0
        %v1037 = vadd.f32 0.0, %v1036
        %v1038 = vpop.f32.mrf.mxu0
        %1039 = vmatprep.mubr.bf16.mxu0 0
        %1040 = vmatmul.mubr.bf16.gmra.mxu0 %v908
        %v1041 = vpop.f32.mrf.mxu0
        %v1042 = vadd.f32 0.0, %v1041
        %v1043 = vpop.f32.mrf.mxu0
        %v1044 = vpop.f32.mrf.mxu0
        %v1045 = vadd.f32 0.0, %v1044
        %v1046 = vpop.f32.mrf.mxu0
        %1047 = vmatprep.mubr.bf16.mxu0 0
        %1048 = vmatmul.mubr.bf16.gmra.mxu0 %v916
        %v1049 = vpop.f32.mrf.mxu0
        %v1050 = vadd.f32 0.0, %v1049
        %v1051 = vpop.f32.mrf.mxu0
        %v1052 = vpop.f32.mrf.mxu0
        %v1053 = vadd.f32 0.0, %v1052
        %v1054 = vpop.f32.mrf.mxu0
        %1055 = vmatprep.mubr.bf16.mxu0 0
        %1056 = vmatmul.mubr.bf16.gmra.mxu0 %v919
        %v1057 = vpop.f32.mrf.mxu0
        %v1058 = vadd.f32 0.0, %v1057
        %v1059 = vpop.f32.mrf.mxu0
        %v1060 = vpop.f32.mrf.mxu0
        %v1061 = vpop.f32.mrf.mxu0
        %1062 = vdwg.mxu0
        %v1063 = vadd.f32 %v745, %v1010
        %v1064 = vadd.f32 %v748, %v1013
        %v1065 = vadd.f32 %v753, %v1018
        %v1066 = vadd.f32 %v756, %v1021
        %v1067 = vadd.f32 %v761, %v1026
        %v1068 = vadd.f32 %v764, %v1029
        %v1069 = vadd.f32 %v769, %v1034
        %v1070 = vadd.f32 %v772, %v1037
        %v1071 = vadd.f32 %v777, %v1042
        %v1072 = vadd.f32 %v780, %v1045
        %v1073 = vadd.f32 %v785, %v1050
        %v1074 = vadd.f32 %v788, %v1053
        %v1075 = vadd.f32 %v793, %v1058
        %s1076 = scalar_lea.vmem %s338, 120 [#allocation3]
        %v1077 = vld [vmem:[%s1076] sm:$0xf]
        %v1078 = vld [vmem:[%s1076 + $0x4] sm:$0xf]
        %v1079 = vld [vmem:[%s1076 + $0x8] sm:$0xf]
        %v1080 = vld [vmem:[%s1076 + $0xc] sm:$0xf]
        %v1081 = vld [vmem:[%s1076 + $0x10] sm:$0xf]
        %v1082 = vld [vmem:[%s1076 + $0x14] sm:$0xf]
        %v1083 = vld [vmem:[%s1076 + $0x18] sm:$0xf]
        %v1084 = vld [vmem:[%s1076 + $0x1c] sm:$0xf]
        %v1085 = vld [vmem:[%s1076 + $0x20] sm:$0xf]
        %v1086 = vld [vmem:[%s1076 + $0x24] sm:$0xf]
        %v1087 = vld [vmem:[%s1076 + $0x28] sm:$0xf]
        %v1088 = vld [vmem:[%s1076 + $0x2c] sm:$0xf]
        %v1089 = vld [vmem:[%s1076 + $0x30] sm:$0xf]
        %s1090 = scalar_lea.vmem [#allocation6], 192
        %v1091 = vld [vmem:[%s1090] sm:$0xf]
        %v1092 = vld [vmem:[%s1090 + $0x4] sm:$0xf]
        %v1093 = vld [vmem:[%s1090 + $0x8] sm:$0xf]
        %v1094 = vld [vmem:[%s1090 + $0xc] sm:$0xf]
        %v1095 = vld [vmem:[%s1090 + $0x10] sm:$0xf]
        %v1096 = vld [vmem:[%s1090 + $0x14] sm:$0xf]
        %v1097 = vld [vmem:[%s1090 + $0x18] sm:$0xf]
        %v1098 = vld [vmem:[%s1090 + $0x1c] sm:$0xf]
        %v1099 = vld [vmem:[%s1090 + $0x20] sm:$0xf]
        %v1100 = vld [vmem:[%s1090 + $0x24] sm:$0xf]
        %v1101 = vld [vmem:[%s1090 + $0x28] sm:$0xf]
        %v1102 = vld [vmem:[%s1090 + $0x2c] sm:$0xf]
        %v1103 = vld [vmem:[%s1090 + $0x30] sm:$0xf]
        %v1104 = vld [vmem:[%s1090 + $0x34] sm:$0xf]
        %v1105 = vld [vmem:[%s1090 + $0x38] sm:$0xf]
        %v1106 = vld [vmem:[%s1090 + $0x3c] sm:$0xf]
        %v1120 = vunpack.c.l.b16 %v1077
        %v1121 = vunpack.c.l.b16 %v1078
        %v1122 = vunpack.c.l.b16 %v1079
        %v1123 = vunpack.c.l.b16 %v1080
        %v1124 = vunpack.c.l.b16 %v1081
        %v1125 = vunpack.c.l.b16 %v1082
        %v1126 = vunpack.c.l.b16 %v1083
        %v1127 = vunpack.c.l.b16 %v1084
        %v1128 = vunpack.c.l.b16 %v1085
        %v1129 = vunpack.c.l.b16 %v1086
        %v1130 = vunpack.c.l.b16 %v1087
        %v1131 = vunpack.c.l.b16 %v1088
        %v1132 = vunpack.c.l.b16 %v1089
        %v1133 = vpack.c.b16 %v1121, %v1120
        %v1134 = vpack.c.b16 %v1123, %v1122
        %v1135 = vpack.c.b16 %v1125, %v1124
        %v1136 = vpack.c.b16 %v1127, %v1126
        %v1137 = vpack.c.b16 %v1129, %v1128
        %v1138 = vpack.c.b16 %v1131, %v1130
        %v1139 = vpack.c.b16 %v1132, %v1132
        %v1163 = vunpack.c.l.b16 %v1091
        %v1164 = vunpack.c.l.b16 %v1092
        %v1165 = vunpack.c.l.b16 %v1093
        %v1166 = vunpack.c.l.b16 %v1094
        %v1167 = vunpack.c.l.b16 %v1095
        %v1168 = vunpack.c.l.b16 %v1096
        %v1169 = vunpack.c.l.b16 %v1097
        %v1170 = vunpack.c.l.b16 %v1098
        %v1171 = vunpack.c.l.b16 %v1099
        %v1172 = vunpack.c.l.b16 %v1100
        %v1173 = vunpack.c.l.b16 %v1101
        %v1174 = vunpack.c.l.b16 %v1102
        %v1175 = vunpack.c.l.b16 %v1103
        %v1176 = vunpack.c.l.b16 %v1104
        %v1177 = vunpack.c.l.b16 %v1105
        %v1178 = vunpack.c.l.b16 %v1106
        %v1179 = vpack.c.b16 %v1164, %v1163
        %v1180 = vpack.c.b16 %v1166, %v1165
        %v1181 = vpack.c.b16 %v1168, %v1167
        %v1182 = vpack.c.b16 %v1170, %v1169
        %v1183 = vpack.c.b16 %v1172, %v1171
        %v1184 = vpack.c.b16 %v1174, %v1173
        %v1185 = vpack.c.b16 %v1176, %v1175
        %v1186 = vpack.c.b16 %v1178, %v1177
        %1195 = vmatprep.subr.bf16.mxu0 0
        %1196 = vmatpush1.bf16.msra.mxu0 %v1186
        %1197 = vmatprep.subr.bf16.mxu0 0
        %1198 = vmatpush1.bf16.msra.mxu0 %v1185
        %1199 = vmatprep.subr.bf16.mxu0 0
        %1200 = vmatpush1.bf16.msra.mxu0 %v1184
        %1201 = vmatprep.subr.bf16.mxu0 0
        %1202 = vmatpush1.bf16.msra.mxu0 %v1183
        %1203 = vmatprep.subr.bf16.mxu0 0
        %1204 = vmatpush1.bf16.msra.mxu0 %v1182
        %1205 = vmatprep.subr.bf16.mxu0 0
        %1206 = vmatpush1.bf16.msra.mxu0 %v1181
        %1207 = vmatprep.subr.bf16.mxu0 0
        %1208 = vmatpush1.bf16.msra.mxu0 %v1180
        %1209 = vmatprep.subr.bf16.mxu0 0
        %1210 = vmatpush1.bf16.msra.mxu0 %v1179
        %1211 = vmatprep.subr.bf16.mxu0 0
        %1212 = vmatpush2.bf16.msra.mxu0 0
        %1213 = vmatprep.subr.bf16.mxu0 0
        %1214 = vmatpush2.bf16.msra.mxu0 0
        %1215 = vmatprep.subr.bf16.mxu0 0
        %1216 = vmatpush2.bf16.msra.mxu0 0
        %1217 = vmatprep.subr.bf16.mxu0 0
        %1218 = vmatpush2.bf16.msra.mxu0 0
        %1219 = vmatprep.subr.bf16.mxu0 0
        %1220 = vmatpush2.bf16.msra.mxu0 0
        %1221 = vmatprep.subr.bf16.mxu0 0
        %1222 = vmatpush2.bf16.msra.mxu0 0
        %1223 = vmatprep.subr.bf16.mxu0 0
        %1224 = vmatpush2.bf16.msra.mxu0 0
        %1225 = vmatprep.subr.bf16.mxu0 0
        %1226 = vmatpush2.bf16.msra.mxu0 0
        %1227 = vmatprep.mubr.bf16.mxu0 0
        %1228 = vmatmul.mubr.bf16.gmra.mxu0 %v1133
        %v1229 = vpop.f32.mrf.mxu0
        %v1230 = vadd.f32 0.0, %v1229
        %v1231 = vpop.f32.mrf.mxu0
        %v1232 = vpop.f32.mrf.mxu0
        %v1233 = vadd.f32 0.0, %v1232
        %v1234 = vpop.f32.mrf.mxu0
        %1235 = vmatprep.mubr.bf16.mxu0 0
        %1236 = vmatmul.mubr.bf16.gmra.mxu0 %v1134
        %v1237 = vpop.f32.mrf.mxu0
        %v1238 = vadd.f32 0.0, %v1237
        %v1239 = vpop.f32.mrf.mxu0
        %v1240 = vpop.f32.mrf.mxu0
        %v1241 = vadd.f32 0.0, %v1240
        %v1242 = vpop.f32.mrf.mxu0
        %1243 = vmatprep.mubr.bf16.mxu0 0
        %1244 = vmatmul.mubr.bf16.gmra.mxu0 %v1135
        %v1245 = vpop.f32.mrf.mxu0
        %v1246 = vadd.f32 0.0, %v1245
        %v1247 = vpop.f32.mrf.mxu0
        %v1248 = vpop.f32.mrf.mxu0
        %v1249 = vadd.f32 0.0, %v1248
        %v1250 = vpop.f32.mrf.mxu0
        %1251 = vmatprep.mubr.bf16.mxu0 0
        %1252 = vmatmul.mubr.bf16.gmra.mxu0 %v1136
        %v1253 = vpop.f32.mrf.mxu0
        %v1254 = vadd.f32 0.0, %v1253
        %v1255 = vpop.f32.mrf.mxu0
        %v1256 = vpop.f32.mrf.mxu0
        %v1257 = vadd.f32 0.0, %v1256
        %v1258 = vpop.f32.mrf.mxu0
        %1259 = vmatprep.mubr.bf16.mxu0 0
        %1260 = vmatmul.mubr.bf16.gmra.mxu0 %v1137
        %v1261 = vpop.f32.mrf.mxu0
        %v1262 = vadd.f32 0.0, %v1261
        %v1263 = vpop.f32.mrf.mxu0
        %v1264 = vpop.f32.mrf.mxu0
        %v1265 = vadd.f32 0.0, %v1264
        %v1266 = vpop.f32.mrf.mxu0
        %1267 = vmatprep.mubr.bf16.mxu0 0
        %1268 = vmatmul.mubr.bf16.gmra.mxu0 %v1138
        %v1269 = vpop.f32.mrf.mxu0
        %v1270 = vadd.f32 0.0, %v1269
        %v1271 = vpop.f32.mrf.mxu0
        %v1272 = vpop.f32.mrf.mxu0
        %v1273 = vadd.f32 0.0, %v1272
        %v1274 = vpop.f32.mrf.mxu0
        %1275 = vmatprep.mubr.bf16.mxu0 0
        %1276 = vmatmul.mubr.bf16.gmra.mxu0 %v1139
        %v1277 = vpop.f32.mrf.mxu0
        %v1278 = vadd.f32 0.0, %v1277
        %v1279 = vpop.f32.mrf.mxu0
        %v1280 = vpop.f32.mrf.mxu0
        %v1281 = vpop.f32.mrf.mxu0
        %1282 = vdwg.mxu0
        %v1283 = vadd.f32 %v1063, %v1230
        %v1284 = vadd.f32 %v1064, %v1233
        %v1285 = vadd.f32 %v1065, %v1238
        %v1286 = vadd.f32 %v1066, %v1241
        %v1287 = vadd.f32 %v1067, %v1246
        %v1288 = vadd.f32 %v1068, %v1249
        %v1289 = vadd.f32 %v1069, %v1254
        %v1290 = vadd.f32 %v1070, %v1257
        %v1291 = vadd.f32 %v1071, %v1262
        %v1292 = vadd.f32 %v1072, %v1265
        %v1293 = vadd.f32 %v1073, %v1270
        %v1294 = vadd.f32 %v1074, %v1273
        %v1295 = vadd.f32 %v1075, %v1278
        %s1296 = scalar_lea.vmem %s338, 180 [#allocation3]
        %v1297 = vld [vmem:[%s1296] sm:$0xf]
        %v1298 = vld [vmem:[%s1296 + $0x4] sm:$0xf]
        %v1299 = vld [vmem:[%s1296 + $0x8] sm:$0xf]
        %v1300 = vld [vmem:[%s1296 + $0xc] sm:$0xf]
        %v1301 = vld [vmem:[%s1296 + $0x10] sm:$0xf]
        %v1302 = vld [vmem:[%s1296 + $0x14] sm:$0xf]
        %v1303 = vld [vmem:[%s1296 + $0x18] sm:$0xf]
        %v1304 = vld [vmem:[%s1296 + $0x1c] sm:$0xf]
        %v1305 = vld [vmem:[%s1296 + $0x20] sm:$0xf]
        %v1306 = vld [vmem:[%s1296 + $0x24] sm:$0xf]
        %v1307 = vld [vmem:[%s1296 + $0x28] sm:$0xf]
        %v1308 = vld [vmem:[%s1296 + $0x2c] sm:$0xf]
        %v1309 = vld [vmem:[%s1296 + $0x30] sm:$0xf]
        %s1310 = scalar_lea.vmem [#allocation6], 256
        %v1311 = vld [vmem:[%s1310] sm:$0xf]
        %v1312 = vld [vmem:[%s1310 + $0x4] sm:$0xf]
        %v1313 = vld [vmem:[%s1310 + $0x8] sm:$0xf]
        %v1314 = vld [vmem:[%s1310 + $0xc] sm:$0xf]
        %v1315 = vld [vmem:[%s1310 + $0x10] sm:$0xf]
        %v1316 = vld [vmem:[%s1310 + $0x14] sm:$0xf]
        %v1317 = vld [vmem:[%s1310 + $0x18] sm:$0xf]
        %v1318 = vld [vmem:[%s1310 + $0x1c] sm:$0xf]
        %v1319 = vld [vmem:[%s1310 + $0x20] sm:$0xf]
        %v1320 = vld [vmem:[%s1310 + $0x24] sm:$0xf]
        %v1321 = vld [vmem:[%s1310 + $0x28] sm:$0xf]
        %v1322 = vld [vmem:[%s1310 + $0x2c] sm:$0xf]
        %v1323 = vld [vmem:[%s1310 + $0x30] sm:$0xf]
        %v1324 = vld [vmem:[%s1310 + $0x34] sm:$0xf]
        %v1325 = vld [vmem:[%s1310 + $0x38] sm:$0xf]
        %v1326 = vld [vmem:[%s1310 + $0x3c] sm:$0xf]
        %v1340 = vunpack.c.l.b16 %v1297
        %v1341 = vunpack.c.l.b16 %v1298
        %v1342 = vunpack.c.l.b16 %v1299
        %v1343 = vunpack.c.l.b16 %v1300
        %v1344 = vunpack.c.l.b16 %v1301
        %v1345 = vunpack.c.l.b16 %v1302
        %v1346 = vunpack.c.l.b16 %v1303
        %v1347 = vunpack.c.l.b16 %v1304
        %v1348 = vunpack.c.l.b16 %v1305
        %v1349 = vunpack.c.l.b16 %v1306
        %v1350 = vunpack.c.l.b16 %v1307
        %v1351 = vunpack.c.l.b16 %v1308
        %v1352 = vunpack.c.l.b16 %v1309
        %v1353 = vpack.c.b16 %v1341, %v1340
        %v1354 = vpack.c.b16 %v1343, %v1342
        %v1355 = vpack.c.b16 %v1345, %v1344
        %v1356 = vpack.c.b16 %v1347, %v1346
        %v1357 = vpack.c.b16 %v1349, %v1348
        %v1358 = vpack.c.b16 %v1351, %v1350
        %v1359 = vpack.c.b16 %v1352, %v1352
        %v1383 = vunpack.c.l.b16 %v1311
        %v1384 = vunpack.c.l.b16 %v1312
        %v1385 = vunpack.c.l.b16 %v1313
        %v1386 = vunpack.c.l.b16 %v1314
        %v1387 = vunpack.c.l.b16 %v1315
        %v1388 = vunpack.c.l.b16 %v1316
        %v1389 = vunpack.c.l.b16 %v1317
        %v1390 = vunpack.c.l.b16 %v1318
        %v1391 = vunpack.c.l.b16 %v1319
        %v1392 = vunpack.c.l.b16 %v1320
        %v1393 = vunpack.c.l.b16 %v1321
        %v1394 = vunpack.c.l.b16 %v1322
        %v1395 = vunpack.c.l.b16 %v1323
        %v1396 = vunpack.c.l.b16 %v1324
        %v1397 = vunpack.c.l.b16 %v1325
        %v1398 = vunpack.c.l.b16 %v1326
        %v1399 = vpack.c.b16 %v1384, %v1383
        %v1400 = vpack.c.b16 %v1386, %v1385
        %v1401 = vpack.c.b16 %v1388, %v1387
        %v1402 = vpack.c.b16 %v1390, %v1389
        %v1403 = vpack.c.b16 %v1392, %v1391
        %v1404 = vpack.c.b16 %v1394, %v1393
        %v1405 = vpack.c.b16 %v1396, %v1395
        %v1406 = vpack.c.b16 %v1398, %v1397
        %1415 = vmatprep.subr.bf16.mxu0 0
        %1416 = vmatpush1.bf16.msra.mxu0 %v1406
        %1417 = vmatprep.subr.bf16.mxu0 0
        %1418 = vmatpush1.bf16.msra.mxu0 %v1405
        %1419 = vmatprep.subr.bf16.mxu0 0
        %1420 = vmatpush1.bf16.msra.mxu0 %v1404
        %1421 = vmatprep.subr.bf16.mxu0 0
        %1422 = vmatpush1.bf16.msra.mxu0 %v1403
        %1423 = vmatprep.subr.bf16.mxu0 0
        %1424 = vmatpush1.bf16.msra.mxu0 %v1402
        %1425 = vmatprep.subr.bf16.mxu0 0
        %1426 = vmatpush1.bf16.msra.mxu0 %v1401
        %1427 = vmatprep.subr.bf16.mxu0 0
        %1428 = vmatpush1.bf16.msra.mxu0 %v1400
        %1429 = vmatprep.subr.bf16.mxu0 0
        %1430 = vmatpush1.bf16.msra.mxu0 %v1399
        %1431 = vmatprep.subr.bf16.mxu0 0
        %1432 = vmatpush2.bf16.msra.mxu0 0
        %1433 = vmatprep.subr.bf16.mxu0 0
        %1434 = vmatpush2.bf16.msra.mxu0 0
        %1435 = vmatprep.subr.bf16.mxu0 0
        %1436 = vmatpush2.bf16.msra.mxu0 0
        %1437 = vmatprep.subr.bf16.mxu0 0
        %1438 = vmatpush2.bf16.msra.mxu0 0
        %1439 = vmatprep.subr.bf16.mxu0 0
        %1440 = vmatpush2.bf16.msra.mxu0 0
        %1441 = vmatprep.subr.bf16.mxu0 0
        %1442 = vmatpush2.bf16.msra.mxu0 0
        %1443 = vmatprep.subr.bf16.mxu0 0
        %1444 = vmatpush2.bf16.msra.mxu0 0
        %1445 = vmatprep.subr.bf16.mxu0 0
        %1446 = vmatpush2.bf16.msra.mxu0 0
        %1447 = vmatprep.mubr.bf16.mxu0 0
        %1448 = vmatmul.mubr.bf16.gmra.mxu0 %v1353
        %v1449 = vpop.f32.mrf.mxu0
        %v1450 = vadd.f32 0.0, %v1449
        %v1451 = vpop.f32.mrf.mxu0
        %v1452 = vpop.f32.mrf.mxu0
        %v1453 = vadd.f32 0.0, %v1452
        %v1454 = vpop.f32.mrf.mxu0
        %1455 = vmatprep.mubr.bf16.mxu0 0
        %1456 = vmatmul.mubr.bf16.gmra.mxu0 %v1354
        %v1457 = vpop.f32.mrf.mxu0
        %v1458 = vadd.f32 0.0, %v1457
        %v1459 = vpop.f32.mrf.mxu0
        %v1460 = vpop.f32.mrf.mxu0
        %v1461 = vadd.f32 0.0, %v1460
        %v1462 = vpop.f32.mrf.mxu0
        %1463 = vmatprep.mubr.bf16.mxu0 0
        %1464 = vmatmul.mubr.bf16.gmra.mxu0 %v1355
        %v1465 = vpop.f32.mrf.mxu0
        %v1466 = vadd.f32 0.0, %v1465
        %v1467 = vpop.f32.mrf.mxu0
        %v1468 = vpop.f32.mrf.mxu0
        %v1469 = vadd.f32 0.0, %v1468
        %v1470 = vpop.f32.mrf.mxu0
        %1471 = vmatprep.mubr.bf16.mxu0 0
        %1472 = vmatmul.mubr.bf16.gmra.mxu0 %v1356
        %v1473 = vpop.f32.mrf.mxu0
        %v1474 = vadd.f32 0.0, %v1473
        %v1475 = vpop.f32.mrf.mxu0
        %v1476 = vpop.f32.mrf.mxu0
        %v1477 = vadd.f32 0.0, %v1476
        %v1478 = vpop.f32.mrf.mxu0
        %1479 = vmatprep.mubr.bf16.mxu0 0
        %1480 = vmatmul.mubr.bf16.gmra.mxu0 %v1357
        %v1481 = vpop.f32.mrf.mxu0
        %v1482 = vadd.f32 0.0, %v1481
        %v1483 = vpop.f32.mrf.mxu0
        %v1484 = vpop.f32.mrf.mxu0
        %v1485 = vadd.f32 0.0, %v1484
        %v1486 = vpop.f32.mrf.mxu0
        %1487 = vmatprep.mubr.bf16.mxu0 0
        %1488 = vmatmul.mubr.bf16.gmra.mxu0 %v1358
        %v1489 = vpop.f32.mrf.mxu0
        %v1490 = vadd.f32 0.0, %v1489
        %v1491 = vpop.f32.mrf.mxu0
        %v1492 = vpop.f32.mrf.mxu0
        %v1493 = vadd.f32 0.0, %v1492
        %v1494 = vpop.f32.mrf.mxu0
        %1495 = vmatprep.mubr.bf16.mxu0 0
        %1496 = vmatmul.mubr.bf16.gmra.mxu0 %v1359
        %v1497 = vpop.f32.mrf.mxu0
        %v1498 = vadd.f32 0.0, %v1497
        %v1499 = vpop.f32.mrf.mxu0
        %v1500 = vpop.f32.mrf.mxu0
        %v1501 = vpop.f32.mrf.mxu0
        %1502 = vdwg.mxu0
        %v1503 = vadd.f32 %v1283, %v1450
        %v1504 = vadd.f32 %v1284, %v1453
        %v1505 = vadd.f32 %v1285, %v1458
        %v1506 = vadd.f32 %v1286, %v1461
        %v1507 = vadd.f32 %v1287, %v1466
        %v1508 = vadd.f32 %v1288, %v1469
        %v1509 = vadd.f32 %v1289, %v1474
        %v1510 = vadd.f32 %v1290, %v1477
        %v1511 = vadd.f32 %v1291, %v1482
        %v1512 = vadd.f32 %v1292, %v1485
        %v1513 = vadd.f32 %v1293, %v1490
        %v1514 = vadd.f32 %v1294, %v1493
        %v1515 = vadd.f32 %v1295, %v1498
        %v1516 = vld [vmem:[%s1076] sm:$0xf]
        %v1517 = vld [vmem:[%s1076 + $0x4] sm:$0xf]
        %v1518 = vld [vmem:[%s1076 + $0x8] sm:$0xf]
        %v1519 = vld [vmem:[%s1076 + $0xc] sm:$0xf]
        %v1520 = vld [vmem:[%s1076 + $0x10] sm:$0xf]
        %v1521 = vld [vmem:[%s1076 + $0x14] sm:$0xf]
        %v1522 = vld [vmem:[%s1076 + $0x18] sm:$0xf]
        %v1523 = vld [vmem:[%s1076 + $0x1c] sm:$0xf]
        %v1524 = vld [vmem:[%s1076 + $0x20] sm:$0xf]
        %v1525 = vld [vmem:[%s1076 + $0x24] sm:$0xf]
        %v1526 = vld [vmem:[%s1076 + $0x28] sm:$0xf]
        %v1527 = vld [vmem:[%s1076 + $0x2c] sm:$0xf]
        %v1528 = vld [vmem:[%s1076 + $0x30] sm:$0xf]
        %v1529 = vld [vmem:[%s1076 + $0x34] sm:$0x1]
        %s1530 = scalar_lea.vmem [#allocation6], 320
        %v1531 = vld [vmem:[%s1530] sm:$0xf]
        %v1532 = vld [vmem:[%s1530 + $0x4] sm:$0xf]
        %v1533 = vld [vmem:[%s1530 + $0x8] sm:$0xf]
        %v1534 = vld [vmem:[%s1530 + $0xc] sm:$0xf]
        %v1535 = vld [vmem:[%s1530 + $0x10] sm:$0xf]
        %v1536 = vld [vmem:[%s1530 + $0x14] sm:$0xf]
        %v1537 = vld [vmem:[%s1530 + $0x18] sm:$0xf]
        %v1538 = vld [vmem:[%s1530 + $0x1c] sm:$0xf]
        %v1539 = vld [vmem:[%s1530 + $0x20] sm:$0xf]
        %v1540 = vld [vmem:[%s1530 + $0x24] sm:$0xf]
        %v1541 = vld [vmem:[%s1530 + $0x28] sm:$0xf]
        %v1542 = vld [vmem:[%s1530 + $0x2c] sm:$0xf]
        %v1543 = vld [vmem:[%s1530 + $0x30] sm:$0xf]
        %v1544 = vld [vmem:[%s1530 + $0x34] sm:$0xf]
        %v1545 = vld [vmem:[%s1530 + $0x38] sm:$0xf]
        %v1546 = vld [vmem:[%s1530 + $0x3c] sm:$0xf]
        %v1561 = vunpack.c.l.b16 %v1516
        %v1562 = vunpack.c.l.b16 %v1517
        %v1563 = vunpack.c.l.b16 %v1518
        %v1564 = vunpack.c.l.b16 %v1519
        %v1565 = vunpack.c.l.b16 %v1520
        %v1566 = vunpack.c.l.b16 %v1521
        %v1567 = vunpack.c.l.b16 %v1522
        %v1568 = vunpack.c.l.b16 %v1523
        %v1569 = vunpack.c.l.b16 %v1524
        %v1570 = vunpack.c.l.b16 %v1525
        %v1571 = vunpack.c.l.b16 %v1526
        %v1572 = vunpack.c.l.b16 %v1527
        %v1573 = vunpack.c.l.b16 %v1528
        %v1574 = vunpack.c.l.b16 %v1529
        %v1575 = vpack.c.b16 %v1562, %v1561
        %v1576 = vpack.c.b16 %v1564, %v1563
        %v1577 = vpack.c.b16 %v1566, %v1565
        %v1578 = vpack.c.b16 %v1568, %v1567
        %v1579 = vpack.c.b16 %v1570, %v1569
        %v1580 = vpack.c.b16 %v1572, %v1571
        %v1581 = vpack.c.b16 %v1574, %v1573
        %v1583 = vshrl.u32 %v1575, 16
        %v1585 = vshll.u32 %v1575, 16
        %v1587 = vrot.slane %v1585, 1
        %v1588 = vor.u32 %v1583, %v1587
        %v1590 = vshll.u32 %v1576, 16
        %v1592 = vrot.slane %v1590, 1
        %v1593 = vsel %vm864, %v1588, %v1592
        %v1594 = vshrl.u32 %v1576, 16
        %v1596 = vor.u32 %v1594, %v1592
        %v1598 = vshll.u32 %v1577, 16
        %v1600 = vrot.slane %v1598, 1
        %v1601 = vsel %vm864, %v1596, %v1600
        %v1602 = vshrl.u32 %v1577, 16
        %v1604 = vor.u32 %v1602, %v1600
        %v1606 = vshll.u32 %v1578, 16
        %v1608 = vrot.slane %v1606, 1
        %v1609 = vsel %vm864, %v1604, %v1608
        %v1610 = vshrl.u32 %v1578, 16
        %v1612 = vor.u32 %v1610, %v1608
        %v1614 = vshll.u32 %v1579, 16
        %v1616 = vrot.slane %v1614, 1
        %v1617 = vsel %vm864, %v1612, %v1616
        %v1618 = vshrl.u32 %v1579, 16
        %v1620 = vor.u32 %v1618, %v1616
        %v1622 = vshll.u32 %v1580, 16
        %v1624 = vrot.slane %v1622, 1
        %v1625 = vsel %vm864, %v1620, %v1624
        %v1626 = vshrl.u32 %v1580, 16
        %v1628 = vor.u32 %v1626, %v1624
        %v1630 = vshll.u32 %v1581, 16
        %v1632 = vrot.slane %v1630, 1
        %v1633 = vsel %vm864, %v1628, %v1632
        %v1634 = vshrl.u32 %v1581, 16
        %v1636 = vor.u32 %v1634, %v1632
        %v1660 = vunpack.c.l.b16 %v1531
        %v1661 = vunpack.c.l.b16 %v1532
        %v1662 = vunpack.c.l.b16 %v1533
        %v1663 = vunpack.c.l.b16 %v1534
        %v1664 = vunpack.c.l.b16 %v1535
        %v1665 = vunpack.c.l.b16 %v1536
        %v1666 = vunpack.c.l.b16 %v1537
        %v1667 = vunpack.c.l.b16 %v1538
        %v1668 = vunpack.c.l.b16 %v1539
        %v1669 = vunpack.c.l.b16 %v1540
        %v1670 = vunpack.c.l.b16 %v1541
        %v1671 = vunpack.c.l.b16 %v1542
        %v1672 = vunpack.c.l.b16 %v1543
        %v1673 = vunpack.c.l.b16 %v1544
        %v1674 = vunpack.c.l.b16 %v1545
        %v1675 = vunpack.c.l.b16 %v1546
        %v1676 = vpack.c.b16 %v1661, %v1660
        %v1677 = vpack.c.b16 %v1663, %v1662
        %v1678 = vpack.c.b16 %v1665, %v1664
        %v1679 = vpack.c.b16 %v1667, %v1666
        %v1680 = vpack.c.b16 %v1669, %v1668
        %v1681 = vpack.c.b16 %v1671, %v1670
        %v1682 = vpack.c.b16 %v1673, %v1672
        %v1683 = vpack.c.b16 %v1675, %v1674
        %1692 = vmatprep.subr.bf16.mxu0 0
        %1693 = vmatpush1.bf16.msra.mxu0 %v1683
        %1694 = vmatprep.subr.bf16.mxu0 0
        %1695 = vmatpush1.bf16.msra.mxu0 %v1682
        %1696 = vmatprep.subr.bf16.mxu0 0
        %1697 = vmatpush1.bf16.msra.mxu0 %v1681
        %1698 = vmatprep.subr.bf16.mxu0 0
        %1699 = vmatpush1.bf16.msra.mxu0 %v1680
        %1700 = vmatprep.subr.bf16.mxu0 0
        %1701 = vmatpush1.bf16.msra.mxu0 %v1679
        %1702 = vmatprep.subr.bf16.mxu0 0
        %1703 = vmatpush1.bf16.msra.mxu0 %v1678
        %1704 = vmatprep.subr.bf16.mxu0 0
        %1705 = vmatpush1.bf16.msra.mxu0 %v1677
        %1706 = vmatprep.subr.bf16.mxu0 0
        %1707 = vmatpush1.bf16.msra.mxu0 %v1676
        %1708 = vmatprep.subr.bf16.mxu0 0
        %1709 = vmatpush2.bf16.msra.mxu0 0
        %1710 = vmatprep.subr.bf16.mxu0 0
        %1711 = vmatpush2.bf16.msra.mxu0 0
        %1712 = vmatprep.subr.bf16.mxu0 0
        %1713 = vmatpush2.bf16.msra.mxu0 0
        %1714 = vmatprep.subr.bf16.mxu0 0
        %1715 = vmatpush2.bf16.msra.mxu0 0
        %1716 = vmatprep.subr.bf16.mxu0 0
        %1717 = vmatpush2.bf16.msra.mxu0 0
        %1718 = vmatprep.subr.bf16.mxu0 0
        %1719 = vmatpush2.bf16.msra.mxu0 0
        %1720 = vmatprep.subr.bf16.mxu0 0
        %1721 = vmatpush2.bf16.msra.mxu0 0
        %1722 = vmatprep.subr.bf16.mxu0 0
        %1723 = vmatpush2.bf16.msra.mxu0 0
        %1724 = vmatprep.mubr.bf16.mxu0 0
        %1725 = vmatmul.mubr.bf16.gmra.mxu0 %v1593
        %v1726 = vpop.f32.mrf.mxu0
        %v1727 = vadd.f32 0.0, %v1726
        %v1728 = vpop.f32.mrf.mxu0
        %v1729 = vpop.f32.mrf.mxu0
        %v1730 = vadd.f32 0.0, %v1729
        %v1731 = vpop.f32.mrf.mxu0
        %1732 = vmatprep.mubr.bf16.mxu0 0
        %1733 = vmatmul.mubr.bf16.gmra.mxu0 %v1601
        %v1734 = vpop.f32.mrf.mxu0
        %v1735 = vadd.f32 0.0, %v1734
        %v1736 = vpop.f32.mrf.mxu0
        %v1737 = vpop.f32.mrf.mxu0
        %v1738 = vadd.f32 0.0, %v1737
        %v1739 = vpop.f32.mrf.mxu0
        %1740 = vmatprep.mubr.bf16.mxu0 0
        %1741 = vmatmul.mubr.bf16.gmra.mxu0 %v1609
        %v1742 = vpop.f32.mrf.mxu0
        %v1743 = vadd.f32 0.0, %v1742
        %v1744 = vpop.f32.mrf.mxu0
        %v1745 = vpop.f32.mrf.mxu0
        %v1746 = vadd.f32 0.0, %v1745
        %v1747 = vpop.f32.mrf.mxu0
        %1748 = vmatprep.mubr.bf16.mxu0 0
        %1749 = vmatmul.mubr.bf16.gmra.mxu0 %v1617
        %v1750 = vpop.f32.mrf.mxu0
        %v1751 = vadd.f32 0.0, %v1750
        %v1752 = vpop.f32.mrf.mxu0
        %v1753 = vpop.f32.mrf.mxu0
        %v1754 = vadd.f32 0.0, %v1753
        %v1755 = vpop.f32.mrf.mxu0
        %1756 = vmatprep.mubr.bf16.mxu0 0
        %1757 = vmatmul.mubr.bf16.gmra.mxu0 %v1625
        %v1758 = vpop.f32.mrf.mxu0
        %v1759 = vadd.f32 0.0, %v1758
        %v1760 = vpop.f32.mrf.mxu0
        %v1761 = vpop.f32.mrf.mxu0
        %v1762 = vadd.f32 0.0, %v1761
        %v1763 = vpop.f32.mrf.mxu0
        %1764 = vmatprep.mubr.bf16.mxu0 0
        %1765 = vmatmul.mubr.bf16.gmra.mxu0 %v1633
        %v1766 = vpop.f32.mrf.mxu0
        %v1767 = vadd.f32 0.0, %v1766
        %v1768 = vpop.f32.mrf.mxu0
        %v1769 = vpop.f32.mrf.mxu0
        %v1770 = vadd.f32 0.0, %v1769
        %v1771 = vpop.f32.mrf.mxu0
        %1772 = vmatprep.mubr.bf16.mxu0 0
        %1773 = vmatmul.mubr.bf16.gmra.mxu0 %v1636
        %v1774 = vpop.f32.mrf.mxu0
        %v1775 = vadd.f32 0.0, %v1774
        %v1776 = vpop.f32.mrf.mxu0
        %v1777 = vpop.f32.mrf.mxu0
        %v1778 = vpop.f32.mrf.mxu0
        %1779 = vdwg.mxu0
        %v1780 = vadd.f32 %v1503, %v1727
        %v1781 = vadd.f32 %v1504, %v1730
        %v1782 = vadd.f32 %v1505, %v1735
        %v1783 = vadd.f32 %v1506, %v1738
        %v1784 = vadd.f32 %v1507, %v1743
        %v1785 = vadd.f32 %v1508, %v1746
        %v1786 = vadd.f32 %v1509, %v1751
        %v1787 = vadd.f32 %v1510, %v1754
        %v1788 = vadd.f32 %v1511, %v1759
        %v1789 = vadd.f32 %v1512, %v1762
        %v1790 = vadd.f32 %v1513, %v1767
        %v1791 = vadd.f32 %v1514, %v1770
        %v1792 = vadd.f32 %v1515, %v1775
        %v1793 = vld [vmem:[%s338 + $0x4] sm:$0xe]
        %v1794 = vld [vmem:[%s338 + $0x8] sm:$0xf]
        %v1795 = vld [vmem:[%s338 + $0xc] sm:$0xf]
        %v1796 = vld [vmem:[%s338 + $0x10] sm:$0xf]
        %v1797 = vld [vmem:[%s338 + $0x14] sm:$0xf]
        %v1798 = vld [vmem:[%s338 + $0x18] sm:$0xf]
        %v1799 = vld [vmem:[%s338 + $0x1c] sm:$0xf]
        %v1800 = vld [vmem:[%s338 + $0x20] sm:$0xf]
        %v1801 = vld [vmem:[%s338 + $0x24] sm:$0xf]
        %v1802 = vld [vmem:[%s338 + $0x28] sm:$0xf]
        %v1803 = vld [vmem:[%s338 + $0x2c] sm:$0xf]
        %v1804 = vld [vmem:[%s338 + $0x30] sm:$0xf]
        %v1805 = vld [vmem:[%s338 + $0x34] sm:$0xf]
        %v1806 = vld [vmem:[%s338 + $0x38] sm:$0x1]
        %s1807 = scalar_lea.vmem [#allocation6], 384
        %v1808 = vld [vmem:[%s1807] sm:$0xf]
        %v1809 = vld [vmem:[%s1807 + $0x4] sm:$0xf]
        %v1810 = vld [vmem:[%s1807 + $0x8] sm:$0xf]
        %v1811 = vld [vmem:[%s1807 + $0xc] sm:$0xf]
        %v1812 = vld [vmem:[%s1807 + $0x10] sm:$0xf]
        %v1813 = vld [vmem:[%s1807 + $0x14] sm:$0xf]
        %v1814 = vld [vmem:[%s1807 + $0x18] sm:$0xf]
        %v1815 = vld [vmem:[%s1807 + $0x1c] sm:$0xf]
        %v1816 = vld [vmem:[%s1807 + $0x20] sm:$0xf]
        %v1817 = vld [vmem:[%s1807 + $0x24] sm:$0xf]
        %v1818 = vld [vmem:[%s1807 + $0x28] sm:$0xf]
        %v1819 = vld [vmem:[%s1807 + $0x2c] sm:$0xf]
        %v1820 = vld [vmem:[%s1807 + $0x30] sm:$0xf]
        %v1821 = vld [vmem:[%s1807 + $0x34] sm:$0xf]
        %v1822 = vld [vmem:[%s1807 + $0x38] sm:$0xf]
        %v1823 = vld [vmem:[%s1807 + $0x3c] sm:$0xf]
        %v1838 = vunpack.c.l.b16 %v1793
        %v1839 = vunpack.c.l.b16 %v1794
        %v1840 = vunpack.c.l.b16 %v1795
        %v1841 = vunpack.c.l.b16 %v1796
        %v1842 = vunpack.c.l.b16 %v1797
        %v1843 = vunpack.c.l.b16 %v1798
        %v1844 = vunpack.c.l.b16 %v1799
        %v1845 = vunpack.c.l.b16 %v1800
        %v1846 = vunpack.c.l.b16 %v1801
        %v1847 = vunpack.c.l.b16 %v1802
        %v1848 = vunpack.c.l.b16 %v1803
        %v1849 = vunpack.c.l.b16 %v1804
        %v1850 = vunpack.c.l.b16 %v1805
        %v1851 = vunpack.c.l.b16 %v1806
        %v1852 = vpack.c.b16 %v1839, %v1838
        %v1853 = vpack.c.b16 %v1841, %v1840
        %v1854 = vpack.c.b16 %v1843, %v1842
        %v1855 = vpack.c.b16 %v1845, %v1844
        %v1856 = vpack.c.b16 %v1847, %v1846
        %v1857 = vpack.c.b16 %v1849, %v1848
        %v1858 = vpack.c.b16 %v1851, %v1850
        %vm1859 = vcmask 1046528
        %v1860 = vrot.slane %v1852, 1
        %v1861 = vrot.slane %v1853, 1
        %v1862 = vsel %vm1859, %v1860, %v1861
        %v1863 = vrot.slane %v1854, 1
        %v1864 = vsel %vm1859, %v1861, %v1863
        %v1865 = vrot.slane %v1855, 1
        %v1866 = vsel %vm1859, %v1863, %v1865
        %v1867 = vrot.slane %v1856, 1
        %v1868 = vsel %vm1859, %v1865, %v1867
        %v1869 = vrot.slane %v1857, 1
        %v1870 = vsel %vm1859, %v1867, %v1869
        %v1871 = vrot.slane %v1858, 1
        %v1872 = vsel %vm1859, %v1869, %v1871
        %v1896 = vunpack.c.l.b16 %v1808
        %v1897 = vunpack.c.l.b16 %v1809
        %v1898 = vunpack.c.l.b16 %v1810
        %v1899 = vunpack.c.l.b16 %v1811
        %v1900 = vunpack.c.l.b16 %v1812
        %v1901 = vunpack.c.l.b16 %v1813
        %v1902 = vunpack.c.l.b16 %v1814
        %v1903 = vunpack.c.l.b16 %v1815
        %v1904 = vunpack.c.l.b16 %v1816
        %v1905 = vunpack.c.l.b16 %v1817
        %v1906 = vunpack.c.l.b16 %v1818
        %v1907 = vunpack.c.l.b16 %v1819
        %v1908 = vunpack.c.l.b16 %v1820
        %v1909 = vunpack.c.l.b16 %v1821
        %v1910 = vunpack.c.l.b16 %v1822
        %v1911 = vunpack.c.l.b16 %v1823
        %v1912 = vpack.c.b16 %v1897, %v1896
        %v1913 = vpack.c.b16 %v1899, %v1898
        %v1914 = vpack.c.b16 %v1901, %v1900
        %v1915 = vpack.c.b16 %v1903, %v1902
        %v1916 = vpack.c.b16 %v1905, %v1904
        %v1917 = vpack.c.b16 %v1907, %v1906
        %v1918 = vpack.c.b16 %v1909, %v1908
        %v1919 = vpack.c.b16 %v1911, %v1910
        %1928 = vmatprep.subr.bf16.mxu0 0
        %1929 = vmatpush1.bf16.msra.mxu0 %v1919
        %1930 = vmatprep.subr.bf16.mxu0 0
        %1931 = vmatpush1.bf16.msra.mxu0 %v1918
        %1932 = vmatprep.subr.bf16.mxu0 0
        %1933 = vmatpush1.bf16.msra.mxu0 %v1917
        %1934 = vmatprep.subr.bf16.mxu0 0
        %1935 = vmatpush1.bf16.msra.mxu0 %v1916
        %1936 = vmatprep.subr.bf16.mxu0 0
        %1937 = vmatpush1.bf16.msra.mxu0 %v1915
        %1938 = vmatprep.subr.bf16.mxu0 0
        %1939 = vmatpush1.bf16.msra.mxu0 %v1914
        %1940 = vmatprep.subr.bf16.mxu0 0
        %1941 = vmatpush1.bf16.msra.mxu0 %v1913
        %1942 = vmatprep.subr.bf16.mxu0 0
        %1943 = vmatpush1.bf16.msra.mxu0 %v1912
        %1944 = vmatprep.subr.bf16.mxu0 0
        %1945 = vmatpush2.bf16.msra.mxu0 0
        %1946 = vmatprep.subr.bf16.mxu0 0
        %1947 = vmatpush2.bf16.msra.mxu0 0
        %1948 = vmatprep.subr.bf16.mxu0 0
        %1949 = vmatpush2.bf16.msra.mxu0 0
        %1950 = vmatprep.subr.bf16.mxu0 0
        %1951 = vmatpush2.bf16.msra.mxu0 0
        %1952 = vmatprep.subr.bf16.mxu0 0
        %1953 = vmatpush2.bf16.msra.mxu0 0
        %1954 = vmatprep.subr.bf16.mxu0 0
        %1955 = vmatpush2.bf16.msra.mxu0 0
        %1956 = vmatprep.subr.bf16.mxu0 0
        %1957 = vmatpush2.bf16.msra.mxu0 0
        %1958 = vmatprep.subr.bf16.mxu0 0
        %1959 = vmatpush2.bf16.msra.mxu0 0
        %1960 = vmatprep.mubr.bf16.mxu0 0
        %1961 = vmatmul.mubr.bf16.gmra.mxu0 %v1862
        %v1962 = vpop.f32.mrf.mxu0
        %v1963 = vadd.f32 0.0, %v1962
        %v1964 = vpop.f32.mrf.mxu0
        %v1965 = vpop.f32.mrf.mxu0
        %v1966 = vadd.f32 0.0, %v1965
        %v1967 = vpop.f32.mrf.mxu0
        %1968 = vmatprep.mubr.bf16.mxu0 0
        %1969 = vmatmul.mubr.bf16.gmra.mxu0 %v1864
        %v1970 = vpop.f32.mrf.mxu0
        %v1971 = vadd.f32 0.0, %v1970
        %v1972 = vpop.f32.mrf.mxu0
        %v1973 = vpop.f32.mrf.mxu0
        %v1974 = vadd.f32 0.0, %v1973
        %v1975 = vpop.f32.mrf.mxu0
        %1976 = vmatprep.mubr.bf16.mxu0 0
        %1977 = vmatmul.mubr.bf16.gmra.mxu0 %v1866
        %v1978 = vpop.f32.mrf.mxu0
        %v1979 = vadd.f32 0.0, %v1978
        %v1980 = vpop.f32.mrf.mxu0
        %v1981 = vpop.f32.mrf.mxu0
        %v1982 = vadd.f32 0.0, %v1981
        %v1983 = vpop.f32.mrf.mxu0
        %1984 = vmatprep.mubr.bf16.mxu0 0
        %1985 = vmatmul.mubr.bf16.gmra.mxu0 %v1868
        %v1986 = vpop.f32.mrf.mxu0
        %v1987 = vadd.f32 0.0, %v1986
        %v1988 = vpop.f32.mrf.mxu0
        %v1989 = vpop.f32.mrf.mxu0
        %v1990 = vadd.f32 0.0, %v1989
        %v1991 = vpop.f32.mrf.mxu0
        %1992 = vmatprep.mubr.bf16.mxu0 0
        %1993 = vmatmul.mubr.bf16.gmra.mxu0 %v1870
        %v1994 = vpop.f32.mrf.mxu0
        %v1995 = vadd.f32 0.0, %v1994
        %v1996 = vpop.f32.mrf.mxu0
        %v1997 = vpop.f32.mrf.mxu0
        %v1998 = vadd.f32 0.0, %v1997
        %v1999 = vpop.f32.mrf.mxu0
        %2000 = vmatprep.mubr.bf16.mxu0 0
        %2001 = vmatmul.mubr.bf16.gmra.mxu0 %v1872
        %v2002 = vpop.f32.mrf.mxu0
        %v2003 = vadd.f32 0.0, %v2002
        %v2004 = vpop.f32.mrf.mxu0
        %v2005 = vpop.f32.mrf.mxu0
        %v2006 = vadd.f32 0.0, %v2005
        %v2007 = vpop.f32.mrf.mxu0
        %2008 = vmatprep.mubr.bf16.mxu0 0
        %2009 = vmatmul.mubr.bf16.gmra.mxu0 %v1871
        %v2010 = vpop.f32.mrf.mxu0
        %v2011 = vadd.f32 0.0, %v2010
        %v2012 = vpop.f32.mrf.mxu0
        %v2013 = vpop.f32.mrf.mxu0
        %v2014 = vpop.f32.mrf.mxu0
        %2015 = vdwg.mxu0
        %v2016 = vadd.f32 %v1780, %v1963
        %v2017 = vadd.f32 %v1781, %v1966
        %v2018 = vadd.f32 %v1782, %v1971
        %v2019 = vadd.f32 %v1783, %v1974
        %v2020 = vadd.f32 %v1784, %v1979
        %v2021 = vadd.f32 %v1785, %v1982
        %v2022 = vadd.f32 %v1786, %v1987
        %v2023 = vadd.f32 %v1787, %v1990
        %v2024 = vadd.f32 %v1788, %v1995
        %v2025 = vadd.f32 %v1789, %v1998
        %v2026 = vadd.f32 %v1790, %v2003
        %v2027 = vadd.f32 %v1791, %v2006
        %v2028 = vadd.f32 %v1792, %v2011
        %v2029 = vld [vmem:[%s415 + $0x4] sm:$0xe]
        %v2030 = vld [vmem:[%s415 + $0x8] sm:$0xf]
        %v2031 = vld [vmem:[%s415 + $0xc] sm:$0xf]
        %v2032 = vld [vmem:[%s415 + $0x10] sm:$0xf]
        %v2033 = vld [vmem:[%s415 + $0x14] sm:$0xf]
        %v2034 = vld [vmem:[%s415 + $0x18] sm:$0xf]
        %v2035 = vld [vmem:[%s415 + $0x1c] sm:$0xf]
        %v2036 = vld [vmem:[%s415 + $0x20] sm:$0xf]
        %v2037 = vld [vmem:[%s415 + $0x24] sm:$0xf]
        %v2038 = vld [vmem:[%s415 + $0x28] sm:$0xf]
        %v2039 = vld [vmem:[%s415 + $0x2c] sm:$0xf]
        %v2040 = vld [vmem:[%s415 + $0x30] sm:$0xf]
        %v2041 = vld [vmem:[%s415 + $0x34] sm:$0xf]
        %v2042 = vld [vmem:[%s415 + $0x38] sm:$0x1]
        %s2043 = scalar_lea.vmem [#allocation6], 448
        %v2044 = vld [vmem:[%s2043] sm:$0xf]
        %v2045 = vld [vmem:[%s2043 + $0x4] sm:$0xf]
        %v2046 = vld [vmem:[%s2043 + $0x8] sm:$0xf]
        %v2047 = vld [vmem:[%s2043 + $0xc] sm:$0xf]
        %v2048 = vld [vmem:[%s2043 + $0x10] sm:$0xf]
        %v2049 = vld [vmem:[%s2043 + $0x14] sm:$0xf]
        %v2050 = vld [vmem:[%s2043 + $0x18] sm:$0xf]
        %v2051 = vld [vmem:[%s2043 + $0x1c] sm:$0xf]
        %v2052 = vld [vmem:[%s2043 + $0x20] sm:$0xf]
        %v2053 = vld [vmem:[%s2043 + $0x24] sm:$0xf]
        %v2054 = vld [vmem:[%s2043 + $0x28] sm:$0xf]
        %v2055 = vld [vmem:[%s2043 + $0x2c] sm:$0xf]
        %v2056 = vld [vmem:[%s2043 + $0x30] sm:$0xf]
        %v2057 = vld [vmem:[%s2043 + $0x34] sm:$0xf]
        %v2058 = vld [vmem:[%s2043 + $0x38] sm:$0xf]
        %v2059 = vld [vmem:[%s2043 + $0x3c] sm:$0xf]
        %v2074 = vunpack.c.l.b16 %v2029
        %v2075 = vunpack.c.l.b16 %v2030
        %v2076 = vunpack.c.l.b16 %v2031
        %v2077 = vunpack.c.l.b16 %v2032
        %v2078 = vunpack.c.l.b16 %v2033
        %v2079 = vunpack.c.l.b16 %v2034
        %v2080 = vunpack.c.l.b16 %v2035
        %v2081 = vunpack.c.l.b16 %v2036
        %v2082 = vunpack.c.l.b16 %v2037
        %v2083 = vunpack.c.l.b16 %v2038
        %v2084 = vunpack.c.l.b16 %v2039
        %v2085 = vunpack.c.l.b16 %v2040
        %v2086 = vunpack.c.l.b16 %v2041
        %v2087 = vunpack.c.l.b16 %v2042
        %v2088 = vpack.c.b16 %v2075, %v2074
        %v2089 = vpack.c.b16 %v2077, %v2076
        %v2090 = vpack.c.b16 %v2079, %v2078
        %v2091 = vpack.c.b16 %v2081, %v2080
        %v2092 = vpack.c.b16 %v2083, %v2082
        %v2093 = vpack.c.b16 %v2085, %v2084
        %v2094 = vpack.c.b16 %v2087, %v2086
        %v2095 = vrot.slane %v2088, 1
        %v2096 = vrot.slane %v2089, 1
        %v2097 = vsel %vm1859, %v2095, %v2096
        %v2098 = vrot.slane %v2090, 1
        %v2099 = vsel %vm1859, %v2096, %v2098
        %v2100 = vrot.slane %v2091, 1
        %v2101 = vsel %vm1859, %v2098, %v2100
        %v2102 = vrot.slane %v2092, 1
        %v2103 = vsel %vm1859, %v2100, %v2102
        %v2104 = vrot.slane %v2093, 1
        %v2105 = vsel %vm1859, %v2102, %v2104
        %v2106 = vrot.slane %v2094, 1
        %v2107 = vsel %vm1859, %v2104, %v2106
        %v2131 = vunpack.c.l.b16 %v2044
        %v2132 = vunpack.c.l.b16 %v2045
        %v2133 = vunpack.c.l.b16 %v2046
        %v2134 = vunpack.c.l.b16 %v2047
        %v2135 = vunpack.c.l.b16 %v2048
        %v2136 = vunpack.c.l.b16 %v2049
        %v2137 = vunpack.c.l.b16 %v2050
        %v2138 = vunpack.c.l.b16 %v2051
        %v2139 = vunpack.c.l.b16 %v2052
        %v2140 = vunpack.c.l.b16 %v2053
        %v2141 = vunpack.c.l.b16 %v2054
        %v2142 = vunpack.c.l.b16 %v2055
        %v2143 = vunpack.c.l.b16 %v2056
        %v2144 = vunpack.c.l.b16 %v2057
        %v2145 = vunpack.c.l.b16 %v2058
        %v2146 = vunpack.c.l.b16 %v2059
        %v2147 = vpack.c.b16 %v2132, %v2131
        %v2148 = vpack.c.b16 %v2134, %v2133
        %v2149 = vpack.c.b16 %v2136, %v2135
        %v2150 = vpack.c.b16 %v2138, %v2137
        %v2151 = vpack.c.b16 %v2140, %v2139
        %v2152 = vpack.c.b16 %v2142, %v2141
        %v2153 = vpack.c.b16 %v2144, %v2143
        %v2154 = vpack.c.b16 %v2146, %v2145
        %2163 = vmatprep.subr.bf16.mxu0 0
        %2164 = vmatpush1.bf16.msra.mxu0 %v2154
        %2165 = vmatprep.subr.bf16.mxu0 0
        %2166 = vmatpush1.bf16.msra.mxu0 %v2153
        %2167 = vmatprep.subr.bf16.mxu0 0
        %2168 = vmatpush1.bf16.msra.mxu0 %v2152
        %2169 = vmatprep.subr.bf16.mxu0 0
        %2170 = vmatpush1.bf16.msra.mxu0 %v2151
        %2171 = vmatprep.subr.bf16.mxu0 0
        %2172 = vmatpush1.bf16.msra.mxu0 %v2150
        %2173 = vmatprep.subr.bf16.mxu0 0
        %2174 = vmatpush1.bf16.msra.mxu0 %v2149
        %2175 = vmatprep.subr.bf16.mxu0 0
        %2176 = vmatpush1.bf16.msra.mxu0 %v2148
        %2177 = vmatprep.subr.bf16.mxu0 0
        %2178 = vmatpush1.bf16.msra.mxu0 %v2147
        %2179 = vmatprep.subr.bf16.mxu0 0
        %2180 = vmatpush2.bf16.msra.mxu0 0
        %2181 = vmatprep.subr.bf16.mxu0 0
        %2182 = vmatpush2.bf16.msra.mxu0 0
        %2183 = vmatprep.subr.bf16.mxu0 0
        %2184 = vmatpush2.bf16.msra.mxu0 0
        %2185 = vmatprep.subr.bf16.mxu0 0
        %2186 = vmatpush2.bf16.msra.mxu0 0
        %2187 = vmatprep.subr.bf16.mxu0 0
        %2188 = vmatpush2.bf16.msra.mxu0 0
        %2189 = vmatprep.subr.bf16.mxu0 0
        %2190 = vmatpush2.bf16.msra.mxu0 0
        %2191 = vmatprep.subr.bf16.mxu0 0
        %2192 = vmatpush2.bf16.msra.mxu0 0
        %2193 = vmatprep.subr.bf16.mxu0 0
        %2194 = vmatpush2.bf16.msra.mxu0 0
        %2195 = vmatprep.mubr.bf16.mxu0 0
        %2196 = vmatmul.mubr.bf16.gmra.mxu0 %v2097
        %v2197 = vpop.f32.mrf.mxu0
        %v2198 = vadd.f32 0.0, %v2197
        %v2199 = vpop.f32.mrf.mxu0
        %v2200 = vpop.f32.mrf.mxu0
        %v2201 = vadd.f32 0.0, %v2200
        %v2202 = vpop.f32.mrf.mxu0
        %2203 = vmatprep.mubr.bf16.mxu0 0
        %2204 = vmatmul.mubr.bf16.gmra.mxu0 %v2099
        %v2205 = vpop.f32.mrf.mxu0
        %v2206 = vadd.f32 0.0, %v2205
        %v2207 = vpop.f32.mrf.mxu0
        %v2208 = vpop.f32.mrf.mxu0
        %v2209 = vadd.f32 0.0, %v2208
        %v2210 = vpop.f32.mrf.mxu0
        %2211 = vmatprep.mubr.bf16.mxu0 0
        %2212 = vmatmul.mubr.bf16.gmra.mxu0 %v2101
        %v2213 = vpop.f32.mrf.mxu0
        %v2214 = vadd.f32 0.0, %v2213
        %v2215 = vpop.f32.mrf.mxu0
        %v2216 = vpop.f32.mrf.mxu0
        %v2217 = vadd.f32 0.0, %v2216
        %v2218 = vpop.f32.mrf.mxu0
        %2219 = vmatprep.mubr.bf16.mxu0 0
        %2220 = vmatmul.mubr.bf16.gmra.mxu0 %v2103
        %v2221 = vpop.f32.mrf.mxu0
        %v2222 = vadd.f32 0.0, %v2221
        %v2223 = vpop.f32.mrf.mxu0
        %v2224 = vpop.f32.mrf.mxu0
        %v2225 = vadd.f32 0.0, %v2224
        %v2226 = vpop.f32.mrf.mxu0
        %2227 = vmatprep.mubr.bf16.mxu0 0
        %2228 = vmatmul.mubr.bf16.gmra.mxu0 %v2105
        %v2229 = vpop.f32.mrf.mxu0
        %v2230 = vadd.f32 0.0, %v2229
        %v2231 = vpop.f32.mrf.mxu0
        %v2232 = vpop.f32.mrf.mxu0
        %v2233 = vadd.f32 0.0, %v2232
        %v2234 = vpop.f32.mrf.mxu0
        %2235 = vmatprep.mubr.bf16.mxu0 0
        %2236 = vmatmul.mubr.bf16.gmra.mxu0 %v2107
        %v2237 = vpop.f32.mrf.mxu0
        %v2238 = vadd.f32 0.0, %v2237
        %v2239 = vpop.f32.mrf.mxu0
        %v2240 = vpop.f32.mrf.mxu0
        %v2241 = vadd.f32 0.0, %v2240
        %v2242 = vpop.f32.mrf.mxu0
        %2243 = vmatprep.mubr.bf16.mxu0 0
        %2244 = vmatmul.mubr.bf16.gmra.mxu0 %v2106
        %v2245 = vpop.f32.mrf.mxu0
        %v2246 = vadd.f32 0.0, %v2245
        %v2247 = vpop.f32.mrf.mxu0
        %v2248 = vpop.f32.mrf.mxu0
        %v2249 = vpop.f32.mrf.mxu0
        %2250 = vdwg.mxu0
        %v2251 = vadd.f32 %v2016, %v2198
        %v2252 = vadd.f32 %v2017, %v2201
        %v2253 = vadd.f32 %v2018, %v2206
        %v2254 = vadd.f32 %v2019, %v2209
        %v2255 = vadd.f32 %v2020, %v2214
        %v2256 = vadd.f32 %v2021, %v2217
        %v2257 = vadd.f32 %v2022, %v2222
        %v2258 = vadd.f32 %v2023, %v2225
        %v2259 = vadd.f32 %v2024, %v2230
        %v2260 = vadd.f32 %v2025, %v2233
        %v2261 = vadd.f32 %v2026, %v2238
        %v2262 = vadd.f32 %v2027, %v2241
        %v2263 = vadd.f32 %v2028, %v2246
        %v2264 = vld [vmem:[%s338 + $0x38] sm:$0x3]
        %s2265 = scalar_lea.vmem [#allocation6], 512
        %v2266 = vld [vmem:[%s2265] sm:$0xf]
        %v2267 = vld [vmem:[%s2265 + $0x4] sm:$0xf]
        %v2268 = vld [vmem:[%s2265 + $0x8] sm:$0xf]
        %v2269 = vld [vmem:[%s2265 + $0xc] sm:$0xf]
        %v2270 = vld [vmem:[%s2265 + $0x10] sm:$0xf]
        %v2271 = vld [vmem:[%s2265 + $0x14] sm:$0xf]
        %v2272 = vld [vmem:[%s2265 + $0x18] sm:$0xf]
        %v2273 = vld [vmem:[%s2265 + $0x1c] sm:$0xf]
        %v2274 = vld [vmem:[%s2265 + $0x20] sm:$0xf]
        %v2275 = vld [vmem:[%s2265 + $0x24] sm:$0xf]
        %v2276 = vld [vmem:[%s2265 + $0x28] sm:$0xf]
        %v2277 = vld [vmem:[%s2265 + $0x2c] sm:$0xf]
        %v2278 = vld [vmem:[%s2265 + $0x30] sm:$0xf]
        %v2279 = vld [vmem:[%s2265 + $0x34] sm:$0xf]
        %v2280 = vld [vmem:[%s2265 + $0x38] sm:$0xf]
        %v2281 = vld [vmem:[%s2265 + $0x3c] sm:$0xf]
        %v2283 = vunpack.c.l.b16 %v2264
        %v2284 = vpack.c.b16 %v2283, %v1850
        %vm2285 = vsmask.f32 6400
        %v2287 = vshrl.u32 %v1852, 16
        %v2289 = vrot.slane %v2287, 1
        %v2290 = vshll.u32 %v1852, 16
        %v2292 = vrot.slane %v2290, 2
        %v2293 = vor.u32 %v2289, %v2292
        %v2295 = vshrl.u32 %v1853, 16
        %v2297 = vrot.slane %v2295, 1
        %v2298 = vshll.u32 %v1853, 16
        %v2300 = vrot.slane %v2298, 2
        %v2301 = vor.u32 %v2297, %v2300
        %v2302 = vsel %vm2285, %v2293, %v2301
        %v2304 = vshrl.u32 %v1854, 16
        %v2306 = vrot.slane %v2304, 1
        %v2307 = vshll.u32 %v1854, 16
        %v2309 = vrot.slane %v2307, 2
        %v2310 = vor.u32 %v2306, %v2309
        %v2311 = vsel %vm2285, %v2301, %v2310
        %v2313 = vshrl.u32 %v1855, 16
        %v2315 = vrot.slane %v2313, 1
        %v2316 = vshll.u32 %v1855, 16
        %v2318 = vrot.slane %v2316, 2
        %v2319 = vor.u32 %v2315, %v2318
        %v2320 = vsel %vm2285, %v2310, %v2319
        %v2322 = vshrl.u32 %v1856, 16
        %v2324 = vrot.slane %v2322, 1
        %v2325 = vshll.u32 %v1856, 16
        %v2327 = vrot.slane %v2325, 2
        %v2328 = vor.u32 %v2324, %v2327
        %v2329 = vsel %vm2285, %v2319, %v2328
        %v2331 = vshrl.u32 %v1857, 16
        %v2333 = vrot.slane %v2331, 1
        %v2334 = vshll.u32 %v1857, 16
        %v2336 = vrot.slane %v2334, 2
        %v2337 = vor.u32 %v2333, %v2336
        %v2338 = vsel %vm2285, %v2328, %v2337
        %v2340 = vshrl.u32 %v2284, 16
        %v2342 = vrot.slane %v2340, 1
        %v2343 = vshll.u32 %v2284, 16
        %v2345 = vrot.slane %v2343, 2
        %v2346 = vor.u32 %v2342, %v2345
        %v2347 = vsel %vm2285, %v2337, %v2346
        %v2371 = vunpack.c.l.b16 %v2266
        %v2372 = vunpack.c.l.b16 %v2267
        %v2373 = vunpack.c.l.b16 %v2268
        %v2374 = vunpack.c.l.b16 %v2269
        %v2375 = vunpack.c.l.b16 %v2270
        %v2376 = vunpack.c.l.b16 %v2271
        %v2377 = vunpack.c.l.b16 %v2272
        %v2378 = vunpack.c.l.b16 %v2273
        %v2379 = vunpack.c.l.b16 %v2274
        %v2380 = vunpack.c.l.b16 %v2275
        %v2381 = vunpack.c.l.b16 %v2276
        %v2382 = vunpack.c.l.b16 %v2277
        %v2383 = vunpack.c.l.b16 %v2278
        %v2384 = vunpack.c.l.b16 %v2279
        %v2385 = vunpack.c.l.b16 %v2280
        %v2386 = vunpack.c.l.b16 %v2281
        %v2387 = vpack.c.b16 %v2372, %v2371
        %v2388 = vpack.c.b16 %v2374, %v2373
        %v2389 = vpack.c.b16 %v2376, %v2375
        %v2390 = vpack.c.b16 %v2378, %v2377
        %v2391 = vpack.c.b16 %v2380, %v2379
        %v2392 = vpack.c.b16 %v2382, %v2381
        %v2393 = vpack.c.b16 %v2384, %v2383
        %v2394 = vpack.c.b16 %v2386, %v2385
        %2403 = vmatprep.subr.bf16.mxu0 0
        %2404 = vmatpush1.bf16.msra.mxu0 %v2394
        %2405 = vmatprep.subr.bf16.mxu0 0
        %2406 = vmatpush1.bf16.msra.mxu0 %v2393
        %2407 = vmatprep.subr.bf16.mxu0 0
        %2408 = vmatpush1.bf16.msra.mxu0 %v2392
        %2409 = vmatprep.subr.bf16.mxu0 0
        %2410 = vmatpush1.bf16.msra.mxu0 %v2391
        %2411 = vmatprep.subr.bf16.mxu0 0
        %2412 = vmatpush1.bf16.msra.mxu0 %v2390
        %2413 = vmatprep.subr.bf16.mxu0 0
        %2414 = vmatpush1.bf16.msra.mxu0 %v2389
        %2415 = vmatprep.subr.bf16.mxu0 0
        %2416 = vmatpush1.bf16.msra.mxu0 %v2388
        %2417 = vmatprep.subr.bf16.mxu0 0
        %2418 = vmatpush1.bf16.msra.mxu0 %v2387
        %2419 = vmatprep.subr.bf16.mxu0 0
        %2420 = vmatpush2.bf16.msra.mxu0 0
        %2421 = vmatprep.subr.bf16.mxu0 0
        %2422 = vmatpush2.bf16.msra.mxu0 0
        %2423 = vmatprep.subr.bf16.mxu0 0
        %2424 = vmatpush2.bf16.msra.mxu0 0
        %2425 = vmatprep.subr.bf16.mxu0 0
        %2426 = vmatpush2.bf16.msra.mxu0 0
        %2427 = vmatprep.subr.bf16.mxu0 0
        %2428 = vmatpush2.bf16.msra.mxu0 0
        %2429 = vmatprep.subr.bf16.mxu0 0
        %2430 = vmatpush2.bf16.msra.mxu0 0
        %2431 = vmatprep.subr.bf16.mxu0 0
        %2432 = vmatpush2.bf16.msra.mxu0 0
        %2433 = vmatprep.subr.bf16.mxu0 0
        %2434 = vmatpush2.bf16.msra.mxu0 0
        %2435 = vmatprep.mubr.bf16.mxu0 0
        %2436 = vmatmul.mubr.bf16.gmra.mxu0 %v2302
        %v2437 = vpop.f32.mrf.mxu0
        %v2438 = vadd.f32 0.0, %v2437
        %v2439 = vpop.f32.mrf.mxu0
        %v2440 = vpop.f32.mrf.mxu0
        %v2441 = vadd.f32 0.0, %v2440
        %v2442 = vpop.f32.mrf.mxu0
        %2443 = vmatprep.mubr.bf16.mxu0 0
        %2444 = vmatmul.mubr.bf16.gmra.mxu0 %v2311
        %v2445 = vpop.f32.mrf.mxu0
        %v2446 = vadd.f32 0.0, %v2445
        %v2447 = vpop.f32.mrf.mxu0
        %v2448 = vpop.f32.mrf.mxu0
        %v2449 = vadd.f32 0.0, %v2448
        %v2450 = vpop.f32.mrf.mxu0
        %2451 = vmatprep.mubr.bf16.mxu0 0
        %2452 = vmatmul.mubr.bf16.gmra.mxu0 %v2320
        %v2453 = vpop.f32.mrf.mxu0
        %v2454 = vadd.f32 0.0, %v2453
        %v2455 = vpop.f32.mrf.mxu0
        %v2456 = vpop.f32.mrf.mxu0
        %v2457 = vadd.f32 0.0, %v2456
        %v2458 = vpop.f32.mrf.mxu0
        %2459 = vmatprep.mubr.bf16.mxu0 0
        %2460 = vmatmul.mubr.bf16.gmra.mxu0 %v2329
        %v2461 = vpop.f32.mrf.mxu0
        %v2462 = vadd.f32 0.0, %v2461
        %v2463 = vpop.f32.mrf.mxu0
        %v2464 = vpop.f32.mrf.mxu0
        %v2465 = vadd.f32 0.0, %v2464
        %v2466 = vpop.f32.mrf.mxu0
        %2467 = vmatprep.mubr.bf16.mxu0 0
        %2468 = vmatmul.mubr.bf16.gmra.mxu0 %v2338
        %v2469 = vpop.f32.mrf.mxu0
        %v2470 = vadd.f32 0.0, %v2469
        %v2471 = vpop.f32.mrf.mxu0
        %v2472 = vpop.f32.mrf.mxu0
        %v2473 = vadd.f32 0.0, %v2472
        %v2474 = vpop.f32.mrf.mxu0
        %2475 = vmatprep.mubr.bf16.mxu0 0
        %2476 = vmatmul.mubr.bf16.gmra.mxu0 %v2347
        %v2477 = vpop.f32.mrf.mxu0
        %v2478 = vadd.f32 0.0, %v2477
        %v2479 = vpop.f32.mrf.mxu0
        %v2480 = vpop.f32.mrf.mxu0
        %v2481 = vadd.f32 0.0, %v2480
        %v2482 = vpop.f32.mrf.mxu0
        %2483 = vmatprep.mubr.bf16.mxu0 0
        %2484 = vmatmul.mubr.bf16.gmra.mxu0 %v2346
        %v2485 = vpop.f32.mrf.mxu0
        %v2486 = vadd.f32 0.0, %v2485
        %v2487 = vpop.f32.mrf.mxu0
        %v2488 = vpop.f32.mrf.mxu0
        %v2489 = vpop.f32.mrf.mxu0
        %2490 = vdwg.mxu0
        %v2491 = vadd.f32 %v2251, %v2438
        %v2492 = vadd.f32 %v2252, %v2441
        %v2493 = vadd.f32 %v2253, %v2446
        %v2494 = vadd.f32 %v2254, %v2449
        %v2495 = vadd.f32 %v2255, %v2454
        %v2496 = vadd.f32 %v2256, %v2457
        %v2497 = vadd.f32 %v2257, %v2462
        %v2498 = vadd.f32 %v2258, %v2465
        %v2499 = vadd.f32 %v2259, %v2470
        %v2500 = vadd.f32 %v2260, %v2473
        %v2501 = vadd.f32 %v2261, %v2478
        %v2502 = vadd.f32 %v2262, %v2481
        %v2503 = vadd.f32 %v2263, %v2486
        %v2504 = vld [vmem:[%s2] sm:$0x1]
        %v2506 = vlaneseq
        %v2507 = vshrl.u32 %v2506, 7
        %v2508 = vsub.s32 0, %v2507
        %v2509 = vrot.slane %v2504, %v2508
        %v2511 = vadd.f32 %v2491, %v2509
        %v2512 = vadd.f32 %v2492, %v2509
        %v2513 = vadd.f32 %v2493, %v2509
        %v2514 = vadd.f32 %v2494, %v2509
        %v2515 = vadd.f32 %v2495, %v2509
        %v2516 = vadd.f32 %v2496, %v2509
        %v2517 = vadd.f32 %v2497, %v2509
        %v2518 = vadd.f32 %v2498, %v2509
        %v2519 = vadd.f32 %v2499, %v2509
        %v2520 = vadd.f32 %v2500, %v2509
        %v2521 = vadd.f32 %v2501, %v2509
        %v2522 = vadd.f32 %v2502, %v2509
        %v2523 = vadd.f32 %v2503, %v2509
        %v2524 = vmax.f32 %v2511, 0.0
        %v2525 = vmax.f32 %v2512, 0.0
        %v2526 = vmax.f32 %v2513, 0.0
        %v2527 = vmax.f32 %v2514, 0.0
        %v2528 = vmax.f32 %v2515, 0.0
        %v2529 = vmax.f32 %v2516, 0.0
        %v2530 = vmax.f32 %v2517, 0.0
        %v2531 = vmax.f32 %v2518, 0.0
        %v2532 = vmax.f32 %v2519, 0.0
        %v2533 = vmax.f32 %v2520, 0.0
        %v2534 = vmax.f32 %v2521, 0.0
        %v2535 = vmax.f32 %v2522, 0.0
        %v2536 = vmax.f32 %v2523, 0.0
        %v2537 = vlaneseq
        %v2538 = vshrl.u32 %v2537, 7
        %v2539 = vadd.s32 %v2538, 8
        %v2540 = vadd.s32 %v2538, 16
        %v2541 = vadd.s32 %v2538, 24
        %v2542 = vadd.s32 %v2538, 32
        %v2543 = vadd.s32 %v2538, 40
        %v2544 = vadd.s32 %v2538, 48
        %v2545 = vadd.s32 %v2538, 56
        %v2546 = vadd.s32 %v2538, 64
        %v2547 = vadd.s32 %v2538, 72
        %v2548 = vadd.s32 %v2538, 80
        %v2549 = vadd.s32 %v2538, 88
        %v2550 = vadd.s32 %v2538, 96
        %s2551 = ssub.s32 1, %s385
        %s2552 = smul.u32 %s2551, 10
        %v2553 = vstv %s2552
        %vm2554 = vcmp.ge.s32.totalorder %v2538, %v2553
        %vm2555 = vcmp.ge.s32.totalorder %v2539, %v2553
        %vm2556 = vcmp.ge.s32.totalorder %v2540, %v2553
        %vm2557 = vcmp.ge.s32.totalorder %v2541, %v2553
        %vm2558 = vcmp.ge.s32.totalorder %v2542, %v2553
        %vm2559 = vcmp.ge.s32.totalorder %v2543, %v2553
        %vm2560 = vcmp.ge.s32.totalorder %v2544, %v2553
        %vm2561 = vcmp.ge.s32.totalorder %v2545, %v2553
        %vm2562 = vcmp.ge.s32.totalorder %v2546, %v2553
        %vm2563 = vcmp.ge.s32.totalorder %v2547, %v2553
        %vm2564 = vcmp.ge.s32.totalorder %v2548, %v2553
        %vm2565 = vcmp.ge.s32.totalorder %v2549, %v2553
        %vm2566 = vcmp.ge.s32.totalorder %v2550, %v2553
        %s2567 = ssub.s32 9, %s385
        %s2568 = smul.u32 %s2567, 10
        %v2569 = vstv %s2568
        %vm2570 = vcmp.lt.s32.totalorder %v2538, %v2569
        %vm2571 = vcmp.lt.s32.totalorder %v2539, %v2569
        %vm2572 = vcmp.lt.s32.totalorder %v2540, %v2569
        %vm2573 = vcmp.lt.s32.totalorder %v2541, %v2569
        %vm2574 = vcmp.lt.s32.totalorder %v2542, %v2569
        %vm2575 = vcmp.lt.s32.totalorder %v2543, %v2569
        %vm2576 = vcmp.lt.s32.totalorder %v2544, %v2569
        %vm2577 = vcmp.lt.s32.totalorder %v2545, %v2569
        %vm2578 = vcmp.lt.s32.totalorder %v2546, %v2569
        %vm2579 = vcmp.lt.s32.totalorder %v2547, %v2569
        %vm2580 = vcmp.lt.s32.totalorder %v2548, %v2569
        %vm2581 = vcmp.lt.s32.totalorder %v2549, %v2569
        %vm2582 = vcmp.lt.s32.totalorder %v2550, %v2569
        %vm2583 = vmand %vm2554, %vm2570
        %vm2584 = vmand %vm2555, %vm2571
        %vm2585 = vmand %vm2556, %vm2572
        %vm2586 = vmand %vm2557, %vm2573
        %vm2587 = vmand %vm2558, %vm2574
        %vm2588 = vmand %vm2559, %vm2575
        %vm2589 = vmand %vm2560, %vm2576
        %vm2590 = vmand %vm2561, %vm2577
        %vm2591 = vmand %vm2562, %vm2578
        %vm2592 = vmand %vm2563, %vm2579
        %vm2593 = vmand %vm2564, %vm2580
        %vm2594 = vmand %vm2565, %vm2581
        %vm2595 = vmand %vm2566, %vm2582
        %v2596 = vsel %vm2583, 1, 0
        %v2597 = vsel %vm2584, 1, 0
        %v2598 = vsel %vm2585, 1, 0
        %v2599 = vsel %vm2586, 1, 0
        %v2600 = vsel %vm2587, 1, 0
        %v2601 = vsel %vm2588, 1, 0
        %v2602 = vsel %vm2589, 1, 0
        %v2603 = vsel %vm2590, 1, 0
        %v2604 = vsel %vm2591, 1, 0
        %v2605 = vsel %vm2592, 1, 0
        %v2606 = vsel %vm2593, 1, 0
        %v2607 = vsel %vm2594, 1, 0
        %v2608 = vsel %vm2595, 1, 0
        %vm2609 = vcmp.eq.s32.totalorder %v2596, 1
        %vm2610 = vcmp.eq.s32.totalorder %v2597, 1
        %vm2611 = vcmp.eq.s32.totalorder %v2598, 1
        %vm2612 = vcmp.eq.s32.totalorder %v2599, 1
        %vm2613 = vcmp.eq.s32.totalorder %v2600, 1
        %vm2614 = vcmp.eq.s32.totalorder %v2601, 1
        %vm2615 = vcmp.eq.s32.totalorder %v2602, 1
        %vm2616 = vcmp.eq.s32.totalorder %v2603, 1
        %vm2617 = vcmp.eq.s32.totalorder %v2604, 1
        %vm2618 = vcmp.eq.s32.totalorder %v2605, 1
        %vm2619 = vcmp.eq.s32.totalorder %v2606, 1
        %vm2620 = vcmp.eq.s32.totalorder %v2607, 1
        %vm2621 = vcmp.eq.s32.totalorder %v2608, 1
        %v2622 = vsel %vm2609, %v2524, 0.0
        %v2623 = vsel %vm2610, %v2525, 0.0
        %v2624 = vsel %vm2611, %v2526, 0.0
        %v2625 = vsel %vm2612, %v2527, 0.0
        %v2626 = vsel %vm2613, %v2528, 0.0
        %v2627 = vsel %vm2614, %v2529, 0.0
        %v2628 = vsel %vm2615, %v2530, 0.0
        %v2629 = vsel %vm2616, %v2531, 0.0
        %v2630 = vsel %vm2617, %v2532, 0.0
        %v2631 = vsel %vm2618, %v2533, 0.0
        %v2632 = vsel %vm2619, %v2534, 0.0
        %v2633 = vsel %vm2620, %v2535, 0.0
        %v2634 = vsel %vm2621, %v2536, 0.0
        %v2635 = vld [vmem:[%s5] sm:$0xff]
        %v2636 = vld [vmem:[%s5 + $0x8] sm:$0xff]
        %v2637 = vld [vmem:[%s5 + $0x10] sm:$0xff]
        %v2638 = vld [vmem:[%s5 + $0x18] sm:$0xff]
        %v2639 = vld [vmem:[%s5 + $0x20] sm:$0xff]
        %v2640 = vld [vmem:[%s5 + $0x28] sm:$0xff]
        %v2641 = vld [vmem:[%s5 + $0x30] sm:$0xff]
        %v2642 = vld [vmem:[%s5 + $0x38] sm:$0xff]
        %v2643 = vld [vmem:[%s5 + $0x40] sm:$0xff]
        %v2644 = vld [vmem:[%s5 + $0x48] sm:$0xff]
        %v2645 = vld [vmem:[%s5 + $0x50] sm:$0xff]
        %v2646 = vld [vmem:[%s5 + $0x58] sm:$0xff]
        %v2647 = vld [vmem:[%s5 + $0x60] sm:$0xff]
        %2649 = vset.pattern.permute.xlu0 0
        %2650 = vperm.xlu0 %2649, %v2635
        %v2651 = vpop.permute.xlu0 %2650
        %2654 = vset.pattern.permute.xlu0 0
        %2655 = vperm.xlu0 %2654, %v2636
        %v2656 = vpop.permute.xlu0 %2655
        %2659 = vset.pattern.permute.xlu0 0
        %2660 = vperm.xlu0 %2659, %v2637
        %v2661 = vpop.permute.xlu0 %2660
        %2664 = vset.pattern.permute.xlu0 0
        %2665 = vperm.xlu0 %2664, %v2638
        %v2666 = vpop.permute.xlu0 %2665
        %2669 = vset.pattern.permute.xlu0 0
        %2670 = vperm.xlu0 %2669, %v2639
        %v2671 = vpop.permute.xlu0 %2670
        %2674 = vset.pattern.permute.xlu0 0
        %2675 = vperm.xlu0 %2674, %v2640
        %v2676 = vpop.permute.xlu0 %2675
        %2679 = vset.pattern.permute.xlu0 0
        %2680 = vperm.xlu0 %2679, %v2641
        %v2681 = vpop.permute.xlu0 %2680
        %2684 = vset.pattern.permute.xlu0 0
        %2685 = vperm.xlu0 %2684, %v2642
        %v2686 = vpop.permute.xlu0 %2685
        %2689 = vset.pattern.permute.xlu0 0
        %2690 = vperm.xlu0 %2689, %v2643
        %v2691 = vpop.permute.xlu0 %2690
        %2694 = vset.pattern.permute.xlu0 0
        %2695 = vperm.xlu0 %2694, %v2644
        %v2696 = vpop.permute.xlu0 %2695
        %2699 = vset.pattern.permute.xlu0 0
        %2700 = vperm.xlu0 %2699, %v2645
        %v2701 = vpop.permute.xlu0 %2700
        %2704 = vset.pattern.permute.xlu0 0
        %2705 = vperm.xlu0 %2704, %v2646
        %v2706 = vpop.permute.xlu0 %2705
        %2709 = vset.pattern.permute.xlu0 0
        %2710 = vperm.xlu0 %2709, %v2647
        %v2711 = vpop.permute.xlu0 %2710
        %v2713 = vmul.f32 %v2622, %v2651
        %v2714 = vmul.f32 %v2623, %v2656
        %v2715 = vmul.f32 %v2624, %v2661
        %v2716 = vmul.f32 %v2625, %v2666
        %v2717 = vmul.f32 %v2626, %v2671
        %v2718 = vmul.f32 %v2627, %v2676
        %v2719 = vmul.f32 %v2628, %v2681
        %v2720 = vmul.f32 %v2629, %v2686
        %v2721 = vmul.f32 %v2630, %v2691
        %v2722 = vmul.f32 %v2631, %v2696
        %v2723 = vmul.f32 %v2632, %v2701
        %v2724 = vmul.f32 %v2633, %v2706
        %v2725 = vmul.f32 %v2634, %v2711
        %v2726 = vpack.c.bf16 %v2714, %v2713
        %v2727 = vpack.c.bf16 %v2716, %v2715
        %v2728 = vpack.c.bf16 %v2718, %v2717
        %v2729 = vpack.c.bf16 %v2720, %v2719
        %v2730 = vpack.c.bf16 %v2722, %v2721
        %v2731 = vpack.c.bf16 %v2724, %v2723
        %v2732 = vpack.c.bf16 %v2725, %v2725
        %v2740 = vunpack.c.l.b16 %v2726
        %v2741 = vunpack.c.h.b16 %v2726
        %v2742 = vunpack.c.l.b16 %v2727
        %v2743 = vunpack.c.h.b16 %v2727
        %v2744 = vunpack.c.l.b16 %v2728
        %v2745 = vunpack.c.h.b16 %v2728
        %v2746 = vunpack.c.l.b16 %v2729
        %v2747 = vunpack.c.h.b16 %v2729
        %v2748 = vunpack.c.l.b16 %v2730
        %v2749 = vunpack.c.h.b16 %v2730
        %v2750 = vunpack.c.l.b16 %v2731
        %v2751 = vunpack.c.h.b16 %v2731
        %v2752 = vunpack.c.l.b16 %v2732
        %v2753 = vpack.c.b16 %v2740, %v2740
        %v2754 = vpack.c.b16 %v2741, %v2741
        %v2755 = vpack.c.b16 %v2742, %v2742
        %v2756 = vpack.c.b16 %v2743, %v2743
        %v2757 = vpack.c.b16 %v2744, %v2744
        %v2758 = vpack.c.b16 %v2745, %v2745
        %v2759 = vpack.c.b16 %v2746, %v2746
        %v2760 = vpack.c.b16 %v2747, %v2747
        %v2761 = vpack.c.b16 %v2748, %v2748
        %v2762 = vpack.c.b16 %v2749, %v2749
        %v2763 = vpack.c.b16 %v2750, %v2750
        %v2764 = vpack.c.b16 %v2751, %v2751
        %v2765 = vpack.c.b16 %v2752, %v2752
        %2779 = vst [vmem:[#allocation2] sm:$0xf] %v2753
        %2780 = vst [vmem:[#allocation2 + $0x4] sm:$0xf] %v2754
        %2781 = vst [vmem:[#allocation2 + $0x8] sm:$0xf] %v2755
        %2782 = vst [vmem:[#allocation2 + $0xc] sm:$0xf] %v2756
        %2783 = vst [vmem:[#allocation2 + $0x10] sm:$0xf] %v2757
        %2784 = vst [vmem:[#allocation2 + $0x14] sm:$0xf] %v2758
        %2785 = vst [vmem:[#allocation2 + $0x18] sm:$0xf] %v2759
        %2786 = vst [vmem:[#allocation2 + $0x1c] sm:$0xf] %v2760
        %2787 = vst [vmem:[#allocation2 + $0x20] sm:$0xf] %v2761
        %2788 = vst [vmem:[#allocation2 + $0x24] sm:$0xf] %v2762
        %2789 = vst [vmem:[#allocation2 + $0x28] sm:$0xf] %v2763
        %2790 = vst [vmem:[#allocation2 + $0x2c] sm:$0xf] %v2764
        %2791 = vst [vmem:[#allocation2 + $0x30] sm:$0xf] %v2765
        %v2792 = vld [vmem:[#allocation2] sm:$0xf]
        %v2793 = vld [vmem:[#allocation2 + $0x4] sm:$0xf]
        %v2794 = vld [vmem:[#allocation2 + $0x8] sm:$0xf]
        %v2795 = vld [vmem:[#allocation2 + $0xc] sm:$0xf]
        %v2796 = vld [vmem:[#allocation2 + $0x10] sm:$0xf]
        %v2797 = vld [vmem:[#allocation2 + $0x14] sm:$0xf]
        %v2798 = vld [vmem:[#allocation2 + $0x18] sm:$0xf]
        %v2799 = vld [vmem:[#allocation2 + $0x1c] sm:$0xf]
        %v2800 = vld [vmem:[#allocation2 + $0x20] sm:$0xf]
        %v2801 = vld [vmem:[#allocation2 + $0x24] sm:$0xf]
        %v2802 = vld [vmem:[#allocation8] sm:$0xf]
        %v2803 = vld [vmem:[#allocation8 + $0x4] sm:$0xf]
        %v2804 = vld [vmem:[#allocation8 + $0x8] sm:$0xf]
        %v2805 = vld [vmem:[#allocation8 + $0xc] sm:$0xf]
        %v2806 = vld [vmem:[#allocation8 + $0x10] sm:$0xf]
        %v2807 = vld [vmem:[#allocation8 + $0x14] sm:$0xf]
        %v2808 = vld [vmem:[#allocation8 + $0x18] sm:$0xf]
        %v2809 = vld [vmem:[#allocation8 + $0x1c] sm:$0xf]
        %v2810 = vld [vmem:[#allocation8 + $0x20] sm:$0xf]
        %v2811 = vld [vmem:[#allocation8 + $0x24] sm:$0xf]
        %v2812 = vld [vmem:[#allocation8 + $0x28] sm:$0xf]
        %v2813 = vld [vmem:[#allocation8 + $0x2c] sm:$0xf]
        %v2814 = vld [vmem:[#allocation8 + $0x30] sm:$0xf]
        %v2815 = vld [vmem:[#allocation8 + $0x34] sm:$0xf]
        %v2816 = vld [vmem:[#allocation8 + $0x38] sm:$0xf]
        %v2817 = vld [vmem:[#allocation8 + $0x3c] sm:$0xf]
        %v2818 = vld [vmem:[#allocation2 + $0x28] sm:$0x1]
        %s2819 = scalar_lea.vmem [#allocation8], 64
        %v2820 = vld [vmem:[%s2819] sm:$0xf]
        %v2821 = vld [vmem:[%s2819 + $0x4] sm:$0xf]
        %v2822 = vld [vmem:[%s2819 + $0x8] sm:$0xf]
        %v2823 = vld [vmem:[%s2819 + $0xc] sm:$0xf]
        %v2824 = vld [vmem:[%s2819 + $0x10] sm:$0xf]
        %v2825 = vld [vmem:[%s2819 + $0x14] sm:$0xf]
        %v2826 = vld [vmem:[%s2819 + $0x18] sm:$0xf]
        %v2827 = vld [vmem:[%s2819 + $0x1c] sm:$0xf]
        %v2828 = vld [vmem:[%s2819 + $0x20] sm:$0xf]
        %v2829 = vld [vmem:[%s2819 + $0x24] sm:$0xf]
        %v2830 = vld [vmem:[%s2819 + $0x28] sm:$0xf]
        %v2831 = vld [vmem:[%s2819 + $0x2c] sm:$0xf]
        %v2832 = vld [vmem:[%s2819 + $0x30] sm:$0xf]
        %v2833 = vld [vmem:[%s2819 + $0x34] sm:$0xf]
        %v2834 = vld [vmem:[%s2819 + $0x38] sm:$0xf]
        %v2835 = vld [vmem:[%s2819 + $0x3c] sm:$0xf]
        %v2847 = vunpack.c.l.b16 %v2792
        %v2848 = vunpack.c.l.b16 %v2793
        %v2849 = vunpack.c.l.b16 %v2794
        %v2850 = vunpack.c.l.b16 %v2795
        %v2851 = vunpack.c.l.b16 %v2796
        %v2852 = vunpack.c.l.b16 %v2797
        %v2853 = vunpack.c.l.b16 %v2798
        %v2854 = vunpack.c.l.b16 %v2799
        %v2855 = vunpack.c.l.b16 %v2800
        %v2856 = vunpack.c.l.b16 %v2801
        %v2857 = vunpack.c.l.b16 %v2818
        %v2858 = vpack.c.b16 %v2848, %v2847
        %v2859 = vpack.c.b16 %v2850, %v2849
        %v2860 = vpack.c.b16 %v2852, %v2851
        %v2861 = vpack.c.b16 %v2854, %v2853
        %v2862 = vpack.c.b16 %v2856, %v2855
        %v2863 = vpack.c.b16 %v2857, %v2857
        %v2865 = vshrl.u32 %v2858, 16
        %v2867 = vshll.u32 %v2858, 16
        %v2869 = vrot.slane %v2867, 1
        %v2870 = vor.u32 %v2865, %v2869
        %v2872 = vshll.u32 %v2859, 16
        %v2874 = vrot.slane %v2872, 1
        %v2875 = vsel %vm864, %v2870, %v2874
        %v2876 = vshrl.u32 %v2859, 16
        %v2878 = vor.u32 %v2876, %v2874
        %v2880 = vshll.u32 %v2860, 16
        %v2882 = vrot.slane %v2880, 1
        %v2883 = vsel %vm864, %v2878, %v2882
        %v2884 = vshrl.u32 %v2860, 16
        %v2886 = vor.u32 %v2884, %v2882
        %v2888 = vshll.u32 %v2861, 16
        %v2890 = vrot.slane %v2888, 1
        %v2891 = vsel %vm864, %v2886, %v2890
        %v2892 = vshrl.u32 %v2861, 16
        %v2894 = vor.u32 %v2892, %v2890
        %v2896 = vshll.u32 %v2862, 16
        %v2898 = vrot.slane %v2896, 1
        %v2899 = vsel %vm864, %v2894, %v2898
        %v2900 = vshrl.u32 %v2862, 16
        %v2902 = vor.u32 %v2900, %v2898
        %v2904 = vshll.u32 %v2863, 16
        %v2906 = vrot.slane %v2904, 1
        %v2907 = vsel %vm864, %v2902, %v2906
        %v2929 = vunpack.c.l.b16 %v2820
        %v2930 = vunpack.c.l.b16 %v2821
        %v2931 = vunpack.c.l.b16 %v2822
        %v2932 = vunpack.c.l.b16 %v2823
        %v2933 = vunpack.c.l.b16 %v2824
        %v2934 = vunpack.c.l.b16 %v2825
        %v2935 = vunpack.c.l.b16 %v2826
        %v2936 = vunpack.c.l.b16 %v2827
        %v2937 = vunpack.c.l.b16 %v2828
        %v2938 = vunpack.c.l.b16 %v2829
        %v2939 = vunpack.c.l.b16 %v2830
        %v2940 = vunpack.c.l.b16 %v2831
        %v2941 = vunpack.c.l.b16 %v2832
        %v2942 = vunpack.c.l.b16 %v2833
        %v2943 = vunpack.c.l.b16 %v2834
        %v2944 = vunpack.c.l.b16 %v2835
        %v2945 = vpack.c.b16 %v2930, %v2929
        %v2946 = vpack.c.b16 %v2932, %v2931
        %v2947 = vpack.c.b16 %v2934, %v2933
        %v2948 = vpack.c.b16 %v2936, %v2935
        %v2949 = vpack.c.b16 %v2938, %v2937
        %v2950 = vpack.c.b16 %v2940, %v2939
        %v2951 = vpack.c.b16 %v2942, %v2941
        %v2952 = vpack.c.b16 %v2944, %v2943
        %2961 = vmatprep.subr.bf16.mxu0 0
        %2962 = vmatpush1.bf16.msra.mxu0 %v2952
        %2963 = vmatprep.subr.bf16.mxu0 0
        %2964 = vmatpush1.bf16.msra.mxu0 %v2951
        %2965 = vmatprep.subr.bf16.mxu0 0
        %2966 = vmatpush1.bf16.msra.mxu0 %v2950
        %2967 = vmatprep.subr.bf16.mxu0 0
        %2968 = vmatpush1.bf16.msra.mxu0 %v2949
        %2969 = vmatprep.subr.bf16.mxu0 0
        %2970 = vmatpush1.bf16.msra.mxu0 %v2948
        %2971 = vmatprep.subr.bf16.mxu0 0
        %2972 = vmatpush1.bf16.msra.mxu0 %v2947
        %2973 = vmatprep.subr.bf16.mxu0 0
        %2974 = vmatpush1.bf16.msra.mxu0 %v2946
        %2975 = vmatprep.subr.bf16.mxu0 0
        %2976 = vmatpush1.bf16.msra.mxu0 %v2945
        %2977 = vmatprep.subr.bf16.mxu0 0
        %2978 = vmatpush2.bf16.msra.mxu0 0
        %2979 = vmatprep.subr.bf16.mxu0 0
        %2980 = vmatpush2.bf16.msra.mxu0 0
        %2981 = vmatprep.subr.bf16.mxu0 0
        %2982 = vmatpush2.bf16.msra.mxu0 0
        %2983 = vmatprep.subr.bf16.mxu0 0
        %2984 = vmatpush2.bf16.msra.mxu0 0
        %2985 = vmatprep.subr.bf16.mxu0 0
        %2986 = vmatpush2.bf16.msra.mxu0 0
        %2987 = vmatprep.subr.bf16.mxu0 0
        %2988 = vmatpush2.bf16.msra.mxu0 0
        %2989 = vmatprep.subr.bf16.mxu0 0
        %2990 = vmatpush2.bf16.msra.mxu0 0
        %2991 = vmatprep.subr.bf16.mxu0 0
        %2992 = vmatpush2.bf16.msra.mxu0 0
        %2993 = vmatprep.mubr.bf16.mxu0 0
        %2994 = vmatmul.mubr.bf16.gmra.mxu0 %v2875
        %v2995 = vpop.f32.mrf.mxu0
        %v2996 = vadd.f32 0.0, %v2995
        %v2997 = vpop.f32.mrf.mxu0
        %v2998 = vpop.f32.mrf.mxu0
        %v2999 = vadd.f32 0.0, %v2998
        %v3000 = vpop.f32.mrf.mxu0
        %3001 = vmatprep.mubr.bf16.mxu0 0
        %3002 = vmatmul.mubr.bf16.gmra.mxu0 %v2883
        %v3003 = vpop.f32.mrf.mxu0
        %v3004 = vadd.f32 0.0, %v3003
        %v3005 = vpop.f32.mrf.mxu0
        %v3006 = vpop.f32.mrf.mxu0
        %v3007 = vadd.f32 0.0, %v3006
        %v3008 = vpop.f32.mrf.mxu0
        %3009 = vmatprep.mubr.bf16.mxu0 0
        %3010 = vmatmul.mubr.bf16.gmra.mxu0 %v2891
        %v3011 = vpop.f32.mrf.mxu0
        %v3012 = vadd.f32 0.0, %v3011
        %v3013 = vpop.f32.mrf.mxu0
        %v3014 = vpop.f32.mrf.mxu0
        %v3015 = vadd.f32 0.0, %v3014
        %v3016 = vpop.f32.mrf.mxu0
        %3017 = vmatprep.mubr.bf16.mxu0 0
        %3018 = vmatmul.mubr.bf16.gmra.mxu0 %v2899
        %v3019 = vpop.f32.mrf.mxu0
        %v3020 = vadd.f32 0.0, %v3019
        %v3021 = vpop.f32.mrf.mxu0
        %v3022 = vpop.f32.mrf.mxu0
        %v3023 = vadd.f32 0.0, %v3022
        %v3024 = vpop.f32.mrf.mxu0
        %3025 = vmatprep.mubr.bf16.mxu0 0
        %3026 = vmatmul.mubr.bf16.gmra.mxu0 %v2907
        %v3027 = vpop.f32.mrf.mxu0
        %v3028 = vadd.f32 0.0, %v3027
        %v3029 = vpop.f32.mrf.mxu0
        %v3030 = vpop.f32.mrf.mxu0
        %v3031 = vadd.f32 0.0, %v3030
        %v3032 = vpop.f32.mrf.mxu0
        %3033 = vdwg.mxu0
        %v3055 = vunpack.c.l.b16 %v2802
        %v3056 = vunpack.c.l.b16 %v2803
        %v3057 = vunpack.c.l.b16 %v2804
        %v3058 = vunpack.c.l.b16 %v2805
        %v3059 = vunpack.c.l.b16 %v2806
        %v3060 = vunpack.c.l.b16 %v2807
        %v3061 = vunpack.c.l.b16 %v2808
        %v3062 = vunpack.c.l.b16 %v2809
        %v3063 = vunpack.c.l.b16 %v2810
        %v3064 = vunpack.c.l.b16 %v2811
        %v3065 = vunpack.c.l.b16 %v2812
        %v3066 = vunpack.c.l.b16 %v2813
        %v3067 = vunpack.c.l.b16 %v2814
        %v3068 = vunpack.c.l.b16 %v2815
        %v3069 = vunpack.c.l.b16 %v2816
        %v3070 = vunpack.c.l.b16 %v2817
        %v3071 = vpack.c.b16 %v3056, %v3055
        %v3072 = vpack.c.b16 %v3058, %v3057
        %v3073 = vpack.c.b16 %v3060, %v3059
        %v3074 = vpack.c.b16 %v3062, %v3061
        %v3075 = vpack.c.b16 %v3064, %v3063
        %v3076 = vpack.c.b16 %v3066, %v3065
        %v3077 = vpack.c.b16 %v3068, %v3067
        %v3078 = vpack.c.b16 %v3070, %v3069
        %3087 = vmatprep.subr.bf16.mxu0 0
        %3088 = vmatpush1.bf16.msra.mxu0 %v3078
        %3089 = vmatprep.subr.bf16.mxu0 0
        %3090 = vmatpush1.bf16.msra.mxu0 %v3077
        %3091 = vmatprep.subr.bf16.mxu0 0
        %3092 = vmatpush1.bf16.msra.mxu0 %v3076
        %3093 = vmatprep.subr.bf16.mxu0 0
        %3094 = vmatpush1.bf16.msra.mxu0 %v3075
        %3095 = vmatprep.subr.bf16.mxu0 0
        %3096 = vmatpush1.bf16.msra.mxu0 %v3074
        %3097 = vmatprep.subr.bf16.mxu0 0
        %3098 = vmatpush1.bf16.msra.mxu0 %v3073
        %3099 = vmatprep.subr.bf16.mxu0 0
        %3100 = vmatpush1.bf16.msra.mxu0 %v3072
        %3101 = vmatprep.subr.bf16.mxu0 0
        %3102 = vmatpush1.bf16.msra.mxu0 %v3071
        %3103 = vmatprep.subr.bf16.mxu0 0
        %3104 = vmatpush2.bf16.msra.mxu0 0
        %3105 = vmatprep.subr.bf16.mxu0 0
        %3106 = vmatpush2.bf16.msra.mxu0 0
        %3107 = vmatprep.subr.bf16.mxu0 0
        %3108 = vmatpush2.bf16.msra.mxu0 0
        %3109 = vmatprep.subr.bf16.mxu0 0
        %3110 = vmatpush2.bf16.msra.mxu0 0
        %3111 = vmatprep.subr.bf16.mxu0 0
        %3112 = vmatpush2.bf16.msra.mxu0 0
        %3113 = vmatprep.subr.bf16.mxu0 0
        %3114 = vmatpush2.bf16.msra.mxu0 0
        %3115 = vmatprep.subr.bf16.mxu0 0
        %3116 = vmatpush2.bf16.msra.mxu0 0
        %3117 = vmatprep.subr.bf16.mxu0 0
        %3118 = vmatpush2.bf16.msra.mxu0 0
        %3119 = vmatprep.mubr.bf16.mxu0 0
        %3120 = vmatmul.mubr.bf16.gmra.mxu0 %v2858
        %v3121 = vpop.f32.mrf.mxu0
        %v3122 = vadd.f32 %v2996, %v3121
        %v3123 = vpop.f32.mrf.mxu0
        %v3124 = vpop.f32.mrf.mxu0
        %v3125 = vadd.f32 %v2999, %v3124
        %v3126 = vpop.f32.mrf.mxu0
        %3127 = vmatprep.mubr.bf16.mxu0 0
        %3128 = vmatmul.mubr.bf16.gmra.mxu0 %v2859
        %v3129 = vpop.f32.mrf.mxu0
        %v3130 = vadd.f32 %v3004, %v3129
        %v3131 = vpop.f32.mrf.mxu0
        %v3132 = vpop.f32.mrf.mxu0
        %v3133 = vadd.f32 %v3007, %v3132
        %v3134 = vpop.f32.mrf.mxu0
        %3135 = vmatprep.mubr.bf16.mxu0 0
        %3136 = vmatmul.mubr.bf16.gmra.mxu0 %v2860
        %v3137 = vpop.f32.mrf.mxu0
        %v3138 = vadd.f32 %v3012, %v3137
        %v3139 = vpop.f32.mrf.mxu0
        %v3140 = vpop.f32.mrf.mxu0
        %v3141 = vadd.f32 %v3015, %v3140
        %v3142 = vpop.f32.mrf.mxu0
        %3143 = vmatprep.mubr.bf16.mxu0 0
        %3144 = vmatmul.mubr.bf16.gmra.mxu0 %v2861
        %v3145 = vpop.f32.mrf.mxu0
        %v3146 = vadd.f32 %v3020, %v3145
        %v3147 = vpop.f32.mrf.mxu0
        %v3148 = vpop.f32.mrf.mxu0
        %v3149 = vadd.f32 %v3023, %v3148
        %v3150 = vpop.f32.mrf.mxu0
        %3151 = vmatprep.mubr.bf16.mxu0 0
        %3152 = vmatmul.mubr.bf16.gmra.mxu0 %v2862
        %v3153 = vpop.f32.mrf.mxu0
        %v3154 = vadd.f32 %v3028, %v3153
        %v3155 = vpop.f32.mrf.mxu0
        %v3156 = vpop.f32.mrf.mxu0
        %v3157 = vadd.f32 %v3031, %v3156
        %v3158 = vpop.f32.mrf.mxu0
        %3159 = vdwg.mxu0
        %v3160 = vld [vmem:[#allocation2] sm:$0xe]
        %s3161 = scalar_lea.vmem [#allocation8], 128
        %v3162 = vld [vmem:[%s3161] sm:$0xf]
        %v3163 = vld [vmem:[%s3161 + $0x4] sm:$0xf]
        %v3164 = vld [vmem:[%s3161 + $0x8] sm:$0xf]
        %v3165 = vld [vmem:[%s3161 + $0xc] sm:$0xf]
        %v3166 = vld [vmem:[%s3161 + $0x10] sm:$0xf]
        %v3167 = vld [vmem:[%s3161 + $0x14] sm:$0xf]
        %v3168 = vld [vmem:[%s3161 + $0x18] sm:$0xf]
        %v3169 = vld [vmem:[%s3161 + $0x1c] sm:$0xf]
        %v3170 = vld [vmem:[%s3161 + $0x20] sm:$0xf]
        %v3171 = vld [vmem:[%s3161 + $0x24] sm:$0xf]
        %v3172 = vld [vmem:[%s3161 + $0x28] sm:$0xf]
        %v3173 = vld [vmem:[%s3161 + $0x2c] sm:$0xf]
        %v3174 = vld [vmem:[%s3161 + $0x30] sm:$0xf]
        %v3175 = vld [vmem:[%s3161 + $0x34] sm:$0xf]
        %v3176 = vld [vmem:[%s3161 + $0x38] sm:$0xf]
        %v3177 = vld [vmem:[%s3161 + $0x3c] sm:$0xf]
        %v3179 = vunpack.c.l.b16 %v3160
        %v3180 = vpack.c.b16 %v2848, %v3179
        %v3181 = vrot.slane %v3180, 1
        %v3182 = vrot.slane %v2859, 1
        %v3183 = vsel %vm1859, %v3181, %v3182
        %v3184 = vrot.slane %v2860, 1
        %v3185 = vsel %vm1859, %v3182, %v3184
        %v3186 = vrot.slane %v2861, 1
        %v3187 = vsel %vm1859, %v3184, %v3186
        %v3188 = vrot.slane %v2862, 1
        %v3189 = vsel %vm1859, %v3186, %v3188
        %v3190 = vrot.slane %v2863, 1
        %v3191 = vsel %vm1859, %v3188, %v3190
        %v3213 = vunpack.c.l.b16 %v3162
        %v3214 = vunpack.c.l.b16 %v3163
        %v3215 = vunpack.c.l.b16 %v3164
        %v3216 = vunpack.c.l.b16 %v3165
        %v3217 = vunpack.c.l.b16 %v3166
        %v3218 = vunpack.c.l.b16 %v3167
        %v3219 = vunpack.c.l.b16 %v3168
        %v3220 = vunpack.c.l.b16 %v3169
        %v3221 = vunpack.c.l.b16 %v3170
        %v3222 = vunpack.c.l.b16 %v3171
        %v3223 = vunpack.c.l.b16 %v3172
        %v3224 = vunpack.c.l.b16 %v3173
        %v3225 = vunpack.c.l.b16 %v3174
        %v3226 = vunpack.c.l.b16 %v3175
        %v3227 = vunpack.c.l.b16 %v3176
        %v3228 = vunpack.c.l.b16 %v3177
        %v3229 = vpack.c.b16 %v3214, %v3213
        %v3230 = vpack.c.b16 %v3216, %v3215
        %v3231 = vpack.c.b16 %v3218, %v3217
        %v3232 = vpack.c.b16 %v3220, %v3219
        %v3233 = vpack.c.b16 %v3222, %v3221
        %v3234 = vpack.c.b16 %v3224, %v3223
        %v3235 = vpack.c.b16 %v3226, %v3225
        %v3236 = vpack.c.b16 %v3228, %v3227
        %3245 = vmatprep.subr.bf16.mxu0 0
        %3246 = vmatpush1.bf16.msra.mxu0 %v3236
        %3247 = vmatprep.subr.bf16.mxu0 0
        %3248 = vmatpush1.bf16.msra.mxu0 %v3235
        %3249 = vmatprep.subr.bf16.mxu0 0
        %3250 = vmatpush1.bf16.msra.mxu0 %v3234
        %3251 = vmatprep.subr.bf16.mxu0 0
        %3252 = vmatpush1.bf16.msra.mxu0 %v3233
        %3253 = vmatprep.subr.bf16.mxu0 0
        %3254 = vmatpush1.bf16.msra.mxu0 %v3232
        %3255 = vmatprep.subr.bf16.mxu0 0
        %3256 = vmatpush1.bf16.msra.mxu0 %v3231
        %3257 = vmatprep.subr.bf16.mxu0 0
        %3258 = vmatpush1.bf16.msra.mxu0 %v3230
        %3259 = vmatprep.subr.bf16.mxu0 0
        %3260 = vmatpush1.bf16.msra.mxu0 %v3229
        %3261 = vmatprep.subr.bf16.mxu0 0
        %3262 = vmatpush2.bf16.msra.mxu0 0
        %3263 = vmatprep.subr.bf16.mxu0 0
        %3264 = vmatpush2.bf16.msra.mxu0 0
        %3265 = vmatprep.subr.bf16.mxu0 0
        %3266 = vmatpush2.bf16.msra.mxu0 0
        %3267 = vmatprep.subr.bf16.mxu0 0
        %3268 = vmatpush2.bf16.msra.mxu0 0
        %3269 = vmatprep.subr.bf16.mxu0 0
        %3270 = vmatpush2.bf16.msra.mxu0 0
        %3271 = vmatprep.subr.bf16.mxu0 0
        %3272 = vmatpush2.bf16.msra.mxu0 0
        %3273 = vmatprep.subr.bf16.mxu0 0
        %3274 = vmatpush2.bf16.msra.mxu0 0
        %3275 = vmatprep.subr.bf16.mxu0 0
        %3276 = vmatpush2.bf16.msra.mxu0 0
        %3277 = vmatprep.mubr.bf16.mxu0 0
        %3278 = vmatmul.mubr.bf16.gmra.mxu0 %v3183
        %v3279 = vpop.f32.mrf.mxu0
        %v3280 = vadd.f32 0.0, %v3279
        %v3281 = vpop.f32.mrf.mxu0
        %v3282 = vpop.f32.mrf.mxu0
        %v3283 = vadd.f32 0.0, %v3282
        %v3284 = vpop.f32.mrf.mxu0
        %3285 = vmatprep.mubr.bf16.mxu0 0
        %3286 = vmatmul.mubr.bf16.gmra.mxu0 %v3185
        %v3287 = vpop.f32.mrf.mxu0
        %v3288 = vadd.f32 0.0, %v3287
        %v3289 = vpop.f32.mrf.mxu0
        %v3290 = vpop.f32.mrf.mxu0
        %v3291 = vadd.f32 0.0, %v3290
        %v3292 = vpop.f32.mrf.mxu0
        %3293 = vmatprep.mubr.bf16.mxu0 0
        %3294 = vmatmul.mubr.bf16.gmra.mxu0 %v3187
        %v3295 = vpop.f32.mrf.mxu0
        %v3296 = vadd.f32 0.0, %v3295
        %v3297 = vpop.f32.mrf.mxu0
        %v3298 = vpop.f32.mrf.mxu0
        %v3299 = vadd.f32 0.0, %v3298
        %v3300 = vpop.f32.mrf.mxu0
        %3301 = vmatprep.mubr.bf16.mxu0 0
        %3302 = vmatmul.mubr.bf16.gmra.mxu0 %v3189
        %v3303 = vpop.f32.mrf.mxu0
        %v3304 = vadd.f32 0.0, %v3303
        %v3305 = vpop.f32.mrf.mxu0
        %v3306 = vpop.f32.mrf.mxu0
        %v3307 = vadd.f32 0.0, %v3306
        %v3308 = vpop.f32.mrf.mxu0
        %3309 = vmatprep.mubr.bf16.mxu0 0
        %3310 = vmatmul.mubr.bf16.gmra.mxu0 %v3191
        %v3311 = vpop.f32.mrf.mxu0
        %v3312 = vadd.f32 0.0, %v3311
        %v3313 = vpop.f32.mrf.mxu0
        %v3314 = vpop.f32.mrf.mxu0
        %v3315 = vadd.f32 0.0, %v3314
        %v3316 = vpop.f32.mrf.mxu0
        %3317 = vdwg.mxu0
        %v3318 = vadd.f32 %v3122, %v3280
        %v3319 = vadd.f32 %v3125, %v3283
        %v3320 = vadd.f32 %v3130, %v3288
        %v3321 = vadd.f32 %v3133, %v3291
        %v3322 = vadd.f32 %v3138, %v3296
        %v3323 = vadd.f32 %v3141, %v3299
        %v3324 = vadd.f32 %v3146, %v3304
        %v3325 = vadd.f32 %v3149, %v3307
        %v3326 = vadd.f32 %v3154, %v3312
        %v3327 = vadd.f32 %v3157, %v3315
        %v3328 = vld [vmem:[#allocation2 + $0x4] sm:$0xe]
        %v3329 = vld [vmem:[#allocation2 + $0x8] sm:$0xf]
        %v3330 = vld [vmem:[#allocation2 + $0xc] sm:$0xf]
        %v3331 = vld [vmem:[#allocation2 + $0x10] sm:$0xf]
        %v3332 = vld [vmem:[#allocation2 + $0x14] sm:$0xf]
        %v3333 = vld [vmem:[#allocation2 + $0x18] sm:$0xf]
        %v3334 = vld [vmem:[#allocation2 + $0x1c] sm:$0xf]
        %v3335 = vld [vmem:[#allocation2 + $0x20] sm:$0xf]
        %v3336 = vld [vmem:[#allocation2 + $0x24] sm:$0xf]
        %v3337 = vld [vmem:[#allocation2 + $0x28] sm:$0xf]
        %v3338 = vld [vmem:[#allocation2 + $0x2c] sm:$0x1]
        %s3339 = scalar_lea.vmem [#allocation8], 192
        %v3340 = vld [vmem:[%s3339] sm:$0xf]
        %v3341 = vld [vmem:[%s3339 + $0x4] sm:$0xf]
        %v3342 = vld [vmem:[%s3339 + $0x8] sm:$0xf]
        %v3343 = vld [vmem:[%s3339 + $0xc] sm:$0xf]
        %v3344 = vld [vmem:[%s3339 + $0x10] sm:$0xf]
        %v3345 = vld [vmem:[%s3339 + $0x14] sm:$0xf]
        %v3346 = vld [vmem:[%s3339 + $0x18] sm:$0xf]
        %v3347 = vld [vmem:[%s3339 + $0x1c] sm:$0xf]
        %v3348 = vld [vmem:[%s3339 + $0x20] sm:$0xf]
        %v3349 = vld [vmem:[%s3339 + $0x24] sm:$0xf]
        %v3350 = vld [vmem:[%s3339 + $0x28] sm:$0xf]
        %v3351 = vld [vmem:[%s3339 + $0x2c] sm:$0xf]
        %v3352 = vld [vmem:[%s3339 + $0x30] sm:$0xf]
        %v3353 = vld [vmem:[%s3339 + $0x34] sm:$0xf]
        %v3354 = vld [vmem:[%s3339 + $0x38] sm:$0xf]
        %v3355 = vld [vmem:[%s3339 + $0x3c] sm:$0xf]
        %v3367 = vunpack.c.l.b16 %v3328
        %v3368 = vunpack.c.l.b16 %v3329
        %v3369 = vunpack.c.l.b16 %v3330
        %v3370 = vunpack.c.l.b16 %v3331
        %v3371 = vunpack.c.l.b16 %v3332
        %v3372 = vunpack.c.l.b16 %v3333
        %v3373 = vunpack.c.l.b16 %v3334
        %v3374 = vunpack.c.l.b16 %v3335
        %v3375 = vunpack.c.l.b16 %v3336
        %v3376 = vunpack.c.l.b16 %v3337
        %v3377 = vunpack.c.l.b16 %v3338
        %v3378 = vpack.c.b16 %v3368, %v3367
        %v3379 = vpack.c.b16 %v3370, %v3369
        %v3380 = vpack.c.b16 %v3372, %v3371
        %v3381 = vpack.c.b16 %v3374, %v3373
        %v3382 = vpack.c.b16 %v3376, %v3375
        %v3383 = vpack.c.b16 %v3377, %v3377
        %v3384 = vrot.slane %v3378, 1
        %v3385 = vrot.slane %v3379, 1
        %v3386 = vsel %vm1859, %v3384, %v3385
        %v3387 = vrot.slane %v3380, 1
        %v3388 = vsel %vm1859, %v3385, %v3387
        %v3389 = vrot.slane %v3381, 1
        %v3390 = vsel %vm1859, %v3387, %v3389
        %v3391 = vrot.slane %v3382, 1
        %v3392 = vsel %vm1859, %v3389, %v3391
        %v3393 = vrot.slane %v3383, 1
        %v3394 = vsel %vm1859, %v3391, %v3393
        %v3416 = vunpack.c.l.b16 %v3340
        %v3417 = vunpack.c.l.b16 %v3341
        %v3418 = vunpack.c.l.b16 %v3342
        %v3419 = vunpack.c.l.b16 %v3343
        %v3420 = vunpack.c.l.b16 %v3344
        %v3421 = vunpack.c.l.b16 %v3345
        %v3422 = vunpack.c.l.b16 %v3346
        %v3423 = vunpack.c.l.b16 %v3347
        %v3424 = vunpack.c.l.b16 %v3348
        %v3425 = vunpack.c.l.b16 %v3349
        %v3426 = vunpack.c.l.b16 %v3350
        %v3427 = vunpack.c.l.b16 %v3351
        %v3428 = vunpack.c.l.b16 %v3352
        %v3429 = vunpack.c.l.b16 %v3353
        %v3430 = vunpack.c.l.b16 %v3354
        %v3431 = vunpack.c.l.b16 %v3355
        %v3432 = vpack.c.b16 %v3417, %v3416
        %v3433 = vpack.c.b16 %v3419, %v3418
        %v3434 = vpack.c.b16 %v3421, %v3420
        %v3435 = vpack.c.b16 %v3423, %v3422
        %v3436 = vpack.c.b16 %v3425, %v3424
        %v3437 = vpack.c.b16 %v3427, %v3426
        %v3438 = vpack.c.b16 %v3429, %v3428
        %v3439 = vpack.c.b16 %v3431, %v3430
        %3448 = vmatprep.subr.bf16.mxu0 0
        %3449 = vmatpush1.bf16.msra.mxu0 %v3439
        %3450 = vmatprep.subr.bf16.mxu0 0
        %3451 = vmatpush1.bf16.msra.mxu0 %v3438
        %3452 = vmatprep.subr.bf16.mxu0 0
        %3453 = vmatpush1.bf16.msra.mxu0 %v3437
        %3454 = vmatprep.subr.bf16.mxu0 0
        %3455 = vmatpush1.bf16.msra.mxu0 %v3436
        %3456 = vmatprep.subr.bf16.mxu0 0
        %3457 = vmatpush1.bf16.msra.mxu0 %v3435
        %3458 = vmatprep.subr.bf16.mxu0 0
        %3459 = vmatpush1.bf16.msra.mxu0 %v3434
        %3460 = vmatprep.subr.bf16.mxu0 0
        %3461 = vmatpush1.bf16.msra.mxu0 %v3433
        %3462 = vmatprep.subr.bf16.mxu0 0
        %3463 = vmatpush1.bf16.msra.mxu0 %v3432
        %3464 = vmatprep.subr.bf16.mxu0 0
        %3465 = vmatpush2.bf16.msra.mxu0 0
        %3466 = vmatprep.subr.bf16.mxu0 0
        %3467 = vmatpush2.bf16.msra.mxu0 0
        %3468 = vmatprep.subr.bf16.mxu0 0
        %3469 = vmatpush2.bf16.msra.mxu0 0
        %3470 = vmatprep.subr.bf16.mxu0 0
        %3471 = vmatpush2.bf16.msra.mxu0 0
        %3472 = vmatprep.subr.bf16.mxu0 0
        %3473 = vmatpush2.bf16.msra.mxu0 0
        %3474 = vmatprep.subr.bf16.mxu0 0
        %3475 = vmatpush2.bf16.msra.mxu0 0
        %3476 = vmatprep.subr.bf16.mxu0 0
        %3477 = vmatpush2.bf16.msra.mxu0 0
        %3478 = vmatprep.subr.bf16.mxu0 0
        %3479 = vmatpush2.bf16.msra.mxu0 0
        %3480 = vmatprep.mubr.bf16.mxu0 0
        %3481 = vmatmul.mubr.bf16.gmra.mxu0 %v3386
        %v3482 = vpop.f32.mrf.mxu0
        %v3483 = vadd.f32 0.0, %v3482
        %v3484 = vpop.f32.mrf.mxu0
        %v3485 = vpop.f32.mrf.mxu0
        %v3486 = vadd.f32 0.0, %v3485
        %v3487 = vpop.f32.mrf.mxu0
        %3488 = vmatprep.mubr.bf16.mxu0 0
        %3489 = vmatmul.mubr.bf16.gmra.mxu0 %v3388
        %v3490 = vpop.f32.mrf.mxu0
        %v3491 = vadd.f32 0.0, %v3490
        %v3492 = vpop.f32.mrf.mxu0
        %v3493 = vpop.f32.mrf.mxu0
        %v3494 = vadd.f32 0.0, %v3493
        %v3495 = vpop.f32.mrf.mxu0
        %3496 = vmatprep.mubr.bf16.mxu0 0
        %3497 = vmatmul.mubr.bf16.gmra.mxu0 %v3390
        %v3498 = vpop.f32.mrf.mxu0
        %v3499 = vadd.f32 0.0, %v3498
        %v3500 = vpop.f32.mrf.mxu0
        %v3501 = vpop.f32.mrf.mxu0
        %v3502 = vadd.f32 0.0, %v3501
        %v3503 = vpop.f32.mrf.mxu0
        %3504 = vmatprep.mubr.bf16.mxu0 0
        %3505 = vmatmul.mubr.bf16.gmra.mxu0 %v3392
        %v3506 = vpop.f32.mrf.mxu0
        %v3507 = vadd.f32 0.0, %v3506
        %v3508 = vpop.f32.mrf.mxu0
        %v3509 = vpop.f32.mrf.mxu0
        %v3510 = vadd.f32 0.0, %v3509
        %v3511 = vpop.f32.mrf.mxu0
        %3512 = vmatprep.mubr.bf16.mxu0 0
        %3513 = vmatmul.mubr.bf16.gmra.mxu0 %v3394
        %v3514 = vpop.f32.mrf.mxu0
        %v3515 = vadd.f32 0.0, %v3514
        %v3516 = vpop.f32.mrf.mxu0
        %v3517 = vpop.f32.mrf.mxu0
        %v3518 = vadd.f32 0.0, %v3517
        %v3519 = vpop.f32.mrf.mxu0
        %3520 = vdwg.mxu0
        %v3521 = vadd.f32 %v3318, %v3483
        %v3522 = vadd.f32 %v3319, %v3486
        %v3523 = vadd.f32 %v3320, %v3491
        %v3524 = vadd.f32 %v3321, %v3494
        %v3525 = vadd.f32 %v3322, %v3499
        %v3526 = vadd.f32 %v3323, %v3502
        %v3527 = vadd.f32 %v3324, %v3507
        %v3528 = vadd.f32 %v3325, %v3510
        %v3529 = vadd.f32 %v3326, %v3515
        %v3530 = vadd.f32 %v3327, %v3518
        %v3531 = vld [vmem:[#allocation2 + $0x2c] sm:$0x3]
        %s3532 = scalar_lea.vmem [#allocation8], 256
        %v3533 = vld [vmem:[%s3532] sm:$0xf]
        %v3534 = vld [vmem:[%s3532 + $0x4] sm:$0xf]
        %v3535 = vld [vmem:[%s3532 + $0x8] sm:$0xf]
        %v3536 = vld [vmem:[%s3532 + $0xc] sm:$0xf]
        %v3537 = vld [vmem:[%s3532 + $0x10] sm:$0xf]
        %v3538 = vld [vmem:[%s3532 + $0x14] sm:$0xf]
        %v3539 = vld [vmem:[%s3532 + $0x18] sm:$0xf]
        %v3540 = vld [vmem:[%s3532 + $0x1c] sm:$0xf]
        %v3541 = vld [vmem:[%s3532 + $0x20] sm:$0xf]
        %v3542 = vld [vmem:[%s3532 + $0x24] sm:$0xf]
        %v3543 = vld [vmem:[%s3532 + $0x28] sm:$0xf]
        %v3544 = vld [vmem:[%s3532 + $0x2c] sm:$0xf]
        %v3545 = vld [vmem:[%s3532 + $0x30] sm:$0xf]
        %v3546 = vld [vmem:[%s3532 + $0x34] sm:$0xf]
        %v3547 = vld [vmem:[%s3532 + $0x38] sm:$0xf]
        %v3548 = vld [vmem:[%s3532 + $0x3c] sm:$0xf]
        %v3550 = vunpack.c.l.b16 %v3531
        %v3551 = vpack.c.b16 %v3550, %v3550
        %v3553 = vshrl.u32 %v3378, 16
        %v3555 = vrot.slane %v3553, 1
        %v3556 = vshll.u32 %v3378, 16
        %v3558 = vrot.slane %v3556, 2
        %v3559 = vor.u32 %v3555, %v3558
        %v3561 = vshrl.u32 %v3379, 16
        %v3563 = vrot.slane %v3561, 1
        %v3564 = vshll.u32 %v3379, 16
        %v3566 = vrot.slane %v3564, 2
        %v3567 = vor.u32 %v3563, %v3566
        %v3568 = vsel %vm2285, %v3559, %v3567
        %v3570 = vshrl.u32 %v3380, 16
        %v3572 = vrot.slane %v3570, 1
        %v3573 = vshll.u32 %v3380, 16
        %v3575 = vrot.slane %v3573, 2
        %v3576 = vor.u32 %v3572, %v3575
        %v3577 = vsel %vm2285, %v3567, %v3576
        %v3579 = vshrl.u32 %v3381, 16
        %v3581 = vrot.slane %v3579, 1
        %v3582 = vshll.u32 %v3381, 16
        %v3584 = vrot.slane %v3582, 2
        %v3585 = vor.u32 %v3581, %v3584
        %v3586 = vsel %vm2285, %v3576, %v3585
        %v3588 = vshrl.u32 %v3382, 16
        %v3590 = vrot.slane %v3588, 1
        %v3591 = vshll.u32 %v3382, 16
        %v3593 = vrot.slane %v3591, 2
        %v3594 = vor.u32 %v3590, %v3593
        %v3595 = vsel %vm2285, %v3585, %v3594
        %v3597 = vshrl.u32 %v3551, 16
        %v3599 = vrot.slane %v3597, 1
        %v3600 = vshll.u32 %v3551, 16
        %v3602 = vrot.slane %v3600, 2
        %v3603 = vor.u32 %v3599, %v3602
        %v3604 = vsel %vm2285, %v3594, %v3603
        %v3626 = vunpack.c.l.b16 %v3533
        %v3627 = vunpack.c.l.b16 %v3534
        %v3628 = vunpack.c.l.b16 %v3535
        %v3629 = vunpack.c.l.b16 %v3536
        %v3630 = vunpack.c.l.b16 %v3537
        %v3631 = vunpack.c.l.b16 %v3538
        %v3632 = vunpack.c.l.b16 %v3539
        %v3633 = vunpack.c.l.b16 %v3540
        %v3634 = vunpack.c.l.b16 %v3541
        %v3635 = vunpack.c.l.b16 %v3542
        %v3636 = vunpack.c.l.b16 %v3543
        %v3637 = vunpack.c.l.b16 %v3544
        %v3638 = vunpack.c.l.b16 %v3545
        %v3639 = vunpack.c.l.b16 %v3546
        %v3640 = vunpack.c.l.b16 %v3547
        %v3641 = vunpack.c.l.b16 %v3548
        %v3642 = vpack.c.b16 %v3627, %v3626
        %v3643 = vpack.c.b16 %v3629, %v3628
        %v3644 = vpack.c.b16 %v3631, %v3630
        %v3645 = vpack.c.b16 %v3633, %v3632
        %v3646 = vpack.c.b16 %v3635, %v3634
        %v3647 = vpack.c.b16 %v3637, %v3636
        %v3648 = vpack.c.b16 %v3639, %v3638
        %v3649 = vpack.c.b16 %v3641, %v3640
        %3658 = vmatprep.subr.bf16.mxu0 0
        %3659 = vmatpush1.bf16.msra.mxu0 %v3649
        %3660 = vmatprep.subr.bf16.mxu0 0
        %3661 = vmatpush1.bf16.msra.mxu0 %v3648
        %3662 = vmatprep.subr.bf16.mxu0 0
        %3663 = vmatpush1.bf16.msra.mxu0 %v3647
        %3664 = vmatprep.subr.bf16.mxu0 0
        %3665 = vmatpush1.bf16.msra.mxu0 %v3646
        %3666 = vmatprep.subr.bf16.mxu0 0
        %3667 = vmatpush1.bf16.msra.mxu0 %v3645
        %3668 = vmatprep.subr.bf16.mxu0 0
        %3669 = vmatpush1.bf16.msra.mxu0 %v3644
        %3670 = vmatprep.subr.bf16.mxu0 0
        %3671 = vmatpush1.bf16.msra.mxu0 %v3643
        %3672 = vmatprep.subr.bf16.mxu0 0
        %3673 = vmatpush1.bf16.msra.mxu0 %v3642
        %3674 = vmatprep.subr.bf16.mxu0 0
        %3675 = vmatpush2.bf16.msra.mxu0 0
        %3676 = vmatprep.subr.bf16.mxu0 0
        %3677 = vmatpush2.bf16.msra.mxu0 0
        %3678 = vmatprep.subr.bf16.mxu0 0
        %3679 = vmatpush2.bf16.msra.mxu0 0
        %3680 = vmatprep.subr.bf16.mxu0 0
        %3681 = vmatpush2.bf16.msra.mxu0 0
        %3682 = vmatprep.subr.bf16.mxu0 0
        %3683 = vmatpush2.bf16.msra.mxu0 0
        %3684 = vmatprep.subr.bf16.mxu0 0
        %3685 = vmatpush2.bf16.msra.mxu0 0
        %3686 = vmatprep.subr.bf16.mxu0 0
        %3687 = vmatpush2.bf16.msra.mxu0 0
        %3688 = vmatprep.subr.bf16.mxu0 0
        %3689 = vmatpush2.bf16.msra.mxu0 0
        %3690 = vmatprep.mubr.bf16.mxu0 0
        %3691 = vmatmul.mubr.bf16.gmra.mxu0 %v3568
        %v3692 = vpop.f32.mrf.mxu0
        %v3693 = vadd.f32 0.0, %v3692
        %v3694 = vpop.f32.mrf.mxu0
        %v3695 = vpop.f32.mrf.mxu0
        %v3696 = vadd.f32 0.0, %v3695
        %v3697 = vpop.f32.mrf.mxu0
        %3698 = vmatprep.mubr.bf16.mxu0 0
        %3699 = vmatmul.mubr.bf16.gmra.mxu0 %v3577
        %v3700 = vpop.f32.mrf.mxu0
        %v3701 = vadd.f32 0.0, %v3700
        %v3702 = vpop.f32.mrf.mxu0
        %v3703 = vpop.f32.mrf.mxu0
        %v3704 = vadd.f32 0.0, %v3703
        %v3705 = vpop.f32.mrf.mxu0
        %3706 = vmatprep.mubr.bf16.mxu0 0
        %3707 = vmatmul.mubr.bf16.gmra.mxu0 %v3586
        %v3708 = vpop.f32.mrf.mxu0
        %v3709 = vadd.f32 0.0, %v3708
        %v3710 = vpop.f32.mrf.mxu0
        %v3711 = vpop.f32.mrf.mxu0
        %v3712 = vadd.f32 0.0, %v3711
        %v3713 = vpop.f32.mrf.mxu0
        %3714 = vmatprep.mubr.bf16.mxu0 0
        %3715 = vmatmul.mubr.bf16.gmra.mxu0 %v3595
        %v3716 = vpop.f32.mrf.mxu0
        %v3717 = vadd.f32 0.0, %v3716
        %v3718 = vpop.f32.mrf.mxu0
        %v3719 = vpop.f32.mrf.mxu0
        %v3720 = vadd.f32 0.0, %v3719
        %v3721 = vpop.f32.mrf.mxu0
        %3722 = vmatprep.mubr.bf16.mxu0 0
        %3723 = vmatmul.mubr.bf16.gmra.mxu0 %v3604
        %v3724 = vpop.f32.mrf.mxu0
        %v3725 = vadd.f32 0.0, %v3724
        %v3726 = vpop.f32.mrf.mxu0
        %v3727 = vpop.f32.mrf.mxu0
        %v3728 = vadd.f32 0.0, %v3727
        %v3729 = vpop.f32.mrf.mxu0
        %3730 = vdwg.mxu0
        %v3731 = vadd.f32 %v3521, %v3693
        %v3732 = vadd.f32 %v3522, %v3696
        %v3733 = vadd.f32 %v3523, %v3701
        %v3734 = vadd.f32 %v3524, %v3704
        %v3735 = vadd.f32 %v3525, %v3709
        %v3736 = vadd.f32 %v3526, %v3712
        %v3737 = vadd.f32 %v3527, %v3717
        %v3738 = vadd.f32 %v3528, %v3720
        %v3739 = vadd.f32 %v3529, %v3725
        %v3740 = vadd.f32 %v3530, %v3728
        %v3741 = vld [vmem:[#allocation2 + $0x4] sm:$0xc]
        %s3742 = scalar_lea.vmem [#allocation8], 320
        %v3743 = vld [vmem:[%s3742] sm:$0xf]
        %v3744 = vld [vmem:[%s3742 + $0x4] sm:$0xf]
        %v3745 = vld [vmem:[%s3742 + $0x8] sm:$0xf]
        %v3746 = vld [vmem:[%s3742 + $0xc] sm:$0xf]
        %v3747 = vld [vmem:[%s3742 + $0x10] sm:$0xf]
        %v3748 = vld [vmem:[%s3742 + $0x14] sm:$0xf]
        %v3749 = vld [vmem:[%s3742 + $0x18] sm:$0xf]
        %v3750 = vld [vmem:[%s3742 + $0x1c] sm:$0xf]
        %v3751 = vld [vmem:[%s3742 + $0x20] sm:$0xf]
        %v3752 = vld [vmem:[%s3742 + $0x24] sm:$0xf]
        %v3753 = vld [vmem:[%s3742 + $0x28] sm:$0xf]
        %v3754 = vld [vmem:[%s3742 + $0x2c] sm:$0xf]
        %v3755 = vld [vmem:[%s3742 + $0x30] sm:$0xf]
        %v3756 = vld [vmem:[%s3742 + $0x34] sm:$0xf]
        %v3757 = vld [vmem:[%s3742 + $0x38] sm:$0xf]
        %v3758 = vld [vmem:[%s3742 + $0x3c] sm:$0xf]
        %v3760 = vunpack.c.l.b16 %v3741
        %v3761 = vpack.c.b16 %v3368, %v3760
        %vm3762 = vcmask 1045504
        %v3763 = vrot.slane %v3761, 2
        %v3764 = vrot.slane %v3379, 2
        %v3765 = vsel %vm3762, %v3763, %v3764
        %v3766 = vrot.slane %v3380, 2
        %v3767 = vsel %vm3762, %v3764, %v3766
        %v3768 = vrot.slane %v3381, 2
        %v3769 = vsel %vm3762, %v3766, %v3768
        %v3770 = vrot.slane %v3382, 2
        %v3771 = vsel %vm3762, %v3768, %v3770
        %v3772 = vrot.slane %v3551, 2
        %v3773 = vsel %vm3762, %v3770, %v3772
        %v3795 = vunpack.c.l.b16 %v3743
        %v3796 = vunpack.c.l.b16 %v3744
        %v3797 = vunpack.c.l.b16 %v3745
        %v3798 = vunpack.c.l.b16 %v3746
        %v3799 = vunpack.c.l.b16 %v3747
        %v3800 = vunpack.c.l.b16 %v3748
        %v3801 = vunpack.c.l.b16 %v3749
        %v3802 = vunpack.c.l.b16 %v3750
        %v3803 = vunpack.c.l.b16 %v3751
        %v3804 = vunpack.c.l.b16 %v3752
        %v3805 = vunpack.c.l.b16 %v3753
        %v3806 = vunpack.c.l.b16 %v3754
        %v3807 = vunpack.c.l.b16 %v3755
        %v3808 = vunpack.c.l.b16 %v3756
        %v3809 = vunpack.c.l.b16 %v3757
        %v3810 = vunpack.c.l.b16 %v3758
        %v3811 = vpack.c.b16 %v3796, %v3795
        %v3812 = vpack.c.b16 %v3798, %v3797
        %v3813 = vpack.c.b16 %v3800, %v3799
        %v3814 = vpack.c.b16 %v3802, %v3801
        %v3815 = vpack.c.b16 %v3804, %v3803
        %v3816 = vpack.c.b16 %v3806, %v3805
        %v3817 = vpack.c.b16 %v3808, %v3807
        %v3818 = vpack.c.b16 %v3810, %v3809
        %3827 = vmatprep.subr.bf16.mxu0 0
        %3828 = vmatpush1.bf16.msra.mxu0 %v3818
        %3829 = vmatprep.subr.bf16.mxu0 0
        %3830 = vmatpush1.bf16.msra.mxu0 %v3817
        %3831 = vmatprep.subr.bf16.mxu0 0
        %3832 = vmatpush1.bf16.msra.mxu0 %v3816
        %3833 = vmatprep.subr.bf16.mxu0 0
        %3834 = vmatpush1.bf16.msra.mxu0 %v3815
        %3835 = vmatprep.subr.bf16.mxu0 0
        %3836 = vmatpush1.bf16.msra.mxu0 %v3814
        %3837 = vmatprep.subr.bf16.mxu0 0
        %3838 = vmatpush1.bf16.msra.mxu0 %v3813
        %3839 = vmatprep.subr.bf16.mxu0 0
        %3840 = vmatpush1.bf16.msra.mxu0 %v3812
        %3841 = vmatprep.subr.bf16.mxu0 0
        %3842 = vmatpush1.bf16.msra.mxu0 %v3811
        %3843 = vmatprep.subr.bf16.mxu0 0
        %3844 = vmatpush2.bf16.msra.mxu0 0
        %3845 = vmatprep.subr.bf16.mxu0 0
        %3846 = vmatpush2.bf16.msra.mxu0 0
        %3847 = vmatprep.subr.bf16.mxu0 0
        %3848 = vmatpush2.bf16.msra.mxu0 0
        %3849 = vmatprep.subr.bf16.mxu0 0
        %3850 = vmatpush2.bf16.msra.mxu0 0
        %3851 = vmatprep.subr.bf16.mxu0 0
        %3852 = vmatpush2.bf16.msra.mxu0 0
        %3853 = vmatprep.subr.bf16.mxu0 0
        %3854 = vmatpush2.bf16.msra.mxu0 0
        %3855 = vmatprep.subr.bf16.mxu0 0
        %3856 = vmatpush2.bf16.msra.mxu0 0
        %3857 = vmatprep.subr.bf16.mxu0 0
        %3858 = vmatpush2.bf16.msra.mxu0 0
        %3859 = vmatprep.mubr.bf16.mxu0 0
        %3860 = vmatmul.mubr.bf16.gmra.mxu0 %v3765
        %v3861 = vpop.f32.mrf.mxu0
        %v3862 = vadd.f32 0.0, %v3861
        %v3863 = vpop.f32.mrf.mxu0
        %v3864 = vpop.f32.mrf.mxu0
        %v3865 = vadd.f32 0.0, %v3864
        %v3866 = vpop.f32.mrf.mxu0
        %3867 = vmatprep.mubr.bf16.mxu0 0
        %3868 = vmatmul.mubr.bf16.gmra.mxu0 %v3767
        %v3869 = vpop.f32.mrf.mxu0
        %v3870 = vadd.f32 0.0, %v3869
        %v3871 = vpop.f32.mrf.mxu0
        %v3872 = vpop.f32.mrf.mxu0
        %v3873 = vadd.f32 0.0, %v3872
        %v3874 = vpop.f32.mrf.mxu0
        %3875 = vmatprep.mubr.bf16.mxu0 0
        %3876 = vmatmul.mubr.bf16.gmra.mxu0 %v3769
        %v3877 = vpop.f32.mrf.mxu0
        %v3878 = vadd.f32 0.0, %v3877
        %v3879 = vpop.f32.mrf.mxu0
        %v3880 = vpop.f32.mrf.mxu0
        %v3881 = vadd.f32 0.0, %v3880
        %v3882 = vpop.f32.mrf.mxu0
        %3883 = vmatprep.mubr.bf16.mxu0 0
        %3884 = vmatmul.mubr.bf16.gmra.mxu0 %v3771
        %v3885 = vpop.f32.mrf.mxu0
        %v3886 = vadd.f32 0.0, %v3885
        %v3887 = vpop.f32.mrf.mxu0
        %v3888 = vpop.f32.mrf.mxu0
        %v3889 = vadd.f32 0.0, %v3888
        %v3890 = vpop.f32.mrf.mxu0
        %3891 = vmatprep.mubr.bf16.mxu0 0
        %3892 = vmatmul.mubr.bf16.gmra.mxu0 %v3773
        %v3893 = vpop.f32.mrf.mxu0
        %v3894 = vadd.f32 0.0, %v3893
        %v3895 = vpop.f32.mrf.mxu0
        %v3896 = vpop.f32.mrf.mxu0
        %v3897 = vadd.f32 0.0, %v3896
        %v3898 = vpop.f32.mrf.mxu0
        %3899 = vdwg.mxu0
        %v3900 = vadd.f32 %v3731, %v3862
        %v3901 = vadd.f32 %v3732, %v3865
        %v3902 = vadd.f32 %v3733, %v3870
        %v3903 = vadd.f32 %v3734, %v3873
        %v3904 = vadd.f32 %v3735, %v3878
        %v3905 = vadd.f32 %v3736, %v3881
        %v3906 = vadd.f32 %v3737, %v3886
        %v3907 = vadd.f32 %v3738, %v3889
        %v3908 = vadd.f32 %v3739, %v3894
        %v3909 = vadd.f32 %v3740, %v3897
        %v3910 = vld [vmem:[#allocation2 + $0x8] sm:$0xc]
        %v3911 = vld [vmem:[#allocation2 + $0xc] sm:$0xf]
        %v3912 = vld [vmem:[#allocation2 + $0x10] sm:$0xf]
        %v3913 = vld [vmem:[#allocation2 + $0x14] sm:$0xf]
        %v3914 = vld [vmem:[#allocation2 + $0x18] sm:$0xf]
        %v3915 = vld [vmem:[#allocation2 + $0x1c] sm:$0xf]
        %v3916 = vld [vmem:[#allocation2 + $0x20] sm:$0xf]
        %v3917 = vld [vmem:[#allocation2 + $0x24] sm:$0xf]
        %v3918 = vld [vmem:[#allocation2 + $0x28] sm:$0xf]
        %v3919 = vld [vmem:[#allocation2 + $0x2c] sm:$0xf]
        %v3920 = vld [vmem:[#allocation2 + $0x30] sm:$0x3]
        %s3921 = scalar_lea.vmem [#allocation8], 384
        %v3922 = vld [vmem:[%s3921] sm:$0xf]
        %v3923 = vld [vmem:[%s3921 + $0x4] sm:$0xf]
        %v3924 = vld [vmem:[%s3921 + $0x8] sm:$0xf]
        %v3925 = vld [vmem:[%s3921 + $0xc] sm:$0xf]
        %v3926 = vld [vmem:[%s3921 + $0x10] sm:$0xf]
        %v3927 = vld [vmem:[%s3921 + $0x14] sm:$0xf]
        %v3928 = vld [vmem:[%s3921 + $0x18] sm:$0xf]
        %v3929 = vld [vmem:[%s3921 + $0x1c] sm:$0xf]
        %v3930 = vld [vmem:[%s3921 + $0x20] sm:$0xf]
        %v3931 = vld [vmem:[%s3921 + $0x24] sm:$0xf]
        %v3932 = vld [vmem:[%s3921 + $0x28] sm:$0xf]
        %v3933 = vld [vmem:[%s3921 + $0x2c] sm:$0xf]
        %v3934 = vld [vmem:[%s3921 + $0x30] sm:$0xf]
        %v3935 = vld [vmem:[%s3921 + $0x34] sm:$0xf]
        %v3936 = vld [vmem:[%s3921 + $0x38] sm:$0xf]
        %v3937 = vld [vmem:[%s3921 + $0x3c] sm:$0xf]
        %v3949 = vunpack.c.l.b16 %v3910
        %v3950 = vunpack.c.l.b16 %v3911
        %v3951 = vunpack.c.l.b16 %v3912
        %v3952 = vunpack.c.l.b16 %v3913
        %v3953 = vunpack.c.l.b16 %v3914
        %v3954 = vunpack.c.l.b16 %v3915
        %v3955 = vunpack.c.l.b16 %v3916
        %v3956 = vunpack.c.l.b16 %v3917
        %v3957 = vunpack.c.l.b16 %v3918
        %v3958 = vunpack.c.l.b16 %v3919
        %v3959 = vunpack.c.l.b16 %v3920
        %v3960 = vpack.c.b16 %v3950, %v3949
        %v3961 = vpack.c.b16 %v3952, %v3951
        %v3962 = vpack.c.b16 %v3954, %v3953
        %v3963 = vpack.c.b16 %v3956, %v3955
        %v3964 = vpack.c.b16 %v3958, %v3957
        %v3965 = vpack.c.b16 %v3959, %v3959
        %v3966 = vrot.slane %v3960, 2
        %v3967 = vrot.slane %v3961, 2
        %v3968 = vsel %vm3762, %v3966, %v3967
        %v3969 = vrot.slane %v3962, 2
        %v3970 = vsel %vm3762, %v3967, %v3969
        %v3971 = vrot.slane %v3963, 2
        %v3972 = vsel %vm3762, %v3969, %v3971
        %v3973 = vrot.slane %v3964, 2
        %v3974 = vsel %vm3762, %v3971, %v3973
        %v3975 = vrot.slane %v3965, 2
        %v3976 = vsel %vm3762, %v3973, %v3975
        %v3998 = vunpack.c.l.b16 %v3922
        %v3999 = vunpack.c.l.b16 %v3923
        %v4000 = vunpack.c.l.b16 %v3924
        %v4001 = vunpack.c.l.b16 %v3925
        %v4002 = vunpack.c.l.b16 %v3926
        %v4003 = vunpack.c.l.b16 %v3927
        %v4004 = vunpack.c.l.b16 %v3928
        %v4005 = vunpack.c.l.b16 %v3929
        %v4006 = vunpack.c.l.b16 %v3930
        %v4007 = vunpack.c.l.b16 %v3931
        %v4008 = vunpack.c.l.b16 %v3932
        %v4009 = vunpack.c.l.b16 %v3933
        %v4010 = vunpack.c.l.b16 %v3934
        %v4011 = vunpack.c.l.b16 %v3935
        %v4012 = vunpack.c.l.b16 %v3936
        %v4013 = vunpack.c.l.b16 %v3937
        %v4014 = vpack.c.b16 %v3999, %v3998
        %v4015 = vpack.c.b16 %v4001, %v4000
        %v4016 = vpack.c.b16 %v4003, %v4002
        %v4017 = vpack.c.b16 %v4005, %v4004
        %v4018 = vpack.c.b16 %v4007, %v4006
        %v4019 = vpack.c.b16 %v4009, %v4008
        %v4020 = vpack.c.b16 %v4011, %v4010
        %v4021 = vpack.c.b16 %v4013, %v4012
        %4030 = vmatprep.subr.bf16.mxu0 0
        %4031 = vmatpush1.bf16.msra.mxu0 %v4021
        %4032 = vmatprep.subr.bf16.mxu0 0
        %4033 = vmatpush1.bf16.msra.mxu0 %v4020
        %4034 = vmatprep.subr.bf16.mxu0 0
        %4035 = vmatpush1.bf16.msra.mxu0 %v4019
        %4036 = vmatprep.subr.bf16.mxu0 0
        %4037 = vmatpush1.bf16.msra.mxu0 %v4018
        %4038 = vmatprep.subr.bf16.mxu0 0
        %4039 = vmatpush1.bf16.msra.mxu0 %v4017
        %4040 = vmatprep.subr.bf16.mxu0 0
        %4041 = vmatpush1.bf16.msra.mxu0 %v4016
        %4042 = vmatprep.subr.bf16.mxu0 0
        %4043 = vmatpush1.bf16.msra.mxu0 %v4015
        %4044 = vmatprep.subr.bf16.mxu0 0
        %4045 = vmatpush1.bf16.msra.mxu0 %v4014
        %4046 = vmatprep.subr.bf16.mxu0 0
        %4047 = vmatpush2.bf16.msra.mxu0 0
        %4048 = vmatprep.subr.bf16.mxu0 0
        %4049 = vmatpush2.bf16.msra.mxu0 0
        %4050 = vmatprep.subr.bf16.mxu0 0
        %4051 = vmatpush2.bf16.msra.mxu0 0
        %4052 = vmatprep.subr.bf16.mxu0 0
        %4053 = vmatpush2.bf16.msra.mxu0 0
        %4054 = vmatprep.subr.bf16.mxu0 0
        %4055 = vmatpush2.bf16.msra.mxu0 0
        %4056 = vmatprep.subr.bf16.mxu0 0
        %4057 = vmatpush2.bf16.msra.mxu0 0
        %4058 = vmatprep.subr.bf16.mxu0 0
        %4059 = vmatpush2.bf16.msra.mxu0 0
        %4060 = vmatprep.subr.bf16.mxu0 0
        %4061 = vmatpush2.bf16.msra.mxu0 0
        %4062 = vmatprep.mubr.bf16.mxu0 0
        %4063 = vmatmul.mubr.bf16.gmra.mxu0 %v3968
        %v4064 = vpop.f32.mrf.mxu0
        %v4065 = vadd.f32 0.0, %v4064
        %v4066 = vpop.f32.mrf.mxu0
        %v4067 = vpop.f32.mrf.mxu0
        %v4068 = vadd.f32 0.0, %v4067
        %v4069 = vpop.f32.mrf.mxu0
        %4070 = vmatprep.mubr.bf16.mxu0 0
        %4071 = vmatmul.mubr.bf16.gmra.mxu0 %v3970
        %v4072 = vpop.f32.mrf.mxu0
        %v4073 = vadd.f32 0.0, %v4072
        %v4074 = vpop.f32.mrf.mxu0
        %v4075 = vpop.f32.mrf.mxu0
        %v4076 = vadd.f32 0.0, %v4075
        %v4077 = vpop.f32.mrf.mxu0
        %4078 = vmatprep.mubr.bf16.mxu0 0
        %4079 = vmatmul.mubr.bf16.gmra.mxu0 %v3972
        %v4080 = vpop.f32.mrf.mxu0
        %v4081 = vadd.f32 0.0, %v4080
        %v4082 = vpop.f32.mrf.mxu0
        %v4083 = vpop.f32.mrf.mxu0
        %v4084 = vadd.f32 0.0, %v4083
        %v4085 = vpop.f32.mrf.mxu0
        %4086 = vmatprep.mubr.bf16.mxu0 0
        %4087 = vmatmul.mubr.bf16.gmra.mxu0 %v3974
        %v4088 = vpop.f32.mrf.mxu0
        %v4089 = vadd.f32 0.0, %v4088
        %v4090 = vpop.f32.mrf.mxu0
        %v4091 = vpop.f32.mrf.mxu0
        %v4092 = vadd.f32 0.0, %v4091
        %v4093 = vpop.f32.mrf.mxu0
        %4094 = vmatprep.mubr.bf16.mxu0 0
        %4095 = vmatmul.mubr.bf16.gmra.mxu0 %v3976
        %v4096 = vpop.f32.mrf.mxu0
        %v4097 = vadd.f32 0.0, %v4096
        %v4098 = vpop.f32.mrf.mxu0
        %v4099 = vpop.f32.mrf.mxu0
        %v4100 = vadd.f32 0.0, %v4099
        %v4101 = vpop.f32.mrf.mxu0
        %4102 = vdwg.mxu0
        %v4103 = vadd.f32 %v3900, %v4065
        %v4104 = vadd.f32 %v3901, %v4068
        %v4105 = vadd.f32 %v3902, %v4073
        %v4106 = vadd.f32 %v3903, %v4076
        %v4107 = vadd.f32 %v3904, %v4081
        %v4108 = vadd.f32 %v3905, %v4084
        %v4109 = vadd.f32 %v3906, %v4089
        %v4110 = vadd.f32 %v3907, %v4092
        %v4111 = vadd.f32 %v3908, %v4097
        %v4112 = vadd.f32 %v3909, %v4100
        %v4113 = vld [vmem:[#allocation2 + $0x30] sm:$0x7]
        %s4114 = scalar_lea.vmem [#allocation8], 448
        %v4115 = vld [vmem:[%s4114] sm:$0xf]
        %v4116 = vld [vmem:[%s4114 + $0x4] sm:$0xf]
        %v4117 = vld [vmem:[%s4114 + $0x8] sm:$0xf]
        %v4118 = vld [vmem:[%s4114 + $0xc] sm:$0xf]
        %v4119 = vld [vmem:[%s4114 + $0x10] sm:$0xf]
        %v4120 = vld [vmem:[%s4114 + $0x14] sm:$0xf]
        %v4121 = vld [vmem:[%s4114 + $0x18] sm:$0xf]
        %v4122 = vld [vmem:[%s4114 + $0x1c] sm:$0xf]
        %v4123 = vld [vmem:[%s4114 + $0x20] sm:$0xf]
        %v4124 = vld [vmem:[%s4114 + $0x24] sm:$0xf]
        %v4125 = vld [vmem:[%s4114 + $0x28] sm:$0xf]
        %v4126 = vld [vmem:[%s4114 + $0x2c] sm:$0xf]
        %v4127 = vld [vmem:[%s4114 + $0x30] sm:$0xf]
        %v4128 = vld [vmem:[%s4114 + $0x34] sm:$0xf]
        %v4129 = vld [vmem:[%s4114 + $0x38] sm:$0xf]
        %v4130 = vld [vmem:[%s4114 + $0x3c] sm:$0xf]
        %v4132 = vunpack.c.l.b16 %v4113
        %v4133 = vpack.c.b16 %v4132, %v4132
        %vm4134 = vsmask.f32 5376
        %v4136 = vshrl.u32 %v3960, 16
        %v4138 = vrot.slane %v4136, 2
        %v4139 = vshll.u32 %v3960, 16
        %v4141 = vrot.slane %v4139, 3
        %v4142 = vor.u32 %v4138, %v4141
        %v4144 = vshrl.u32 %v3961, 16
        %v4146 = vrot.slane %v4144, 2
        %v4147 = vshll.u32 %v3961, 16
        %v4149 = vrot.slane %v4147, 3
        %v4150 = vor.u32 %v4146, %v4149
        %v4151 = vsel %vm4134, %v4142, %v4150
        %v4153 = vshrl.u32 %v3962, 16
        %v4155 = vrot.slane %v4153, 2
        %v4156 = vshll.u32 %v3962, 16
        %v4158 = vrot.slane %v4156, 3
        %v4159 = vor.u32 %v4155, %v4158
        %v4160 = vsel %vm4134, %v4150, %v4159
        %v4162 = vshrl.u32 %v3963, 16
        %v4164 = vrot.slane %v4162, 2
        %v4165 = vshll.u32 %v3963, 16
        %v4167 = vrot.slane %v4165, 3
        %v4168 = vor.u32 %v4164, %v4167
        %v4169 = vsel %vm4134, %v4159, %v4168
        %v4171 = vshrl.u32 %v3964, 16
        %v4173 = vrot.slane %v4171, 2
        %v4174 = vshll.u32 %v3964, 16
        %v4176 = vrot.slane %v4174, 3
        %v4177 = vor.u32 %v4173, %v4176
        %v4178 = vsel %vm4134, %v4168, %v4177
        %v4180 = vshrl.u32 %v4133, 16
        %v4182 = vrot.slane %v4180, 2
        %v4183 = vshll.u32 %v4133, 16
        %v4185 = vrot.slane %v4183, 3
        %v4186 = vor.u32 %v4182, %v4185
        %v4187 = vsel %vm4134, %v4177, %v4186
        %v4209 = vunpack.c.l.b16 %v4115
        %v4210 = vunpack.c.l.b16 %v4116
        %v4211 = vunpack.c.l.b16 %v4117
        %v4212 = vunpack.c.l.b16 %v4118
        %v4213 = vunpack.c.l.b16 %v4119
        %v4214 = vunpack.c.l.b16 %v4120
        %v4215 = vunpack.c.l.b16 %v4121
        %v4216 = vunpack.c.l.b16 %v4122
        %v4217 = vunpack.c.l.b16 %v4123
        %v4218 = vunpack.c.l.b16 %v4124
        %v4219 = vunpack.c.l.b16 %v4125
        %v4220 = vunpack.c.l.b16 %v4126
        %v4221 = vunpack.c.l.b16 %v4127
        %v4222 = vunpack.c.l.b16 %v4128
        %v4223 = vunpack.c.l.b16 %v4129
        %v4224 = vunpack.c.l.b16 %v4130
        %v4225 = vpack.c.b16 %v4210, %v4209
        %v4226 = vpack.c.b16 %v4212, %v4211
        %v4227 = vpack.c.b16 %v4214, %v4213
        %v4228 = vpack.c.b16 %v4216, %v4215
        %v4229 = vpack.c.b16 %v4218, %v4217
        %v4230 = vpack.c.b16 %v4220, %v4219
        %v4231 = vpack.c.b16 %v4222, %v4221
        %v4232 = vpack.c.b16 %v4224, %v4223
        %4241 = vmatprep.subr.bf16.mxu0 0
        %4242 = vmatpush1.bf16.msra.mxu0 %v4232
        %4243 = vmatprep.subr.bf16.mxu0 0
        %4244 = vmatpush1.bf16.msra.mxu0 %v4231
        %4245 = vmatprep.subr.bf16.mxu0 0
        %4246 = vmatpush1.bf16.msra.mxu0 %v4230
        %4247 = vmatprep.subr.bf16.mxu0 0
        %4248 = vmatpush1.bf16.msra.mxu0 %v4229
        %4249 = vmatprep.subr.bf16.mxu0 0
        %4250 = vmatpush1.bf16.msra.mxu0 %v4228
        %4251 = vmatprep.subr.bf16.mxu0 0
        %4252 = vmatpush1.bf16.msra.mxu0 %v4227
        %4253 = vmatprep.subr.bf16.mxu0 0
        %4254 = vmatpush1.bf16.msra.mxu0 %v4226
        %4255 = vmatprep.subr.bf16.mxu0 0
        %4256 = vmatpush1.bf16.msra.mxu0 %v4225
        %4257 = vmatprep.subr.bf16.mxu0 0
        %4258 = vmatpush2.bf16.msra.mxu0 0
        %4259 = vmatprep.subr.bf16.mxu0 0
        %4260 = vmatpush2.bf16.msra.mxu0 0
        %4261 = vmatprep.subr.bf16.mxu0 0
        %4262 = vmatpush2.bf16.msra.mxu0 0
        %4263 = vmatprep.subr.bf16.mxu0 0
        %4264 = vmatpush2.bf16.msra.mxu0 0
        %4265 = vmatprep.subr.bf16.mxu0 0
        %4266 = vmatpush2.bf16.msra.mxu0 0
        %4267 = vmatprep.subr.bf16.mxu0 0
        %4268 = vmatpush2.bf16.msra.mxu0 0
        %4269 = vmatprep.subr.bf16.mxu0 0
        %4270 = vmatpush2.bf16.msra.mxu0 0
        %4271 = vmatprep.subr.bf16.mxu0 0
        %4272 = vmatpush2.bf16.msra.mxu0 0
        %4273 = vmatprep.mubr.bf16.mxu0 0
        %4274 = vmatmul.mubr.bf16.gmra.mxu0 %v4151
        %v4275 = vpop.f32.mrf.mxu0
        %v4276 = vadd.f32 0.0, %v4275
        %v4277 = vpop.f32.mrf.mxu0
        %v4278 = vpop.f32.mrf.mxu0
        %v4279 = vadd.f32 0.0, %v4278
        %v4280 = vpop.f32.mrf.mxu0
        %4281 = vmatprep.mubr.bf16.mxu0 0
        %4282 = vmatmul.mubr.bf16.gmra.mxu0 %v4160
        %v4283 = vpop.f32.mrf.mxu0
        %v4284 = vadd.f32 0.0, %v4283
        %v4285 = vpop.f32.mrf.mxu0
        %v4286 = vpop.f32.mrf.mxu0
        %v4287 = vadd.f32 0.0, %v4286
        %v4288 = vpop.f32.mrf.mxu0
        %4289 = vmatprep.mubr.bf16.mxu0 0
        %4290 = vmatmul.mubr.bf16.gmra.mxu0 %v4169
        %v4291 = vpop.f32.mrf.mxu0
        %v4292 = vadd.f32 0.0, %v4291
        %v4293 = vpop.f32.mrf.mxu0
        %v4294 = vpop.f32.mrf.mxu0
        %v4295 = vadd.f32 0.0, %v4294
        %v4296 = vpop.f32.mrf.mxu0
        %4297 = vmatprep.mubr.bf16.mxu0 0
        %4298 = vmatmul.mubr.bf16.gmra.mxu0 %v4178
        %v4299 = vpop.f32.mrf.mxu0
        %v4300 = vadd.f32 0.0, %v4299
        %v4301 = vpop.f32.mrf.mxu0
        %v4302 = vpop.f32.mrf.mxu0
        %v4303 = vadd.f32 0.0, %v4302
        %v4304 = vpop.f32.mrf.mxu0
        %4305 = vmatprep.mubr.bf16.mxu0 0
        %4306 = vmatmul.mubr.bf16.gmra.mxu0 %v4187
        %v4307 = vpop.f32.mrf.mxu0
        %v4308 = vadd.f32 0.0, %v4307
        %v4309 = vpop.f32.mrf.mxu0
        %v4310 = vpop.f32.mrf.mxu0
        %v4311 = vadd.f32 0.0, %v4310
        %v4312 = vpop.f32.mrf.mxu0
        %4313 = vdwg.mxu0
        %v4314 = vadd.f32 %v4103, %v4276
        %v4315 = vadd.f32 %v4104, %v4279
        %v4316 = vadd.f32 %v4105, %v4284
        %v4317 = vadd.f32 %v4106, %v4287
        %v4318 = vadd.f32 %v4107, %v4292
        %v4319 = vadd.f32 %v4108, %v4295
        %v4320 = vadd.f32 %v4109, %v4300
        %v4321 = vadd.f32 %v4110, %v4303
        %v4322 = vadd.f32 %v4111, %v4308
        %v4323 = vadd.f32 %v4112, %v4311
        %v4324 = vld [vmem:[#allocation2 + $0x8] sm:$0x8]
        %s4325 = scalar_lea.vmem [#allocation8], 512
        %v4326 = vld [vmem:[%s4325] sm:$0xf]
        %v4327 = vld [vmem:[%s4325 + $0x4] sm:$0xf]
        %v4328 = vld [vmem:[%s4325 + $0x8] sm:$0xf]
        %v4329 = vld [vmem:[%s4325 + $0xc] sm:$0xf]
        %v4330 = vld [vmem:[%s4325 + $0x10] sm:$0xf]
        %v4331 = vld [vmem:[%s4325 + $0x14] sm:$0xf]
        %v4332 = vld [vmem:[%s4325 + $0x18] sm:$0xf]
        %v4333 = vld [vmem:[%s4325 + $0x1c] sm:$0xf]
        %v4334 = vld [vmem:[%s4325 + $0x20] sm:$0xf]
        %v4335 = vld [vmem:[%s4325 + $0x24] sm:$0xf]
        %v4336 = vld [vmem:[%s4325 + $0x28] sm:$0xf]
        %v4337 = vld [vmem:[%s4325 + $0x2c] sm:$0xf]
        %v4338 = vld [vmem:[%s4325 + $0x30] sm:$0xf]
        %v4339 = vld [vmem:[%s4325 + $0x34] sm:$0xf]
        %v4340 = vld [vmem:[%s4325 + $0x38] sm:$0xf]
        %v4341 = vld [vmem:[%s4325 + $0x3c] sm:$0xf]
        %v4343 = vunpack.c.l.b16 %v4324
        %v4344 = vpack.c.b16 %v3950, %v4343
        %vm4345 = vcmask 1044480
        %v4346 = vrot.slane %v4344, 3
        %v4347 = vrot.slane %v3961, 3
        %v4348 = vsel %vm4345, %v4346, %v4347
        %v4349 = vrot.slane %v3962, 3
        %v4350 = vsel %vm4345, %v4347, %v4349
        %v4351 = vrot.slane %v3963, 3
        %v4352 = vsel %vm4345, %v4349, %v4351
        %v4353 = vrot.slane %v3964, 3
        %v4354 = vsel %vm4345, %v4351, %v4353
        %v4355 = vrot.slane %v4133, 3
        %v4356 = vsel %vm4345, %v4353, %v4355
        %v4378 = vunpack.c.l.b16 %v4326
        %v4379 = vunpack.c.l.b16 %v4327
        %v4380 = vunpack.c.l.b16 %v4328
        %v4381 = vunpack.c.l.b16 %v4329
        %v4382 = vunpack.c.l.b16 %v4330
        %v4383 = vunpack.c.l.b16 %v4331
        %v4384 = vunpack.c.l.b16 %v4332
        %v4385 = vunpack.c.l.b16 %v4333
        %v4386 = vunpack.c.l.b16 %v4334
        %v4387 = vunpack.c.l.b16 %v4335
        %v4388 = vunpack.c.l.b16 %v4336
        %v4389 = vunpack.c.l.b16 %v4337
        %v4390 = vunpack.c.l.b16 %v4338
        %v4391 = vunpack.c.l.b16 %v4339
        %v4392 = vunpack.c.l.b16 %v4340
        %v4393 = vunpack.c.l.b16 %v4341
        %v4394 = vpack.c.b16 %v4379, %v4378
        %v4395 = vpack.c.b16 %v4381, %v4380
        %v4396 = vpack.c.b16 %v4383, %v4382
        %v4397 = vpack.c.b16 %v4385, %v4384
        %v4398 = vpack.c.b16 %v4387, %v4386
        %v4399 = vpack.c.b16 %v4389, %v4388
        %v4400 = vpack.c.b16 %v4391, %v4390
        %v4401 = vpack.c.b16 %v4393, %v4392
        %4410 = vmatprep.subr.bf16.mxu0 0
        %4411 = vmatpush1.bf16.msra.mxu0 %v4401
        %4412 = vmatprep.subr.bf16.mxu0 0
        %4413 = vmatpush1.bf16.msra.mxu0 %v4400
        %4414 = vmatprep.subr.bf16.mxu0 0
        %4415 = vmatpush1.bf16.msra.mxu0 %v4399
        %4416 = vmatprep.subr.bf16.mxu0 0
        %4417 = vmatpush1.bf16.msra.mxu0 %v4398
        %4418 = vmatprep.subr.bf16.mxu0 0
        %4419 = vmatpush1.bf16.msra.mxu0 %v4397
        %4420 = vmatprep.subr.bf16.mxu0 0
        %4421 = vmatpush1.bf16.msra.mxu0 %v4396
        %4422 = vmatprep.subr.bf16.mxu0 0
        %4423 = vmatpush1.bf16.msra.mxu0 %v4395
        %4424 = vmatprep.subr.bf16.mxu0 0
        %4425 = vmatpush1.bf16.msra.mxu0 %v4394
        %4426 = vmatprep.subr.bf16.mxu0 0
        %4427 = vmatpush2.bf16.msra.mxu0 0
        %4428 = vmatprep.subr.bf16.mxu0 0
        %4429 = vmatpush2.bf16.msra.mxu0 0
        %4430 = vmatprep.subr.bf16.mxu0 0
        %4431 = vmatpush2.bf16.msra.mxu0 0
        %4432 = vmatprep.subr.bf16.mxu0 0
        %4433 = vmatpush2.bf16.msra.mxu0 0
        %4434 = vmatprep.subr.bf16.mxu0 0
        %4435 = vmatpush2.bf16.msra.mxu0 0
        %4436 = vmatprep.subr.bf16.mxu0 0
        %4437 = vmatpush2.bf16.msra.mxu0 0
        %4438 = vmatprep.subr.bf16.mxu0 0
        %4439 = vmatpush2.bf16.msra.mxu0 0
        %4440 = vmatprep.subr.bf16.mxu0 0
        %4441 = vmatpush2.bf16.msra.mxu0 0
        %4442 = vmatprep.mubr.bf16.mxu0 0
        %4443 = vmatmul.mubr.bf16.gmra.mxu0 %v4348
        %v4444 = vpop.f32.mrf.mxu0
        %v4445 = vadd.f32 0.0, %v4444
        %v4446 = vpop.f32.mrf.mxu0
        %v4447 = vpop.f32.mrf.mxu0
        %v4448 = vadd.f32 0.0, %v4447
        %v4449 = vpop.f32.mrf.mxu0
        %4450 = vmatprep.mubr.bf16.mxu0 0
        %4451 = vmatmul.mubr.bf16.gmra.mxu0 %v4350
        %v4452 = vpop.f32.mrf.mxu0
        %v4453 = vadd.f32 0.0, %v4452
        %v4454 = vpop.f32.mrf.mxu0
        %v4455 = vpop.f32.mrf.mxu0
        %v4456 = vadd.f32 0.0, %v4455
        %v4457 = vpop.f32.mrf.mxu0
        %4458 = vmatprep.mubr.bf16.mxu0 0
        %4459 = vmatmul.mubr.bf16.gmra.mxu0 %v4352
        %v4460 = vpop.f32.mrf.mxu0
        %v4461 = vadd.f32 0.0, %v4460
        %v4462 = vpop.f32.mrf.mxu0
        %v4463 = vpop.f32.mrf.mxu0
        %v4464 = vadd.f32 0.0, %v4463
        %v4465 = vpop.f32.mrf.mxu0
        %4466 = vmatprep.mubr.bf16.mxu0 0
        %4467 = vmatmul.mubr.bf16.gmra.mxu0 %v4354
        %v4468 = vpop.f32.mrf.mxu0
        %v4469 = vadd.f32 0.0, %v4468
        %v4470 = vpop.f32.mrf.mxu0
        %v4471 = vpop.f32.mrf.mxu0
        %v4472 = vadd.f32 0.0, %v4471
        %v4473 = vpop.f32.mrf.mxu0
        %4474 = vmatprep.mubr.bf16.mxu0 0
        %4475 = vmatmul.mubr.bf16.gmra.mxu0 %v4356
        %v4476 = vpop.f32.mrf.mxu0
        %v4477 = vadd.f32 0.0, %v4476
        %v4478 = vpop.f32.mrf.mxu0
        %v4479 = vpop.f32.mrf.mxu0
        %v4480 = vadd.f32 0.0, %v4479
        %v4481 = vpop.f32.mrf.mxu0
        %4482 = vdwg.mxu0
        %v4483 = vadd.f32 %v4314, %v4445
        %v4484 = vadd.f32 %v4315, %v4448
        %v4485 = vadd.f32 %v4316, %v4453
        %v4486 = vadd.f32 %v4317, %v4456
        %v4487 = vadd.f32 %v4318, %v4461
        %v4488 = vadd.f32 %v4319, %v4464
        %v4489 = vadd.f32 %v4320, %v4469
        %v4490 = vadd.f32 %v4321, %v4472
        %v4491 = vadd.f32 %v4322, %v4477
        %v4492 = vadd.f32 %v4323, %v4480
        %v4493 = vld [vmem:[%s4] sm:$0x1]
        %v4495 = vlaneseq
        %v4496 = vshrl.u32 %v4495, 7
        %v4497 = vsub.s32 0, %v4496
        %v4498 = vrot.slane %v4493, %v4497
        %v4500 = vadd.f32 %v4483, %v4498
        %v4501 = vadd.f32 %v4484, %v4498
        %v4502 = vadd.f32 %v4485, %v4498
        %v4503 = vadd.f32 %v4486, %v4498
        %v4504 = vadd.f32 %v4487, %v4498
        %v4505 = vadd.f32 %v4488, %v4498
        %v4506 = vadd.f32 %v4489, %v4498
        %v4507 = vadd.f32 %v4490, %v4498
        %v4508 = vadd.f32 %v4491, %v4498
        %v4509 = vadd.f32 %v4492, %v4498
        %4510 = vst [vmem:[%s376] sm:$0xff] %v4500
        %4511 = vst [vmem:[%s376 + $0x8] sm:$0xff] %v4501
        %4512 = vst [vmem:[%s376 + $0x10] sm:$0xff] %v4502
        %4513 = vst [vmem:[%s376 + $0x18] sm:$0xff] %v4503
        %4514 = vst [vmem:[%s376 + $0x20] sm:$0xff] %v4504
        %4515 = vst [vmem:[%s376 + $0x28] sm:$0xff] %v4505
        %4516 = vst [vmem:[%s376 + $0x30] sm:$0xff] %v4506
        %4517 = vst [vmem:[%s376 + $0x38] sm:$0xff] %v4507
        %4518 = vst [vmem:[%s376 + $0x40] sm:$0xff] %v4508
        %4519 = vst [vmem:[%s376 + $0x48] sm:$0xff] %v4509
        %s4520 = ssub.s32 8, %s385
        %s4521 = smul.u32 %s4520, 10
        %v4522 = vstv %s4521
        %vm4523 = vcmp.lt.s32.totalorder %v2538, %v4522
        %vm4524 = vcmp.lt.s32.totalorder %v2539, %v4522
        %vm4525 = vcmp.lt.s32.totalorder %v2540, %v4522
        %vm4526 = vcmp.lt.s32.totalorder %v2541, %v4522
        %vm4527 = vcmp.lt.s32.totalorder %v2542, %v4522
        %vm4528 = vcmp.lt.s32.totalorder %v2543, %v4522
        %vm4529 = vcmp.lt.s32.totalorder %v2544, %v4522
        %vm4530 = vcmp.lt.s32.totalorder %v2545, %v4522
        %vm4531 = vcmp.lt.s32.totalorder %v2546, %v4522
        %vm4532 = vcmp.lt.s32.totalorder %v2547, %v4522
        %v4533 = vld [vmem:[%s4] sm:$0x1]
        %v4535 = vlaneseq
        %v4536 = vshrl.u32 %v4535, 7
        %v4537 = vsub.s32 0, %v4536
        %v4538 = vrot.slane %v4533, %v4537
        %v4540 = vsub.f32 %v4500, %v4538
        %v4541 = vsub.f32 %v4501, %v4538
        %v4542 = vsub.f32 %v4502, %v4538
        %v4543 = vsub.f32 %v4503, %v4538
        %v4544 = vsub.f32 %v4504, %v4538
        %v4545 = vsub.f32 %v4505, %v4538
        %v4546 = vsub.f32 %v4506, %v4538
        %v4547 = vsub.f32 %v4507, %v4538
        %v4548 = vsub.f32 %v4508, %v4538
        %v4549 = vsub.f32 %v4509, %v4538
        %v4550 = vsel %vm4523, 1, 0
        %v4551 = vsel %vm4524, 1, 0
        %v4552 = vsel %vm4525, 1, 0
        %v4553 = vsel %vm4526, 1, 0
        %v4554 = vsel %vm4527, 1, 0
        %v4555 = vsel %vm4528, 1, 0
        %v4556 = vsel %vm4529, 1, 0
        %v4557 = vsel %vm4530, 1, 0
        %v4558 = vsel %vm4531, 1, 0
        %v4559 = vsel %vm4532, 1, 0
        %vm4560 = vcmp.eq.s32.totalorder %v4550, 1
        %vm4561 = vcmp.eq.s32.totalorder %v4551, 1
        %vm4562 = vcmp.eq.s32.totalorder %v4552, 1
        %vm4563 = vcmp.eq.s32.totalorder %v4553, 1
        %vm4564 = vcmp.eq.s32.totalorder %v4554, 1
        %vm4565 = vcmp.eq.s32.totalorder %v4555, 1
        %vm4566 = vcmp.eq.s32.totalorder %v4556, 1
        %vm4567 = vcmp.eq.s32.totalorder %v4557, 1
        %vm4568 = vcmp.eq.s32.totalorder %v4558, 1
        %vm4569 = vcmp.eq.s32.totalorder %v4559, 1
        %v4570 = vsel %vm4560, %v4540, 0.0
        %v4571 = vsel %vm4561, %v4541, 0.0
        %v4572 = vsel %vm4562, %v4542, 0.0
        %v4573 = vsel %vm4563, %v4543, 0.0
        %v4574 = vsel %vm4564, %v4544, 0.0
        %v4575 = vsel %vm4565, %v4545, 0.0
        %v4576 = vsel %vm4566, %v4546, 0.0
        %v4577 = vsel %vm4567, %v4547, 0.0
        %v4578 = vsel %vm4568, %v4548, 0.0
        %v4579 = vsel %vm4569, %v4549, 0.0
        %v4580 = vld [vmem:[%s6] sm:$0xff]
        %v4581 = vld [vmem:[%s6 + $0x8] sm:$0xff]
        %v4582 = vld [vmem:[%s6 + $0x10] sm:$0xff]
        %v4583 = vld [vmem:[%s6 + $0x18] sm:$0xff]
        %v4584 = vld [vmem:[%s6 + $0x20] sm:$0xff]
        %v4585 = vld [vmem:[%s6 + $0x28] sm:$0xff]
        %v4586 = vld [vmem:[%s6 + $0x30] sm:$0xff]
        %v4587 = vld [vmem:[%s6 + $0x38] sm:$0xff]
        %v4588 = vld [vmem:[%s6 + $0x40] sm:$0xff]
        %v4589 = vld [vmem:[%s6 + $0x48] sm:$0xff]
        %4591 = vset.pattern.permute.xlu0 0
        %4592 = vperm.xlu0 %4591, %v4580
        %v4593 = vpop.permute.xlu0 %4592
        %4596 = vset.pattern.permute.xlu0 0
        %4597 = vperm.xlu0 %4596, %v4581
        %v4598 = vpop.permute.xlu0 %4597
        %4601 = vset.pattern.permute.xlu0 0
        %4602 = vperm.xlu0 %4601, %v4582
        %v4603 = vpop.permute.xlu0 %4602
        %4606 = vset.pattern.permute.xlu0 0
        %4607 = vperm.xlu0 %4606, %v4583
        %v4608 = vpop.permute.xlu0 %4607
        %4611 = vset.pattern.permute.xlu0 0
        %4612 = vperm.xlu0 %4611, %v4584
        %v4613 = vpop.permute.xlu0 %4612
        %4616 = vset.pattern.permute.xlu0 0
        %4617 = vperm.xlu0 %4616, %v4585
        %v4618 = vpop.permute.xlu0 %4617
        %4621 = vset.pattern.permute.xlu0 0
        %4622 = vperm.xlu0 %4621, %v4586
        %v4623 = vpop.permute.xlu0 %4622
        %4626 = vset.pattern.permute.xlu0 0
        %4627 = vperm.xlu0 %4626, %v4587
        %v4628 = vpop.permute.xlu0 %4627
        %4631 = vset.pattern.permute.xlu0 0
        %4632 = vperm.xlu0 %4631, %v4588
        %v4633 = vpop.permute.xlu0 %4632
        %4636 = vset.pattern.permute.xlu0 0
        %4637 = vperm.xlu0 %4636, %v4589
        %v4638 = vpop.permute.xlu0 %4637
        %v4640 = vmul.f32 %v4570, %v4593
        %v4641 = vmul.f32 %v4571, %v4598
        %v4642 = vmul.f32 %v4572, %v4603
        %v4643 = vmul.f32 %v4573, %v4608
        %v4644 = vmul.f32 %v4574, %v4613
        %v4645 = vmul.f32 %v4575, %v4618
        %v4646 = vmul.f32 %v4576, %v4623
        %v4647 = vmul.f32 %v4577, %v4628
        %v4648 = vmul.f32 %v4578, %v4633
        %v4649 = vmul.f32 %v4579, %v4638
        %v4650 = vadd.f32 %v4640, %v4641
        %v4651 = vadd.f32 %v4650, %v4642
        %v4652 = vadd.f32 %v4651, %v4643
        %v4653 = vadd.f32 %v4652, %v4644
        %v4654 = vadd.f32 %v4653, %v4645
        %v4655 = vadd.f32 %v4654, %v4646
        %v4656 = vadd.f32 %v4655, %v4647
        %v4657 = vadd.f32 %v4656, %v4648
        %v4658 = vadd.f32 %v4657, %v4649
        %v4659 = vrot.slane %v4658, 4
        %v4660 = vadd.f32 %v4658, %v4659
        %v4661 = vrot.slane %v4660, 2
        %v4662 = vadd.f32 %v4660, %v4661
        %v4663 = vrot.slane %v4662, 1
        %v4664 = vadd.f32 %v4662, %v4663
        %4665 = vst [vmem:[%s383] sm:$0x1] %v4664
        %v4666 = vmul.f32 %v4640, %v4640
        %v4667 = vmul.f32 %v4641, %v4641
        %v4668 = vmul.f32 %v4642, %v4642
        %v4669 = vmul.f32 %v4643, %v4643
        %v4670 = vmul.f32 %v4644, %v4644
        %v4671 = vmul.f32 %v4645, %v4645
        %v4672 = vmul.f32 %v4646, %v4646
        %v4673 = vmul.f32 %v4647, %v4647
        %v4674 = vmul.f32 %v4648, %v4648
        %v4675 = vmul.f32 %v4649, %v4649
        %v4676 = vadd.f32 %v4666, %v4667
        %v4677 = vadd.f32 %v4676, %v4668
        %v4678 = vadd.f32 %v4677, %v4669
        %v4679 = vadd.f32 %v4678, %v4670
        %v4680 = vadd.f32 %v4679, %v4671
        %v4681 = vadd.f32 %v4680, %v4672
        %v4682 = vadd.f32 %v4681, %v4673
        %v4683 = vadd.f32 %v4682, %v4674
        %v4684 = vadd.f32 %v4683, %v4675
        %v4685 = vrot.slane %v4684, 4
        %v4686 = vadd.f32 %v4684, %v4685
        %v4687 = vrot.slane %v4686, 2
        %v4688 = vadd.f32 %v4686, %v4687
        %v4689 = vrot.slane %v4688, 1
        %v4690 = vadd.f32 %v4688, %v4689
        %4691 = vst [vmem:[%s383 + $0x1] sm:$0x1] %v4690
        %s4692 = sand.u32 %s206, 1
        %s4693 = scalar_lea.sflag [#allocation5], %s4692
        %s4694 = sand.u32 %s206, 1
        %s4695 = smul.addr %s4694, 80
        %s4696 = scalar_lea.vmem [#allocation9], %s4695
        %s4697 = sand.u32 %s234, 1
        %s4698 = scalar_lea.sflag [#allocation11], %s4697
        %s4699 = sand.u32 %s234, 1
        %s4700 = smul.addr %s4699, 2
        %s4701 = scalar_lea.vmem [#allocation10], %s4700
        // Predicated region
        $region61: #{tpu_custom_call.1} parent=47 // pred_check
          %p4702 = pneg %p216
        $region62: #{tpu_custom_call.1} parent=47 // pred_check_branch
          %4704 = sbr.rel (%p4702) target = $region64
        $region63: #{tpu_custom_call.1} parent=47 // pred_region
          %s4706 = ssub.s32 1280, 1280
          %4707 = vsyncadd %s4693, %s4706
          %s4708 = smul.addr %s35, 10
          %s4709 = smul.addr %s34, 10
          %s4710 = sadd.s32 %s4708, %s4709
          %s4711 = smul.addr %s4710, 128
          %s4712 = scalar_lea.hbm %s7, %s4711
          %s4713 = sshll.u32 %s4696, 4
          %s4714 = int_to_ptr.vmem [resolvable:$true] %s4713
          %4719 = dma.vmem_to_hbm [thread:$0]  %s4714, 1280, %s4712, %s4693, 128, 128, 8
        $region64: #{tpu_custom_call.1} parent=47 // pred_fallthru
          _
        // Predicated region
        $region65: #{tpu_custom_call.1} parent=47 // pred_check
          %p4720 = pneg %p244
        $region66: #{tpu_custom_call.1} parent=47 // pred_check_branch
          %4722 = sbr.rel (%p4720) target = $region68
        $region67: #{tpu_custom_call.1} parent=47 // pred_region
          %s4724 = ssub.s32 32, 32
          %4725 = vsyncadd %s4698, %s4724
          %s4726 = sadd.s32 %s35, %s34
          %s4727 = smul.addr %s4726, 32
          %s4728 = scalar_lea.hbm %s8, %s4727
          %s4730 = sshll.u32 %s4701, 4
          %s4731 = int_to_ptr.vmem [resolvable:$true] %s4730
          %4733 = dma.vmem_to_hbm [thread:$0]  %s4731, 32, %s4728, %s4698
        $region68: #{tpu_custom_call.1} parent=47 // pred_fallthru
          _
      $region48: #{tpu_custom_call.1} parent=5 // pred_fallthru
        _
      %p4734 = scmp.le.s32.totalorder 2, %s25
      // Predicated region
      $region69: #{tpu_custom_call.1} parent=5 // pred_check
        %p4735 = pneg %p4734
      $region70: #{tpu_custom_call.1} parent=5 // pred_check_branch
        %4737 = sbr.rel (%p4735) target = $region72
      $region71: #{tpu_custom_call.1} parent=5 // pred_region
        %s4738 = ssub.s32 %s25, 2
        // Predicated region
        $region73: #{tpu_custom_call.1} parent=71 // pred_check
          %p4739 = pneg %p222
        $region74: #{tpu_custom_call.1} parent=71 // pred_check_branch
          %4741 = sbr.rel (%p4739) target = $region76
        $region75: #{tpu_custom_call.1} parent=71 // pred_region
          %s4742 = sand.u32 %s207, 1
          %s4743 = scalar_lea.sflag [#allocation5], %s4742
          %s4744 = sand.u32 %s207, 1
          %s4745 = smul.addr %s4744, 80
          %s4746 = scalar_lea.vmem [#allocation9], %s4745
          %4747 = dma.done %s4743, 1280
        $region76: #{tpu_custom_call.1} parent=71 // pred_fallthru
          _
        // Predicated region
        $region77: #{tpu_custom_call.1} parent=71 // pred_check
          %p4748 = pneg %p250
        $region78: #{tpu_custom_call.1} parent=71 // pred_check_branch
          %4750 = sbr.rel (%p4748) target = $region80
        $region79: #{tpu_custom_call.1} parent=71 // pred_region
          %s4751 = sand.u32 %s235, 1
          %s4752 = scalar_lea.sflag [#allocation11], %s4751
          %s4753 = sand.u32 %s235, 1
          %s4754 = smul.addr %s4753, 2
          %s4755 = scalar_lea.vmem [#allocation10], %s4754
          %4756 = dma.done %s4752, 32
        $region80: #{tpu_custom_call.1} parent=71 // pred_fallthru
          _
      $region72: #{tpu_custom_call.1} parent=5 // pred_fallthru
        _
    $region6: #{tpu_custom_call.1} parent=1 // loop_footer
      %s29 = sadd.s32 1, %s25
    $region7: #{tpu_custom_call.1} parent=1 // loop_footer_branch
      %24 = sbr.rel target = $region3
    $region8: #{tpu_custom_call.1} parent=1 // loop_exit
      _
    %4757 = vsyncpa [#allocation4], 1
    %s4758 = scalar_lea.sflag [#allocation4], 1
    %4759 = vsyncpa %s4758, 1
    %4760 = vsyncpa [#allocation7], 1
    %4761 = vsyncpa [#allocation5], 1
    %s4762 = scalar_lea.sflag [#allocation5], 1
    %4763 = vsyncpa %s4762, 1
    %4764 = vsyncpa [#allocation11], 1
    %s4765 = scalar_lea.sflag [#allocation11], 1
    %4766 = vsyncpa %s4765, 1

</llo_original>
